<compile_context>
chip_gen: v5e
topology: v5e:2x2
jax: 0.10.0
libtpu: 0.0.40
codegen_flags: <defaults>
</compile_context>

<pallas_src>
import jax
import jax.numpy as jnp
from jax.experimental import pallas as pl
from jax.experimental.pallas import tpu as pltpu

NEG_SLOPE = 0.01          # torch.nn.LeakyReLU default
OUT_COLS = 40             # torch.zeros((B, 40)) in GRUModel.forward
MLPW = 32                 # fused front-end hidden width (16 solonoid + 16 time_step)
ROW_B1B, ROW_B2B, ROW_BFC = 32, 33, 34   # scalar slots in column 0 of the const table


def _leaky(v):
    return jnp.where(v >= 0, v, NEG_SLOPE * v)


def gru_ext_kernel(sol_ref, ts_ref, cst_ref, wh_ref, out_ref):
    """All tensors are time-/feature-major with the batch block on the lane axis.

    sol_ref, ts_ref : (S, BB)   raw solonoid / time_step, time-major
    cst_ref         : (R, 8)    packed small constants (see wrapper for layout)
    wh_ref          : (3H, H)   GRU h2h weight
    out_ref         : (40, BB)  out_val, time-major
    """
    S, BB = sol_ref.shape
    H = wh_ref.shape[1]
    H2 = 2 * H
    f32 = jnp.float32

    cst = cst_ref[...]                                      # tiny, load once per block
    wa_sol = cst[0:MLPW, 0:1]                               # (32, 1)
    wa_ts = cst[0:MLPW, 1:2]
    ba = cst[0:MLPW, 2:3]
    wb_sol = cst[0:MLPW, 3:4]
    wb_ts = cst[0:MLPW, 4:5]
    bb_sol = cst[ROW_B1B:ROW_B1B + 1, 0:1]                  # (1, 1) scalars
    bb_ts = cst[ROW_B2B:ROW_B2B + 1, 0:1]
    bfc = cst[ROW_BFC:ROW_BFC + 1, 0:1]
    w_rz = cst[0:H2, 5:6]                                   # (2H, 1) x2h weight (r|z)
    b_rz = cst[0:H2, 6:7]                                   # (2H, 1) bx + bh folded
    w_n = cst[H2:3 * H, 5:6]                                # (H, 1)  x2h weight (n)
    b_n = cst[H2:3 * H, 6:7]                                # (H, 1)  bx only
    bnh_bb = jnp.broadcast_to(cst[0:H, 7:8], (H, BB))       # hoisted h2h n-gate bias
    wfc_bb = jnp.broadcast_to(cst[H:H2, 7:8], (H, BB))      # hoisted output-proj weight

    # ---------- fused front-end MLPs, lane-major: hidden is (S, 32, BB) ----------
    sol3 = sol_ref[...][:, None, :]                         # (S, 1, BB)
    ts3 = ts_ref[...][:, None, :]
    h1 = _leaky(sol3 * wa_sol[None] + ts3 * wa_ts[None] + ba[None])    # (S, 32, BB)
    s_pre = jnp.sum(h1 * wb_sol[None], axis=1) + bb_sol                # (S, BB) sublane reduce
    t_pre = jnp.sum(h1 * wb_ts[None], axis=1) + bb_ts                  # (S, BB)
    x3 = (_leaky(s_pre) * _leaky(t_pre))[:, None, :]                   # (S, 1, BB) GRU input

    # ---------- hoisted x2h precompute for all steps (lane-major) ----------
    g_rz = x3 * w_rz[None] + b_rz[None]                     # (S, 2H, BB)
    g_n = x3 * w_n[None] + b_n[None]                        # (S, H,  BB)

    wh = wh_ref[...]                                        # (3H, H), constant across steps
    # TODO(synk): whT could be pinned in MXU weight regs across the unrolled steps via
    # pltpu.matmul_push_rhs / matmul_acc_lhs; relying on Mosaic hoisting of the constant
    # operand instead to keep this portable across v5e/v6e/v7x.

    h = jnp.zeros((H, BB), f32)
    rows = []
    for s in range(S):                                      # static unroll, S is small
        gh = jnp.dot(wh, h, preferred_element_type=f32)     # (3H, BB) h2h, no bias
        rz = jax.nn.sigmoid(g_rz[s] + gh[0:H2])             # fused r/z, full-lane vregs
        r = rz[0:H]
        z = rz[H:H2]
        n = jnp.tanh(g_n[s] + r * (gh[H2:] + bnh_bb))
        h = n + z * (h - n)                                 # GRUCell's hy
        # per-step output projection (sublane reduce) -> h is freed immediately
        rows.append(_leaky(jnp.sum(h * wfc_bb, axis=0, keepdims=True) + bfc))   # (1, BB)

    out_ref[pl.ds(0, S), :] = jnp.concatenate(rows, axis=0)         # rows [0, S)
    if S < OUT_COLS:                                                 # rows [S, 40) stay zero
        out_ref[pl.ds(S, OUT_COLS - S), :] = jnp.zeros((OUT_COLS - S, BB), f32)


def gru_model_ext(sol, ts, params):
    """sol, ts: (B, S, 1) float32.  Returns (B, 40) float32 (== PyTorch out_val)."""
    B, S, _ = sol.shape
    H = params["whT"].shape[0]
    H2 = 2 * H
    assert S <= OUT_COLS
    f32 = jnp.float32

    # ---- batch blocking: lane-dense blocks; >=2 blocks for big batches (v7x 2 TCs) ----
    BPAD = max(128, -(-B // 128) * 128)
    if BPAD <= 128:
        BB = 128
    else:
        BB = min(512, max(128, (BPAD // 2 // 128) * 128))
    BP = -(-BPAD // BB) * BB
    grid = (BP // BB,)

    # Time-major inputs, batch on lanes, zero padded.
    sol_t = jnp.zeros((S, BP), f32).at[:, :B].set(sol[:, :, 0].astype(f32).T)
    ts_t = jnp.zeros((S, BP), f32).at[:, :B].set(ts[:, :, 0].astype(f32).T)

    # ---- pack all small constants into one (R, 8) column table ----
    R = -(-max(ROW_BFC + 1, 3 * H) // 8) * 8
    z16 = jnp.zeros((16,), f32)

    def col(v):
        return jnp.zeros((R,), f32).at[:v.shape[0]].set(v.astype(f32))

    wa_sol = jnp.concatenate([params["w1a"][0], z16])        # block-diag fused front end
    wa_ts = jnp.concatenate([z16, params["w2a"][0]])
    ba = jnp.concatenate([params["b1a"][0], params["b2a"][0]])
    wb_sol = jnp.concatenate([params["w1b"][0], z16])
    wb_ts = jnp.concatenate([z16, params["w2b"][0]])

    col0 = (col(wa_sol)
            .at[ROW_B1B].set(params["b1b"][0, 0])
            .at[ROW_B2B].set(params["b2b"][0, 0])
            .at[ROW_BFC].set(params["bfc"][0, 0]))
    col5 = col(params["wx"][0])                              # x2h weight, full 3H
    col6 = col(jnp.concatenate(
        [params["bx"][0, :H2] + params["bh"][0, :H2],        # r/z: both biases folded
         params["bx"][0, H2:]]))                             # n: x2h bias only
    col7 = col(jnp.concatenate(
        [params["bh"][0, H2:],                               # n: h2h bias (inside r*(.))
         params["wfc"][0]]))                                 # output-projection weight

    cst = jnp.stack([col0, col(wa_ts), col(ba), col(wb_sol), col(wb_ts),
                     col5, col6, col7], axis=1)              # (R, 8)
    wh = params["whT"].T.astype(f32)                         # (3H, H)

    def batch_map(i):
        return (0, i)

    def const_map(i):
        return (0, 0)

    out_t = pl.pallas_call(
        gru_ext_kernel,
        out_shape=jax.ShapeDtypeStruct((OUT_COLS, BP), f32),
        grid=grid,
        in_specs=[pl.BlockSpec((S, BB), batch_map),
                  pl.BlockSpec((S, BB), batch_map),
                  pl.BlockSpec(cst.shape, const_map),
                  pl.BlockSpec(wh.shape, const_map)],
        out_specs=pl.BlockSpec((OUT_COLS, BB), batch_map),
        compiler_params=pltpu.CompilerParams(
            dimension_semantics=("parallel",)),   # batch blocks shard across TCs on v7x
    )(sol_t, ts_t, cst, wh)

    # NOTE: for very large B a consumer could take out_t (40, B) directly and skip this
    # extra HBM transpose pass; kept here to match the PyTorch (B, 40) contract.
    return out_t.T[:B]


def reference(sol, ts, params):
    """Pure-JAX reference mirroring the PyTorch forward (unfused)."""
    B, S, _ = sol.shape
    H = params["whT"].shape[0]

    def branch(x, wa, ba, wb, bb):
        xf = x.reshape(B * S, 1)
        h1 = _leaky(xf * wa + ba)
        h2 = _leaky(jnp.sum(h1 * wb, axis=1, keepdims=True) + bb)
        return h2.reshape(B, S)

    s_out = branch(sol[:, :, 0], params["w1a"], params["b1a"], params["w1b"], params["b1b"])
    t_out = branch(ts[:, :, 0], params["w2a"], params["b2a"], params["w2b"], params["b2b"])
    x_in = s_out * t_out

    h = jnp.zeros((B, H), jnp.float32)
    out_val = jnp.zeros((B, OUT_COLS), jnp.float32)
    for s in range(S):
        xs = x_in[:, s:s + 1]
        gate_x = xs * params["wx"] + params["bx"]
        gate_h = h @ params["whT"] + params["bh"]
        i_r, i_i, i_n = gate_x[:, 0:H], gate_x[:, H:2 * H], gate_x[:, 2 * H:3 * H]
        h_r, h_i, h_n = gate_h[:, 0:H], gate_h[:, H:2 * H], gate_h[:, 2 * H:3 * H]
        r = jax.nn.sigmoid(i_r + h_r)
        z = jax.nn.sigmoid(i_i + h_i)
        n = jnp.tanh(i_n + r * h_n)
        h = n + z * (h - n)
        out = _leaky(jnp.sum(h * params["wfc"], axis=1, keepdims=True) + params["bfc"])
        out_val = out_val.at[:, s].set(out[:, 0])
    return out_val


if __name__ == "__main__":
    # Small shapes consistent with the module: batch=2, seq=8, input_dim=1, hidden=32.
    B, S, H = 2, 8, 32
    STD = 1.0 / (16.0 ** 0.5)  # GRUModel_ext.reset_parameters: uniform(-1/sqrt(16), 1/sqrt(16))

    key = jax.random.PRNGKey(0)
    keys = jax.random.split(key, 18)

    def u(k, shape):
        return jax.random.uniform(k, shape, jnp.float32, -STD, STD)

    params = {
        # ext fc1s (solonoid branch): Linear(1,16), Linear(16,1)
        "w1a": u(keys[0], (1, 16)), "b1a": u(keys[1], (1, 16)),
        "w1b": u(keys[2], (1, 16)), "b1b": u(keys[3], (1, 1)),
        # ext fc2s (time_step branch): Linear(1,16), Linear(16,1)
        "w2a": u(keys[4], (1, 16)), "b2a": u(keys[5], (1, 16)),
        "w2b": u(keys[6], (1, 16)), "b2b": u(keys[7], (1, 1)),
        # GRUCell (rc_seq=0): x2h Linear(1, 3H), h2h Linear(H, 3H)  (stored transposed)
        "wx": u(keys[8], (1, 3 * H)), "bx": u(keys[9], (1, 3 * H)),
        "whT": u(keys[10], (H, 3 * H)), "bh": u(keys[11], (1, 3 * H)),
        # GRUModel fc1s[rc_seq]: Linear(H, 1)
        "wfc": u(keys[12], (1, H)), "bfc": u(keys[13], (1, 1)),
    }

    solonoid = jax.random.normal(keys[14], (B, S, 1), jnp.float32)
    time_step = jax.random.normal(keys[15], (B, S, 1), jnp.float32)

    out = gru_model_ext(solonoid, time_step, params)
    jax.block_until_ready(out)
    ref = reference(solonoid, time_step, params)
    assert out.shape == (B, OUT_COLS)
    assert jnp.allclose(out, ref, rtol=1e-4, atol=1e-4), "kernel does not match reference (B=2)"

    # Also exercise the multi-block (grid > 1) lane-major path with a larger batch.
    B2 = 260
    sol2 = jax.random.normal(keys[16], (B2, S, 1), jnp.float32)
    ts2 = jax.random.normal(keys[17], (B2, S, 1), jnp.float32)
    out2 = gru_model_ext(sol2, ts2, params)
    jax.block_until_ready(out2)
    ref2 = reference(sol2, ts2, params)
    assert out2.shape == (B2, OUT_COLS)
    assert jnp.allclose(out2, ref2, rtol=5e-4, atol=5e-4), "kernel does not match reference (B=260)"

    print("KERNEL_OK")
</pallas_src>

<mosaic_0001>
module attributes {stable_mosaic.version = 11 : i64} {
  func.func @gru_ext_kernel(%arg0: i32, %arg1: memref<8x128xf32, #tpu.memory_space<vmem>>, %arg2: memref<8x128xf32, #tpu.memory_space<vmem>>, %arg3: memref<96x8xf32, #tpu.memory_space<vmem>>, %arg4: memref<96x32xf32, #tpu.memory_space<vmem>>, %arg5: memref<40x128xf32, #tpu.memory_space<vmem>>) attributes {dimension_semantics = [#tpu.dimension_semantics<parallel>], iteration_bounds = array<i64: 1>, scalar_prefetch = 0 : i64, scratch_operands = 0 : i64, tpu.core_type = #tpu.core_type<tc>, window_params = [{transform_indices = @transform_0, window_bounds = array<i64: 8, 128>}, {transform_indices = @transform_1, window_bounds = array<i64: 8, 128>}, {pipeline_mode = #tpu.pipeline_mode<synchronous>, transform_indices = @transform_2, window_bounds = array<i64: 96, 8>}, {pipeline_mode = #tpu.pipeline_mode<synchronous>, transform_indices = @transform_3, window_bounds = array<i64: 96, 32>}, {transform_indices = @transform_4, window_bounds = array<i64: 40, 128>}]} {
    %c0 = arith.constant 0 : index
    %c0_0 = arith.constant 0 : index
    %0 = vector.load %arg3[%c0, %c0_0] : memref<96x8xf32, #tpu.memory_space<vmem>>, vector<96x8xf32>
    %1 = vector.extract_strided_slice %0 {offsets = [0, 0], sizes = [32, 1], strides = [1, 1]} : vector<96x8xf32> to vector<32x1xf32>
    %2 = vector.extract_strided_slice %0 {offsets = [0, 1], sizes = [32, 1], strides = [1, 1]} : vector<96x8xf32> to vector<32x1xf32>
    %3 = vector.extract_strided_slice %0 {offsets = [0, 2], sizes = [32, 1], strides = [1, 1]} : vector<96x8xf32> to vector<32x1xf32>
    %4 = vector.extract_strided_slice %0 {offsets = [0, 3], sizes = [32, 1], strides = [1, 1]} : vector<96x8xf32> to vector<32x1xf32>
    %5 = vector.extract_strided_slice %0 {offsets = [0, 4], sizes = [32, 1], strides = [1, 1]} : vector<96x8xf32> to vector<32x1xf32>
    %6 = vector.extract_strided_slice %0 {offsets = [32, 0], sizes = [1, 1], strides = [1, 1]} : vector<96x8xf32> to vector<1x1xf32>
    %7 = vector.extract_strided_slice %0 {offsets = [33, 0], sizes = [1, 1], strides = [1, 1]} : vector<96x8xf32> to vector<1x1xf32>
    %8 = vector.extract_strided_slice %0 {offsets = [34, 0], sizes = [1, 1], strides = [1, 1]} : vector<96x8xf32> to vector<1x1xf32>
    %9 = vector.extract_strided_slice %0 {offsets = [0, 5], sizes = [64, 1], strides = [1, 1]} : vector<96x8xf32> to vector<64x1xf32>
    %10 = vector.extract_strided_slice %0 {offsets = [0, 6], sizes = [64, 1], strides = [1, 1]} : vector<96x8xf32> to vector<64x1xf32>
    %11 = vector.extract_strided_slice %0 {offsets = [64, 5], sizes = [32, 1], strides = [1, 1]} : vector<96x8xf32> to vector<32x1xf32>
    %12 = vector.extract_strided_slice %0 {offsets = [64, 6], sizes = [32, 1], strides = [1, 1]} : vector<96x8xf32> to vector<32x1xf32>
    %13 = vector.extract_strided_slice %0 {offsets = [0, 7], sizes = [32, 1], strides = [1, 1]} : vector<96x8xf32> to vector<32x1xf32>
    %14 = vector.shape_cast %13 : vector<32x1xf32> to vector<32x1xf32>
    %15 = vector.broadcast %14 : vector<32x1xf32> to vector<32x128xf32>
    %16 = vector.extract_strided_slice %0 {offsets = [32, 7], sizes = [32, 1], strides = [1, 1]} : vector<96x8xf32> to vector<32x1xf32>
    %17 = vector.shape_cast %16 : vector<32x1xf32> to vector<32x1xf32>
    %18 = vector.broadcast %17 : vector<32x1xf32> to vector<32x128xf32>
    %c0_1 = arith.constant 0 : index
    %c0_2 = arith.constant 0 : index
    %19 = vector.load %arg1[%c0_1, %c0_2] : memref<8x128xf32, #tpu.memory_space<vmem>>, vector<8x128xf32>
    %20 = vector.shape_cast %19 : vector<8x128xf32> to vector<8x1x128xf32>
    %c0_3 = arith.constant 0 : index
    %c0_4 = arith.constant 0 : index
    %21 = vector.load %arg2[%c0_3, %c0_4] : memref<8x128xf32, #tpu.memory_space<vmem>>, vector<8x128xf32>
    %22 = vector.shape_cast %21 : vector<8x128xf32> to vector<8x1x128xf32>
    %23 = vector.shape_cast %1 : vector<32x1xf32> to vector<1x32x1xf32>
    %24 = vector.broadcast %20 : vector<8x1x128xf32> to vector<8x32x128xf32>
    %25 = vector.broadcast %23 : vector<1x32x1xf32> to vector<8x32x128xf32>
    %26 = arith.mulf %24, %25 : vector<8x32x128xf32>
    %27 = vector.shape_cast %2 : vector<32x1xf32> to vector<1x32x1xf32>
    %28 = vector.broadcast %22 : vector<8x1x128xf32> to vector<8x32x128xf32>
    %29 = vector.broadcast %27 : vector<1x32x1xf32> to vector<8x32x128xf32>
    %30 = arith.mulf %28, %29 : vector<8x32x128xf32>
    %31 = arith.addf %26, %30 : vector<8x32x128xf32>
    %32 = vector.shape_cast %3 : vector<32x1xf32> to vector<1x32x1xf32>
    %33 = vector.broadcast %32 : vector<1x32x1xf32> to vector<8x32x128xf32>
    %34 = arith.addf %31, %33 : vector<8x32x128xf32>
    %cst = arith.constant 0.000000e+00 : f32
    %35 = vector.broadcast %cst : f32 to vector<8x32x128xf32>
    %36 = arith.cmpf oge, %34, %35 : vector<8x32x128xf32>
    %cst_5 = arith.constant 0.00999999977 : f32
    %37 = vector.broadcast %cst_5 : f32 to vector<8x32x128xf32>
    %38 = arith.mulf %37, %34 : vector<8x32x128xf32>
    %39 = arith.select %36, %34, %38 : vector<8x32x128xi1>, vector<8x32x128xf32>
    %40 = vector.shape_cast %4 : vector<32x1xf32> to vector<1x32x1xf32>
    %41 = vector.broadcast %40 : vector<1x32x1xf32> to vector<8x32x128xf32>
    %42 = arith.mulf %39, %41 : vector<8x32x128xf32>
    %cst_6 = arith.constant dense<0.000000e+00> : vector<8x128xf32>
    %43 = vector.multi_reduction <add>, %42, %cst_6 [1] : vector<8x32x128xf32> to vector<8x128xf32>
    %44 = vector.broadcast %6 : vector<1x1xf32> to vector<8x128xf32>
    %45 = arith.addf %43, %44 : vector<8x128xf32>
    %46 = vector.shape_cast %5 : vector<32x1xf32> to vector<1x32x1xf32>
    %47 = vector.broadcast %46 : vector<1x32x1xf32> to vector<8x32x128xf32>
    %48 = arith.mulf %39, %47 : vector<8x32x128xf32>
    %cst_7 = arith.constant dense<0.000000e+00> : vector<8x128xf32>
    %49 = vector.multi_reduction <add>, %48, %cst_7 [1] : vector<8x32x128xf32> to vector<8x128xf32>
    %50 = vector.broadcast %7 : vector<1x1xf32> to vector<8x128xf32>
    %51 = arith.addf %49, %50 : vector<8x128xf32>
    %cst_8 = arith.constant 0.000000e+00 : f32
    %52 = vector.broadcast %cst_8 : f32 to vector<8x128xf32>
    %53 = arith.cmpf oge, %45, %52 : vector<8x128xf32>
    %cst_9 = arith.constant 0.00999999977 : f32
    %54 = vector.broadcast %cst_9 : f32 to vector<8x128xf32>
    %55 = arith.mulf %54, %45 : vector<8x128xf32>
    %56 = arith.select %53, %45, %55 : vector<8x128xi1>, vector<8x128xf32>
    %cst_10 = arith.constant 0.000000e+00 : f32
    %57 = vector.broadcast %cst_10 : f32 to vector<8x128xf32>
    %58 = arith.cmpf oge, %51, %57 : vector<8x128xf32>
    %cst_11 = arith.constant 0.00999999977 : f32
    %59 = vector.broadcast %cst_11 : f32 to vector<8x128xf32>
    %60 = arith.mulf %59, %51 : vector<8x128xf32>
    %61 = arith.select %58, %51, %60 : vector<8x128xi1>, vector<8x128xf32>
    %62 = arith.mulf %56, %61 : vector<8x128xf32>
    %63 = vector.shape_cast %62 : vector<8x128xf32> to vector<8x1x128xf32>
    %64 = vector.shape_cast %9 : vector<64x1xf32> to vector<1x64x1xf32>
    %65 = vector.broadcast %63 : vector<8x1x128xf32> to vector<8x64x128xf32>
    %66 = vector.broadcast %64 : vector<1x64x1xf32> to vector<8x64x128xf32>
    %67 = arith.mulf %65, %66 : vector<8x64x128xf32>
    %68 = vector.shape_cast %10 : vector<64x1xf32> to vector<1x64x1xf32>
    %69 = vector.broadcast %68 : vector<1x64x1xf32> to vector<8x64x128xf32>
    %70 = arith.addf %67, %69 : vector<8x64x128xf32>
    %71 = vector.shape_cast %11 : vector<32x1xf32> to vector<1x32x1xf32>
    %72 = vector.broadcast %63 : vector<8x1x128xf32> to vector<8x32x128xf32>
    %73 = vector.broadcast %71 : vector<1x32x1xf32> to vector<8x32x128xf32>
    %74 = arith.mulf %72, %73 : vector<8x32x128xf32>
    %75 = vector.shape_cast %12 : vector<32x1xf32> to vector<1x32x1xf32>
    %76 = vector.broadcast %75 : vector<1x32x1xf32> to vector<8x32x128xf32>
    %77 = arith.addf %74, %76 : vector<8x32x128xf32>
    %c0_12 = arith.constant 0 : index
    %c0_13 = arith.constant 0 : index
    %78 = vector.load %arg4[%c0_12, %c0_13] : memref<96x32xf32, #tpu.memory_space<vmem>>, vector<96x32xf32>
    %cst_14 = arith.constant 0.000000e+00 : f32
    %79 = vector.broadcast %cst_14 : f32 to vector<32x128xf32>
    %cst_15 = arith.constant dense<0.000000e+00> : vector<96x128xf32>
    %80 = tpu.matmul %78, %79, %cst_15 {dimension_numbers = #tpu.dot_dimension_numbers<[1], [0], [0], [1], [0, 0, 1, 1], [], []>} : vector<96x32xf32>, vector<32x128xf32>, vector<96x128xf32> -> vector<96x128xf32>
    %81 = vector.extract_strided_slice %70 {offsets = [0, 0, 0], sizes = [1, 64, 128], strides = [1, 1, 1]} : vector<8x64x128xf32> to vector<1x64x128xf32>
    %82 = vector.shape_cast %81 : vector<1x64x128xf32> to vector<64x128xf32>
    %83 = vector.extract_strided_slice %80 {offsets = [0, 0], sizes = [64, 128], strides = [1, 1]} : vector<96x128xf32> to vector<64x128xf32>
    %84 = arith.addf %82, %83 : vector<64x128xf32>
    %85 = arith.negf %84 : vector<64x128xf32>
    %86 = math.exp %85 : vector<64x128xf32>
    %cst_16 = arith.constant 1.000000e+00 : f32
    %87 = vector.broadcast %cst_16 : f32 to vector<64x128xf32>
    %88 = arith.addf %87, %86 : vector<64x128xf32>
    %89 = arith.divf %87, %88 : vector<64x128xf32>
    %90 = vector.extract_strided_slice %89 {offsets = [0, 0], sizes = [32, 128], strides = [1, 1]} : vector<64x128xf32> to vector<32x128xf32>
    %91 = vector.extract_strided_slice %89 {offsets = [32, 0], sizes = [32, 128], strides = [1, 1]} : vector<64x128xf32> to vector<32x128xf32>
    %92 = vector.extract_strided_slice %77 {offsets = [0, 0, 0], sizes = [1, 32, 128], strides = [1, 1, 1]} : vector<8x32x128xf32> to vector<1x32x128xf32>
    %93 = vector.shape_cast %92 : vector<1x32x128xf32> to vector<32x128xf32>
    %94 = vector.extract_strided_slice %80 {offsets = [64, 0], sizes = [32, 128], strides = [1, 1]} : vector<96x128xf32> to vector<32x128xf32>
    %95 = arith.addf %94, %15 : vector<32x128xf32>
    %96 = arith.mulf %90, %95 : vector<32x128xf32>
    %97 = arith.addf %93, %96 : vector<32x128xf32>
    %98 = math.tanh %97 : vector<32x128xf32>
    %99 = arith.subf %79, %98 : vector<32x128xf32>
    %100 = arith.mulf %91, %99 : vector<32x128xf32>
    %101 = arith.addf %98, %100 : vector<32x128xf32>
    %102 = arith.mulf %101, %18 : vector<32x128xf32>
    %cst_17 = arith.constant dense<0.000000e+00> : vector<128xf32>
    %103 = vector.multi_reduction <add>, %102, %cst_17 [0] : vector<32x128xf32> to vector<128xf32>
    %104 = vector.shape_cast %103 : vector<128xf32> to vector<1x128xf32>
    %105 = vector.broadcast %8 : vector<1x1xf32> to vector<1x128xf32>
    %106 = arith.addf %104, %105 : vector<1x128xf32>
    %cst_18 = arith.constant 0.000000e+00 : f32
    %107 = vector.broadcast %cst_18 : f32 to vector<1x128xf32>
    %108 = arith.cmpf oge, %106, %107 : vector<1x128xf32>
    %cst_19 = arith.constant 0.00999999977 : f32
    %109 = vector.broadcast %cst_19 : f32 to vector<1x128xf32>
    %110 = arith.mulf %109, %106 : vector<1x128xf32>
    %111 = arith.select %108, %106, %110 : vector<1x128xi1>, vector<1x128xf32>
    %cst_20 = arith.constant dense<0.000000e+00> : vector<96x128xf32>
    %112 = tpu.matmul %78, %101, %cst_20 {dimension_numbers = #tpu.dot_dimension_numbers<[1], [0], [0], [1], [0, 0, 1, 1], [], []>} : vector<96x32xf32>, vector<32x128xf32>, vector<96x128xf32> -> vector<96x128xf32>
    %113 = vector.extract_strided_slice %70 {offsets = [1, 0, 0], sizes = [1, 64, 128], strides = [1, 1, 1]} : vector<8x64x128xf32> to vector<1x64x128xf32>
    %114 = vector.shape_cast %113 : vector<1x64x128xf32> to vector<64x128xf32>
    %115 = vector.extract_strided_slice %112 {offsets = [0, 0], sizes = [64, 128], strides = [1, 1]} : vector<96x128xf32> to vector<64x128xf32>
    %116 = arith.addf %114, %115 : vector<64x128xf32>
    %117 = arith.negf %116 : vector<64x128xf32>
    %118 = math.exp %117 : vector<64x128xf32>
    %cst_21 = arith.constant 1.000000e+00 : f32
    %119 = vector.broadcast %cst_21 : f32 to vector<64x128xf32>
    %120 = arith.addf %119, %118 : vector<64x128xf32>
    %121 = arith.divf %119, %120 : vector<64x128xf32>
    %122 = vector.extract_strided_slice %121 {offsets = [0, 0], sizes = [32, 128], strides = [1, 1]} : vector<64x128xf32> to vector<32x128xf32>
    %123 = vector.extract_strided_slice %121 {offsets = [32, 0], sizes = [32, 128], strides = [1, 1]} : vector<64x128xf32> to vector<32x128xf32>
    %124 = vector.extract_strided_slice %77 {offsets = [1, 0, 0], sizes = [1, 32, 128], strides = [1, 1, 1]} : vector<8x32x128xf32> to vector<1x32x128xf32>
    %125 = vector.shape_cast %124 : vector<1x32x128xf32> to vector<32x128xf32>
    %126 = vector.extract_strided_slice %112 {offsets = [64, 0], sizes = [32, 128], strides = [1, 1]} : vector<96x128xf32> to vector<32x128xf32>
    %127 = arith.addf %126, %15 : vector<32x128xf32>
    %128 = arith.mulf %122, %127 : vector<32x128xf32>
    %129 = arith.addf %125, %128 : vector<32x128xf32>
    %130 = math.tanh %129 : vector<32x128xf32>
    %131 = arith.subf %101, %130 : vector<32x128xf32>
    %132 = arith.mulf %123, %131 : vector<32x128xf32>
    %133 = arith.addf %130, %132 : vector<32x128xf32>
    %134 = arith.mulf %133, %18 : vector<32x128xf32>
    %cst_22 = arith.constant dense<0.000000e+00> : vector<128xf32>
    %135 = vector.multi_reduction <add>, %134, %cst_22 [0] : vector<32x128xf32> to vector<128xf32>
    %136 = vector.shape_cast %135 : vector<128xf32> to vector<1x128xf32>
    %137 = vector.broadcast %8 : vector<1x1xf32> to vector<1x128xf32>
    %138 = arith.addf %136, %137 : vector<1x128xf32>
    %cst_23 = arith.constant 0.000000e+00 : f32
    %139 = vector.broadcast %cst_23 : f32 to vector<1x128xf32>
    %140 = arith.cmpf oge, %138, %139 : vector<1x128xf32>
    %cst_24 = arith.constant 0.00999999977 : f32
    %141 = vector.broadcast %cst_24 : f32 to vector<1x128xf32>
    %142 = arith.mulf %141, %138 : vector<1x128xf32>
    %143 = arith.select %140, %138, %142 : vector<1x128xi1>, vector<1x128xf32>
    %cst_25 = arith.constant dense<0.000000e+00> : vector<96x128xf32>
    %144 = tpu.matmul %78, %133, %cst_25 {dimension_numbers = #tpu.dot_dimension_numbers<[1], [0], [0], [1], [0, 0, 1, 1], [], []>} : vector<96x32xf32>, vector<32x128xf32>, vector<96x128xf32> -> vector<96x128xf32>
    %145 = vector.extract_strided_slice %70 {offsets = [2, 0, 0], sizes = [1, 64, 128], strides = [1, 1, 1]} : vector<8x64x128xf32> to vector<1x64x128xf32>
    %146 = vector.shape_cast %145 : vector<1x64x128xf32> to vector<64x128xf32>
    %147 = vector.extract_strided_slice %144 {offsets = [0, 0], sizes = [64, 128], strides = [1, 1]} : vector<96x128xf32> to vector<64x128xf32>
    %148 = arith.addf %146, %147 : vector<64x128xf32>
    %149 = arith.negf %148 : vector<64x128xf32>
    %150 = math.exp %149 : vector<64x128xf32>
    %cst_26 = arith.constant 1.000000e+00 : f32
    %151 = vector.broadcast %cst_26 : f32 to vector<64x128xf32>
    %152 = arith.addf %151, %150 : vector<64x128xf32>
    %153 = arith.divf %151, %152 : vector<64x128xf32>
    %154 = vector.extract_strided_slice %153 {offsets = [0, 0], sizes = [32, 128], strides = [1, 1]} : vector<64x128xf32> to vector<32x128xf32>
    %155 = vector.extract_strided_slice %153 {offsets = [32, 0], sizes = [32, 128], strides = [1, 1]} : vector<64x128xf32> to vector<32x128xf32>
    %156 = vector.extract_strided_slice %77 {offsets = [2, 0, 0], sizes = [1, 32, 128], strides = [1, 1, 1]} : vector<8x32x128xf32> to vector<1x32x128xf32>
    %157 = vector.shape_cast %156 : vector<1x32x128xf32> to vector<32x128xf32>
    %158 = vector.extract_strided_slice %144 {offsets = [64, 0], sizes = [32, 128], strides = [1, 1]} : vector<96x128xf32> to vector<32x128xf32>
    %159 = arith.addf %158, %15 : vector<32x128xf32>
    %160 = arith.mulf %154, %159 : vector<32x128xf32>
    %161 = arith.addf %157, %160 : vector<32x128xf32>
    %162 = math.tanh %161 : vector<32x128xf32>
    %163 = arith.subf %133, %162 : vector<32x128xf32>
    %164 = arith.mulf %155, %163 : vector<32x128xf32>
    %165 = arith.addf %162, %164 : vector<32x128xf32>
    %166 = arith.mulf %165, %18 : vector<32x128xf32>
    %cst_27 = arith.constant dense<0.000000e+00> : vector<128xf32>
    %167 = vector.multi_reduction <add>, %166, %cst_27 [0] : vector<32x128xf32> to vector<128xf32>
    %168 = vector.shape_cast %167 : vector<128xf32> to vector<1x128xf32>
    %169 = vector.broadcast %8 : vector<1x1xf32> to vector<1x128xf32>
    %170 = arith.addf %168, %169 : vector<1x128xf32>
    %cst_28 = arith.constant 0.000000e+00 : f32
    %171 = vector.broadcast %cst_28 : f32 to vector<1x128xf32>
    %172 = arith.cmpf oge, %170, %171 : vector<1x128xf32>
    %cst_29 = arith.constant 0.00999999977 : f32
    %173 = vector.broadcast %cst_29 : f32 to vector<1x128xf32>
    %174 = arith.mulf %173, %170 : vector<1x128xf32>
    %175 = arith.select %172, %170, %174 : vector<1x128xi1>, vector<1x128xf32>
    %cst_30 = arith.constant dense<0.000000e+00> : vector<96x128xf32>
    %176 = tpu.matmul %78, %165, %cst_30 {dimension_numbers = #tpu.dot_dimension_numbers<[1], [0], [0], [1], [0, 0, 1, 1], [], []>} : vector<96x32xf32>, vector<32x128xf32>, vector<96x128xf32> -> vector<96x128xf32>
    %177 = vector.extract_strided_slice %70 {offsets = [3, 0, 0], sizes = [1, 64, 128], strides = [1, 1, 1]} : vector<8x64x128xf32> to vector<1x64x128xf32>
    %178 = vector.shape_cast %177 : vector<1x64x128xf32> to vector<64x128xf32>
    %179 = vector.extract_strided_slice %176 {offsets = [0, 0], sizes = [64, 128], strides = [1, 1]} : vector<96x128xf32> to vector<64x128xf32>
    %180 = arith.addf %178, %179 : vector<64x128xf32>
    %181 = arith.negf %180 : vector<64x128xf32>
    %182 = math.exp %181 : vector<64x128xf32>
    %cst_31 = arith.constant 1.000000e+00 : f32
    %183 = vector.broadcast %cst_31 : f32 to vector<64x128xf32>
    %184 = arith.addf %183, %182 : vector<64x128xf32>
    %185 = arith.divf %183, %184 : vector<64x128xf32>
    %186 = vector.extract_strided_slice %185 {offsets = [0, 0], sizes = [32, 128], strides = [1, 1]} : vector<64x128xf32> to vector<32x128xf32>
    %187 = vector.extract_strided_slice %185 {offsets = [32, 0], sizes = [32, 128], strides = [1, 1]} : vector<64x128xf32> to vector<32x128xf32>
    %188 = vector.extract_strided_slice %77 {offsets = [3, 0, 0], sizes = [1, 32, 128], strides = [1, 1, 1]} : vector<8x32x128xf32> to vector<1x32x128xf32>
    %189 = vector.shape_cast %188 : vector<1x32x128xf32> to vector<32x128xf32>
    %190 = vector.extract_strided_slice %176 {offsets = [64, 0], sizes = [32, 128], strides = [1, 1]} : vector<96x128xf32> to vector<32x128xf32>
    %191 = arith.addf %190, %15 : vector<32x128xf32>
    %192 = arith.mulf %186, %191 : vector<32x128xf32>
    %193 = arith.addf %189, %192 : vector<32x128xf32>
    %194 = math.tanh %193 : vector<32x128xf32>
    %195 = arith.subf %165, %194 : vector<32x128xf32>
    %196 = arith.mulf %187, %195 : vector<32x128xf32>
    %197 = arith.addf %194, %196 : vector<32x128xf32>
    %198 = arith.mulf %197, %18 : vector<32x128xf32>
    %cst_32 = arith.constant dense<0.000000e+00> : vector<128xf32>
    %199 = vector.multi_reduction <add>, %198, %cst_32 [0] : vector<32x128xf32> to vector<128xf32>
    %200 = vector.shape_cast %199 : vector<128xf32> to vector<1x128xf32>
    %201 = vector.broadcast %8 : vector<1x1xf32> to vector<1x128xf32>
    %202 = arith.addf %200, %201 : vector<1x128xf32>
    %cst_33 = arith.constant 0.000000e+00 : f32
    %203 = vector.broadcast %cst_33 : f32 to vector<1x128xf32>
    %204 = arith.cmpf oge, %202, %203 : vector<1x128xf32>
    %cst_34 = arith.constant 0.00999999977 : f32
    %205 = vector.broadcast %cst_34 : f32 to vector<1x128xf32>
    %206 = arith.mulf %205, %202 : vector<1x128xf32>
    %207 = arith.select %204, %202, %206 : vector<1x128xi1>, vector<1x128xf32>
    %cst_35 = arith.constant dense<0.000000e+00> : vector<96x128xf32>
    %208 = tpu.matmul %78, %197, %cst_35 {dimension_numbers = #tpu.dot_dimension_numbers<[1], [0], [0], [1], [0, 0, 1, 1], [], []>} : vector<96x32xf32>, vector<32x128xf32>, vector<96x128xf32> -> vector<96x128xf32>
    %209 = vector.extract_strided_slice %70 {offsets = [4, 0, 0], sizes = [1, 64, 128], strides = [1, 1, 1]} : vector<8x64x128xf32> to vector<1x64x128xf32>
    %210 = vector.shape_cast %209 : vector<1x64x128xf32> to vector<64x128xf32>
    %211 = vector.extract_strided_slice %208 {offsets = [0, 0], sizes = [64, 128], strides = [1, 1]} : vector<96x128xf32> to vector<64x128xf32>
    %212 = arith.addf %210, %211 : vector<64x128xf32>
    %213 = arith.negf %212 : vector<64x128xf32>
    %214 = math.exp %213 : vector<64x128xf32>
    %cst_36 = arith.constant 1.000000e+00 : f32
    %215 = vector.broadcast %cst_36 : f32 to vector<64x128xf32>
    %216 = arith.addf %215, %214 : vector<64x128xf32>
    %217 = arith.divf %215, %216 : vector<64x128xf32>
    %218 = vector.extract_strided_slice %217 {offsets = [0, 0], sizes = [32, 128], strides = [1, 1]} : vector<64x128xf32> to vector<32x128xf32>
    %219 = vector.extract_strided_slice %217 {offsets = [32, 0], sizes = [32, 128], strides = [1, 1]} : vector<64x128xf32> to vector<32x128xf32>
    %220 = vector.extract_strided_slice %77 {offsets = [4, 0, 0], sizes = [1, 32, 128], strides = [1, 1, 1]} : vector<8x32x128xf32> to vector<1x32x128xf32>
    %221 = vector.shape_cast %220 : vector<1x32x128xf32> to vector<32x128xf32>
    %222 = vector.extract_strided_slice %208 {offsets = [64, 0], sizes = [32, 128], strides = [1, 1]} : vector<96x128xf32> to vector<32x128xf32>
    %223 = arith.addf %222, %15 : vector<32x128xf32>
    %224 = arith.mulf %218, %223 : vector<32x128xf32>
    %225 = arith.addf %221, %224 : vector<32x128xf32>
    %226 = math.tanh %225 : vector<32x128xf32>
    %227 = arith.subf %197, %226 : vector<32x128xf32>
    %228 = arith.mulf %219, %227 : vector<32x128xf32>
    %229 = arith.addf %226, %228 : vector<32x128xf32>
    %230 = arith.mulf %229, %18 : vector<32x128xf32>
    %cst_37 = arith.constant dense<0.000000e+00> : vector<128xf32>
    %231 = vector.multi_reduction <add>, %230, %cst_37 [0] : vector<32x128xf32> to vector<128xf32>
    %232 = vector.shape_cast %231 : vector<128xf32> to vector<1x128xf32>
    %233 = vector.broadcast %8 : vector<1x1xf32> to vector<1x128xf32>
    %234 = arith.addf %232, %233 : vector<1x128xf32>
    %cst_38 = arith.constant 0.000000e+00 : f32
    %235 = vector.broadcast %cst_38 : f32 to vector<1x128xf32>
    %236 = arith.cmpf oge, %234, %235 : vector<1x128xf32>
    %cst_39 = arith.constant 0.00999999977 : f32
    %237 = vector.broadcast %cst_39 : f32 to vector<1x128xf32>
    %238 = arith.mulf %237, %234 : vector<1x128xf32>
    %239 = arith.select %236, %234, %238 : vector<1x128xi1>, vector<1x128xf32>
    %cst_40 = arith.constant dense<0.000000e+00> : vector<96x128xf32>
    %240 = tpu.matmul %78, %229, %cst_40 {dimension_numbers = #tpu.dot_dimension_numbers<[1], [0], [0], [1], [0, 0, 1, 1], [], []>} : vector<96x32xf32>, vector<32x128xf32>, vector<96x128xf32> -> vector<96x128xf32>
    %241 = vector.extract_strided_slice %70 {offsets = [5, 0, 0], sizes = [1, 64, 128], strides = [1, 1, 1]} : vector<8x64x128xf32> to vector<1x64x128xf32>
    %242 = vector.shape_cast %241 : vector<1x64x128xf32> to vector<64x128xf32>
    %243 = vector.extract_strided_slice %240 {offsets = [0, 0], sizes = [64, 128], strides = [1, 1]} : vector<96x128xf32> to vector<64x128xf32>
    %244 = arith.addf %242, %243 : vector<64x128xf32>
    %245 = arith.negf %244 : vector<64x128xf32>
    %246 = math.exp %245 : vector<64x128xf32>
    %cst_41 = arith.constant 1.000000e+00 : f32
    %247 = vector.broadcast %cst_41 : f32 to vector<64x128xf32>
    %248 = arith.addf %247, %246 : vector<64x128xf32>
    %249 = arith.divf %247, %248 : vector<64x128xf32>
    %250 = vector.extract_strided_slice %249 {offsets = [0, 0], sizes = [32, 128], strides = [1, 1]} : vector<64x128xf32> to vector<32x128xf32>
    %251 = vector.extract_strided_slice %249 {offsets = [32, 0], sizes = [32, 128], strides = [1, 1]} : vector<64x128xf32> to vector<32x128xf32>
    %252 = vector.extract_strided_slice %77 {offsets = [5, 0, 0], sizes = [1, 32, 128], strides = [1, 1, 1]} : vector<8x32x128xf32> to vector<1x32x128xf32>
    %253 = vector.shape_cast %252 : vector<1x32x128xf32> to vector<32x128xf32>
    %254 = vector.extract_strided_slice %240 {offsets = [64, 0], sizes = [32, 128], strides = [1, 1]} : vector<96x128xf32> to vector<32x128xf32>
    %255 = arith.addf %254, %15 : vector<32x128xf32>
    %256 = arith.mulf %250, %255 : vector<32x128xf32>
    %257 = arith.addf %253, %256 : vector<32x128xf32>
    %258 = math.tanh %257 : vector<32x128xf32>
    %259 = arith.subf %229, %258 : vector<32x128xf32>
    %260 = arith.mulf %251, %259 : vector<32x128xf32>
    %261 = arith.addf %258, %260 : vector<32x128xf32>
    %262 = arith.mulf %261, %18 : vector<32x128xf32>
    %cst_42 = arith.constant dense<0.000000e+00> : vector<128xf32>
    %263 = vector.multi_reduction <add>, %262, %cst_42 [0] : vector<32x128xf32> to vector<128xf32>
    %264 = vector.shape_cast %263 : vector<128xf32> to vector<1x128xf32>
    %265 = vector.broadcast %8 : vector<1x1xf32> to vector<1x128xf32>
    %266 = arith.addf %264, %265 : vector<1x128xf32>
    %cst_43 = arith.constant 0.000000e+00 : f32
    %267 = vector.broadcast %cst_43 : f32 to vector<1x128xf32>
    %268 = arith.cmpf oge, %266, %267 : vector<1x128xf32>
    %cst_44 = arith.constant 0.00999999977 : f32
    %269 = vector.broadcast %cst_44 : f32 to vector<1x128xf32>
    %270 = arith.mulf %269, %266 : vector<1x128xf32>
    %271 = arith.select %268, %266, %270 : vector<1x128xi1>, vector<1x128xf32>
    %cst_45 = arith.constant dense<0.000000e+00> : vector<96x128xf32>
    %272 = tpu.matmul %78, %261, %cst_45 {dimension_numbers = #tpu.dot_dimension_numbers<[1], [0], [0], [1], [0, 0, 1, 1], [], []>} : vector<96x32xf32>, vector<32x128xf32>, vector<96x128xf32> -> vector<96x128xf32>
    %273 = vector.extract_strided_slice %70 {offsets = [6, 0, 0], sizes = [1, 64, 128], strides = [1, 1, 1]} : vector<8x64x128xf32> to vector<1x64x128xf32>
    %274 = vector.shape_cast %273 : vector<1x64x128xf32> to vector<64x128xf32>
    %275 = vector.extract_strided_slice %272 {offsets = [0, 0], sizes = [64, 128], strides = [1, 1]} : vector<96x128xf32> to vector<64x128xf32>
    %276 = arith.addf %274, %275 : vector<64x128xf32>
    %277 = arith.negf %276 : vector<64x128xf32>
    %278 = math.exp %277 : vector<64x128xf32>
    %cst_46 = arith.constant 1.000000e+00 : f32
    %279 = vector.broadcast %cst_46 : f32 to vector<64x128xf32>
    %280 = arith.addf %279, %278 : vector<64x128xf32>
    %281 = arith.divf %279, %280 : vector<64x128xf32>
    %282 = vector.extract_strided_slice %281 {offsets = [0, 0], sizes = [32, 128], strides = [1, 1]} : vector<64x128xf32> to vector<32x128xf32>
    %283 = vector.extract_strided_slice %281 {offsets = [32, 0], sizes = [32, 128], strides = [1, 1]} : vector<64x128xf32> to vector<32x128xf32>
    %284 = vector.extract_strided_slice %77 {offsets = [6, 0, 0], sizes = [1, 32, 128], strides = [1, 1, 1]} : vector<8x32x128xf32> to vector<1x32x128xf32>
    %285 = vector.shape_cast %284 : vector<1x32x128xf32> to vector<32x128xf32>
    %286 = vector.extract_strided_slice %272 {offsets = [64, 0], sizes = [32, 128], strides = [1, 1]} : vector<96x128xf32> to vector<32x128xf32>
    %287 = arith.addf %286, %15 : vector<32x128xf32>
    %288 = arith.mulf %282, %287 : vector<32x128xf32>
    %289 = arith.addf %285, %288 : vector<32x128xf32>
    %290 = math.tanh %289 : vector<32x128xf32>
    %291 = arith.subf %261, %290 : vector<32x128xf32>
    %292 = arith.mulf %283, %291 : vector<32x128xf32>
    %293 = arith.addf %290, %292 : vector<32x128xf32>
    %294 = arith.mulf %293, %18 : vector<32x128xf32>
    %cst_47 = arith.constant dense<0.000000e+00> : vector<128xf32>
    %295 = vector.multi_reduction <add>, %294, %cst_47 [0] : vector<32x128xf32> to vector<128xf32>
    %296 = vector.shape_cast %295 : vector<128xf32> to vector<1x128xf32>
    %297 = vector.broadcast %8 : vector<1x1xf32> to vector<1x128xf32>
    %298 = arith.addf %296, %297 : vector<1x128xf32>
    %cst_48 = arith.constant 0.000000e+00 : f32
    %299 = vector.broadcast %cst_48 : f32 to vector<1x128xf32>
    %300 = arith.cmpf oge, %298, %299 : vector<1x128xf32>
    %cst_49 = arith.constant 0.00999999977 : f32
    %301 = vector.broadcast %cst_49 : f32 to vector<1x128xf32>
    %302 = arith.mulf %301, %298 : vector<1x128xf32>
    %303 = arith.select %300, %298, %302 : vector<1x128xi1>, vector<1x128xf32>
    %cst_50 = arith.constant dense<0.000000e+00> : vector<96x128xf32>
    %304 = tpu.matmul %78, %293, %cst_50 {dimension_numbers = #tpu.dot_dimension_numbers<[1], [0], [0], [1], [0, 0, 1, 1], [], []>} : vector<96x32xf32>, vector<32x128xf32>, vector<96x128xf32> -> vector<96x128xf32>
    %305 = vector.extract_strided_slice %70 {offsets = [7, 0, 0], sizes = [1, 64, 128], strides = [1, 1, 1]} : vector<8x64x128xf32> to vector<1x64x128xf32>
    %306 = vector.shape_cast %305 : vector<1x64x128xf32> to vector<64x128xf32>
    %307 = vector.extract_strided_slice %304 {offsets = [0, 0], sizes = [64, 128], strides = [1, 1]} : vector<96x128xf32> to vector<64x128xf32>
    %308 = arith.addf %306, %307 : vector<64x128xf32>
    %309 = arith.negf %308 : vector<64x128xf32>
    %310 = math.exp %309 : vector<64x128xf32>
    %cst_51 = arith.constant 1.000000e+00 : f32
    %311 = vector.broadcast %cst_51 : f32 to vector<64x128xf32>
    %312 = arith.addf %311, %310 : vector<64x128xf32>
    %313 = arith.divf %311, %312 : vector<64x128xf32>
    %314 = vector.extract_strided_slice %313 {offsets = [0, 0], sizes = [32, 128], strides = [1, 1]} : vector<64x128xf32> to vector<32x128xf32>
    %315 = vector.extract_strided_slice %313 {offsets = [32, 0], sizes = [32, 128], strides = [1, 1]} : vector<64x128xf32> to vector<32x128xf32>
    %316 = vector.extract_strided_slice %77 {offsets = [7, 0, 0], sizes = [1, 32, 128], strides = [1, 1, 1]} : vector<8x32x128xf32> to vector<1x32x128xf32>
    %317 = vector.shape_cast %316 : vector<1x32x128xf32> to vector<32x128xf32>
    %318 = vector.extract_strided_slice %304 {offsets = [64, 0], sizes = [32, 128], strides = [1, 1]} : vector<96x128xf32> to vector<32x128xf32>
    %319 = arith.addf %318, %15 : vector<32x128xf32>
    %320 = arith.mulf %314, %319 : vector<32x128xf32>
    %321 = arith.addf %317, %320 : vector<32x128xf32>
    %322 = math.tanh %321 : vector<32x128xf32>
    %323 = arith.subf %293, %322 : vector<32x128xf32>
    %324 = arith.mulf %315, %323 : vector<32x128xf32>
    %325 = arith.addf %322, %324 : vector<32x128xf32>
    %326 = arith.mulf %325, %18 : vector<32x128xf32>
    %cst_52 = arith.constant dense<0.000000e+00> : vector<128xf32>
    %327 = vector.multi_reduction <add>, %326, %cst_52 [0] : vector<32x128xf32> to vector<128xf32>
    %328 = vector.shape_cast %327 : vector<128xf32> to vector<1x128xf32>
    %329 = vector.broadcast %8 : vector<1x1xf32> to vector<1x128xf32>
    %330 = arith.addf %328, %329 : vector<1x128xf32>
    %cst_53 = arith.constant 0.000000e+00 : f32
    %331 = vector.broadcast %cst_53 : f32 to vector<1x128xf32>
    %332 = arith.cmpf oge, %330, %331 : vector<1x128xf32>
    %cst_54 = arith.constant 0.00999999977 : f32
    %333 = vector.broadcast %cst_54 : f32 to vector<1x128xf32>
    %334 = arith.mulf %333, %330 : vector<1x128xf32>
    %335 = arith.select %332, %330, %334 : vector<1x128xi1>, vector<1x128xf32>
    %336 = tpu.concatenate %111, %143, %175, %207, %239, %271, %303, %335 in 0 : vector<1x128xf32>, vector<1x128xf32>, vector<1x128xf32>, vector<1x128xf32>, vector<1x128xf32>, vector<1x128xf32>, vector<1x128xf32>, vector<1x128xf32> -> vector<8x128xf32>
    %c0_55 = arith.constant 0 : index
    %c0_56 = arith.constant 0 : index
    %337 = vector.load %arg5[%c0_55, %c0_56] : memref<40x128xf32, #tpu.memory_space<vmem>>, vector<8x128xf32>
    tpu.vector_store %arg5[%c0_55, %c0_56], %336 {strides = array<i32>} : memref<40x128xf32, #tpu.memory_space<vmem>>, vector<8x128xf32>,
    %cst_57 = arith.constant 0.000000e+00 : f32
    %338 = vector.broadcast %cst_57 : f32 to vector<32x128xf32>
    %c8 = arith.constant 8 : index
    %c0_58 = arith.constant 0 : index
    %339 = vector.load %arg5[%c8, %c0_58] : memref<40x128xf32, #tpu.memory_space<vmem>>, vector<32x128xf32>
    tpu.vector_store %arg5[%c8, %c0_58], %338 {strides = array<i32>} : memref<40x128xf32, #tpu.memory_space<vmem>>, vector<32x128xf32>,
    return
  }
  func.func @transform_0(%arg0: i32) -> (i32, i32) {
    %c0_i32 = arith.constant 0 : i32
    %c0_i32_0 = arith.constant 0 : i32
    return %c0_i32, %arg0 : i32, i32
  }
  func.func @transform_1(%arg0: i32) -> (i32, i32) {
    %c0_i32 = arith.constant 0 : i32
    %c0_i32_0 = arith.constant 0 : i32
    return %c0_i32, %arg0 : i32, i32
  }
  func.func @transform_2(%arg0: i32) -> (i32, i32) {
    %c0_i32 = arith.constant 0 : i32
    %c0_i32_0 = arith.constant 0 : i32
    %c0_i32_1 = arith.constant 0 : i32
    return %c0_i32, %c0_i32_0 : i32, i32
  }
  func.func @transform_3(%arg0: i32) -> (i32, i32) {
    %c0_i32 = arith.constant 0 : i32
    %c0_i32_0 = arith.constant 0 : i32
    %c0_i32_1 = arith.constant 0 : i32
    return %c0_i32, %c0_i32_0 : i32, i32
  }
  func.func @transform_4(%arg0: i32) -> (i32, i32) {
    %c0_i32 = arith.constant 0 : i32
    %c0_i32_0 = arith.constant 0 : i32
    return %c0_i32, %arg0 : i32, i32
  }
}

</mosaic_0001>

<llo_original>
// kernel: tpu_custom_call.1
$region0: #{tpu_custom_call.1}
  #allocation0 [shape = 'u32[]', space=smem, size = 0x4, offset = 0x4, fixed_abs, tag = 'smem constant byte address 0x4 - core index']
  #allocation1 [shape = 'u32[72,128]{1,0:T(1,128)}', space=vmem, size = 0x9000, scoped, tag = 'internal scratch']
  %s0 = inlined_call_operand.vmem [shape: f32[8,128], index: 0, kind: input, shape index: {}]
  %s1 = inlined_call_operand.vmem [shape: f32[8,128], index: 1, kind: input, shape index: {}]
  %s2 = inlined_call_operand.vmem [shape: f32[96,8], index: 2, kind: input, shape index: {}]
  %s3 = inlined_call_operand.vmem [shape: f32[96,32], index: 3, kind: input, shape index: {}]
  %s4 = inlined_call_operand.hbm [shape: f32[40,128], index: 4, kind: output, shape index: {}]
  %s5 = sld [smem:[#allocation0]]
  $region26: #{tpu_custom_call.1} parent=0
    _
  %s7 = ssub.s32 1, %s5
  %s8 = scalar_select 0, %s7, %s5
  $region1: #{tpu_custom_call.1} parent=0
    #allocation2 [shape = 'u8[20480]{0}', space=vmem, size = 0x5000, scoped, tag = 'output window, operand 0, single buffered']
    #allocation3 [shape = 's32[1]{0}', space=sflag, size = 0x4, scoped, tag = 'scoped memory for tpu_custom_call.1']
    %9 = vsyncpa [#allocation3], 0
    // Predicated region
    $region2: #{tpu_custom_call.1} parent=1 // pred_check
      _
    $region3: #{tpu_custom_call.1} parent=1 // pred_check_branch
      %11 = sbr.rel (0) target = $region5
    $region4: #{tpu_custom_call.1} parent=1 // pred_region
      _
    $region5: #{tpu_custom_call.1} parent=1 // pred_fallthru
      _
    // Predicated region
    $region6: #{tpu_custom_call.1} parent=1 // pred_check
      _
    $region7: #{tpu_custom_call.1} parent=1 // pred_check_branch
      %13 = sbr.rel (0) target = $region9
    $region8: #{tpu_custom_call.1} parent=1 // pred_region
      _
    $region9: #{tpu_custom_call.1} parent=1 // pred_fallthru
      _
    // Predicated region
    $region10: #{tpu_custom_call.1} parent=1 // pred_check
      _
    $region11: #{tpu_custom_call.1} parent=1 // pred_check_branch
      %15 = sbr.rel (0) target = $region13
    $region12: #{tpu_custom_call.1} parent=1 // pred_region
      _
    $region13: #{tpu_custom_call.1} parent=1 // pred_fallthru
      _
    // Predicated region
    $region14: #{tpu_custom_call.1} parent=1 // pred_check
      _
    $region15: #{tpu_custom_call.1} parent=1 // pred_check_branch
      %17 = sbr.rel (0) target = $region17
    $region16: #{tpu_custom_call.1} parent=1 // pred_region
      _
    $region17: #{tpu_custom_call.1} parent=1 // pred_fallthru
      _
    %v18 = vld [vmem:[%s2] sm:$0xff]
    %v19 = vld [vmem:[%s2 + $0x8] sm:$0xff]
    %v20 = vld [vmem:[%s2 + $0x10] sm:$0xff]
    %v21 = vld [vmem:[%s2 + $0x18] sm:$0xff]
    %v22 = vld [vmem:[%s2 + $0x20] sm:$0xff]
    %v23 = vld [vmem:[%s2 + $0x28] sm:$0xff]
    %v24 = vld [vmem:[%s2 + $0x30] sm:$0xff]
    %v25 = vld [vmem:[%s2 + $0x38] sm:$0xff]
    %v26 = vld [vmem:[%s2 + $0x40] sm:$0xff]
    %v27 = vld [vmem:[%s2 + $0x48] sm:$0xff]
    %v28 = vld [vmem:[%s2 + $0x50] sm:$0xff]
    %v29 = vld [vmem:[%s2 + $0x58] sm:$0xff]
    %31 = vset.pattern.permute.xlu0 7
    %32 = vperm.xlu0 %31, %v18
    %v33 = vpop.permute.xlu0 %32
    %36 = vset.pattern.permute.xlu0 7
    %37 = vperm.xlu0 %36, %v19
    %v38 = vpop.permute.xlu0 %37
    %41 = vset.pattern.permute.xlu0 7
    %42 = vperm.xlu0 %41, %v20
    %v43 = vpop.permute.xlu0 %42
    %46 = vset.pattern.permute.xlu0 7
    %47 = vperm.xlu0 %46, %v21
    %v48 = vpop.permute.xlu0 %47
    %51 = vset.pattern.permute.xlu0 7
    %52 = vperm.xlu0 %51, %v22
    %v53 = vpop.permute.xlu0 %52
    %56 = vset.pattern.permute.xlu0 7
    %57 = vperm.xlu0 %56, %v23
    %v58 = vpop.permute.xlu0 %57
    %61 = vset.pattern.permute.xlu0 7
    %62 = vperm.xlu0 %61, %v24
    %v63 = vpop.permute.xlu0 %62
    %66 = vset.pattern.permute.xlu0 7
    %67 = vperm.xlu0 %66, %v25
    %v68 = vpop.permute.xlu0 %67
    %v70 = vld [vmem:[%s0] sm:$0xff]
    %v72 = vrot.slane %v70, 1
    %v73 = vrot.slane %v70, 2
    %v74 = vrot.slane %v70, 3
    %v75 = vrot.slane %v70, 4
    %v76 = vrot.slane %v70, 5
    %v77 = vrot.slane %v70, 6
    %v78 = vrot.slane %v70, 7
    %v79 = vld [vmem:[%s1] sm:$0xff]
    %v81 = vrot.slane %v79, 1
    %v82 = vrot.slane %v79, 2
    %v83 = vrot.slane %v79, 3
    %v84 = vrot.slane %v79, 4
    %v85 = vrot.slane %v79, 5
    %v86 = vrot.slane %v79, 6
    %v87 = vrot.slane %v79, 7
    %v88 = vperm.slane %v70, 0
    %v89 = vperm.slane %v72, 0
    %v90 = vperm.slane %v73, 0
    %v91 = vperm.slane %v74, 0
    %v92 = vperm.slane %v75, 0
    %v93 = vperm.slane %v76, 0
    %v94 = vperm.slane %v77, 0
    %v95 = vperm.slane %v78, 0
    %104 = vset.pattern.permute.xlu0 0
    %105 = vperm.xlu0 %104, %v18
    %v106 = vpop.permute.xlu0 %105
    %108 = vset.pattern.permute.xlu0 0
    %109 = vperm.xlu0 %108, %v19
    %v110 = vpop.permute.xlu0 %109
    %112 = vset.pattern.permute.xlu0 0
    %113 = vperm.xlu0 %112, %v20
    %v114 = vpop.permute.xlu0 %113
    %116 = vset.pattern.permute.xlu0 0
    %117 = vperm.xlu0 %116, %v21
    %v118 = vpop.permute.xlu0 %117
    %v120 = vmul.f32 %v88, %v106
    %v121 = vmul.f32 %v88, %v110
    %v122 = vmul.f32 %v88, %v114
    %v123 = vmul.f32 %v88, %v118
    %v124 = vmul.f32 %v89, %v106
    %v125 = vmul.f32 %v89, %v110
    %v126 = vmul.f32 %v89, %v114
    %v127 = vmul.f32 %v89, %v118
    %v128 = vmul.f32 %v90, %v106
    %v129 = vmul.f32 %v90, %v110
    %v130 = vmul.f32 %v90, %v114
    %v131 = vmul.f32 %v90, %v118
    %v132 = vmul.f32 %v91, %v106
    %v133 = vmul.f32 %v91, %v110
    %v134 = vmul.f32 %v91, %v114
    %v135 = vmul.f32 %v91, %v118
    %v136 = vmul.f32 %v92, %v106
    %v137 = vmul.f32 %v92, %v110
    %v138 = vmul.f32 %v92, %v114
    %v139 = vmul.f32 %v92, %v118
    %v140 = vmul.f32 %v93, %v106
    %v141 = vmul.f32 %v93, %v110
    %v142 = vmul.f32 %v93, %v114
    %v143 = vmul.f32 %v93, %v118
    %v144 = vmul.f32 %v94, %v106
    %v145 = vmul.f32 %v94, %v110
    %v146 = vmul.f32 %v94, %v114
    %v147 = vmul.f32 %v94, %v118
    %v148 = vmul.f32 %v95, %v106
    %v149 = vmul.f32 %v95, %v110
    %v150 = vmul.f32 %v95, %v114
    %v151 = vmul.f32 %v95, %v118
    %v152 = vperm.slane %v79, 0
    %v153 = vperm.slane %v81, 0
    %v154 = vperm.slane %v82, 0
    %v155 = vperm.slane %v83, 0
    %v156 = vperm.slane %v84, 0
    %v157 = vperm.slane %v85, 0
    %v158 = vperm.slane %v86, 0
    %v159 = vperm.slane %v87, 0
    %168 = vset.pattern.permute.xlu0 1
    %169 = vperm.xlu0 %168, %v18
    %v170 = vpop.permute.xlu0 %169
    %172 = vset.pattern.permute.xlu0 1
    %173 = vperm.xlu0 %172, %v19
    %v174 = vpop.permute.xlu0 %173
    %176 = vset.pattern.permute.xlu0 1
    %177 = vperm.xlu0 %176, %v20
    %v178 = vpop.permute.xlu0 %177
    %180 = vset.pattern.permute.xlu0 1
    %181 = vperm.xlu0 %180, %v21
    %v182 = vpop.permute.xlu0 %181
    %v184 = vmul.f32 %v152, %v170
    %v185 = vmul.f32 %v152, %v174
    %v186 = vmul.f32 %v152, %v178
    %v187 = vmul.f32 %v152, %v182
    %v188 = vmul.f32 %v153, %v170
    %v189 = vmul.f32 %v153, %v174
    %v190 = vmul.f32 %v153, %v178
    %v191 = vmul.f32 %v153, %v182
    %v192 = vmul.f32 %v154, %v170
    %v193 = vmul.f32 %v154, %v174
    %v194 = vmul.f32 %v154, %v178
    %v195 = vmul.f32 %v154, %v182
    %v196 = vmul.f32 %v155, %v170
    %v197 = vmul.f32 %v155, %v174
    %v198 = vmul.f32 %v155, %v178
    %v199 = vmul.f32 %v155, %v182
    %v200 = vmul.f32 %v156, %v170
    %v201 = vmul.f32 %v156, %v174
    %v202 = vmul.f32 %v156, %v178
    %v203 = vmul.f32 %v156, %v182
    %v204 = vmul.f32 %v157, %v170
    %v205 = vmul.f32 %v157, %v174
    %v206 = vmul.f32 %v157, %v178
    %v207 = vmul.f32 %v157, %v182
    %v208 = vmul.f32 %v158, %v170
    %v209 = vmul.f32 %v158, %v174
    %v210 = vmul.f32 %v158, %v178
    %v211 = vmul.f32 %v158, %v182
    %v212 = vmul.f32 %v159, %v170
    %v213 = vmul.f32 %v159, %v174
    %v214 = vmul.f32 %v159, %v178
    %v215 = vmul.f32 %v159, %v182
    %v216 = vadd.f32 %v120, %v184
    %v217 = vadd.f32 %v121, %v185
    %v218 = vadd.f32 %v122, %v186
    %v219 = vadd.f32 %v123, %v187
    %v220 = vadd.f32 %v124, %v188
    %v221 = vadd.f32 %v125, %v189
    %v222 = vadd.f32 %v126, %v190
    %v223 = vadd.f32 %v127, %v191
    %v224 = vadd.f32 %v128, %v192
    %v225 = vadd.f32 %v129, %v193
    %v226 = vadd.f32 %v130, %v194
    %v227 = vadd.f32 %v131, %v195
    %v228 = vadd.f32 %v132, %v196
    %v229 = vadd.f32 %v133, %v197
    %v230 = vadd.f32 %v134, %v198
    %v231 = vadd.f32 %v135, %v199
    %v232 = vadd.f32 %v136, %v200
    %v233 = vadd.f32 %v137, %v201
    %v234 = vadd.f32 %v138, %v202
    %v235 = vadd.f32 %v139, %v203
    %v236 = vadd.f32 %v140, %v204
    %v237 = vadd.f32 %v141, %v205
    %v238 = vadd.f32 %v142, %v206
    %v239 = vadd.f32 %v143, %v207
    %v240 = vadd.f32 %v144, %v208
    %v241 = vadd.f32 %v145, %v209
    %v242 = vadd.f32 %v146, %v210
    %v243 = vadd.f32 %v147, %v211
    %v244 = vadd.f32 %v148, %v212
    %v245 = vadd.f32 %v149, %v213
    %v246 = vadd.f32 %v150, %v214
    %v247 = vadd.f32 %v151, %v215
    %248 = vset.pattern.permute.xlu0 2
    %249 = vperm.xlu0 %248, %v18
    %v250 = vpop.permute.xlu0 %249
    %252 = vset.pattern.permute.xlu0 2
    %253 = vperm.xlu0 %252, %v19
    %v254 = vpop.permute.xlu0 %253
    %256 = vset.pattern.permute.xlu0 2
    %257 = vperm.xlu0 %256, %v20
    %v258 = vpop.permute.xlu0 %257
    %260 = vset.pattern.permute.xlu0 2
    %261 = vperm.xlu0 %260, %v21
    %v262 = vpop.permute.xlu0 %261
    %v264 = vadd.f32 %v216, %v250
    %v265 = vadd.f32 %v217, %v254
    %v266 = vadd.f32 %v218, %v258
    %v267 = vadd.f32 %v219, %v262
    %v268 = vadd.f32 %v220, %v250
    %v269 = vadd.f32 %v221, %v254
    %v270 = vadd.f32 %v222, %v258
    %v271 = vadd.f32 %v223, %v262
    %v272 = vadd.f32 %v224, %v250
    %v273 = vadd.f32 %v225, %v254
    %v274 = vadd.f32 %v226, %v258
    %v275 = vadd.f32 %v227, %v262
    %v276 = vadd.f32 %v228, %v250
    %v277 = vadd.f32 %v229, %v254
    %v278 = vadd.f32 %v230, %v258
    %v279 = vadd.f32 %v231, %v262
    %v280 = vadd.f32 %v232, %v250
    %v281 = vadd.f32 %v233, %v254
    %v282 = vadd.f32 %v234, %v258
    %v283 = vadd.f32 %v235, %v262
    %v284 = vadd.f32 %v236, %v250
    %v285 = vadd.f32 %v237, %v254
    %v286 = vadd.f32 %v238, %v258
    %v287 = vadd.f32 %v239, %v262
    %v288 = vadd.f32 %v240, %v250
    %v289 = vadd.f32 %v241, %v254
    %v290 = vadd.f32 %v242, %v258
    %v291 = vadd.f32 %v243, %v262
    %v292 = vadd.f32 %v244, %v250
    %v293 = vadd.f32 %v245, %v254
    %v294 = vadd.f32 %v246, %v258
    %v295 = vadd.f32 %v247, %v262
    %vm296 = vcmp.ge.f32.partialorder %v264, 0.0
    %vm297 = vcmp.ge.f32.partialorder %v265, 0.0
    %vm298 = vcmp.ge.f32.partialorder %v266, 0.0
    %vm299 = vcmp.ge.f32.partialorder %v267, 0.0
    %vm300 = vcmp.ge.f32.partialorder %v268, 0.0
    %vm301 = vcmp.ge.f32.partialorder %v269, 0.0
    %vm302 = vcmp.ge.f32.partialorder %v270, 0.0
    %vm303 = vcmp.ge.f32.partialorder %v271, 0.0
    %vm304 = vcmp.ge.f32.partialorder %v272, 0.0
    %vm305 = vcmp.ge.f32.partialorder %v273, 0.0
    %vm306 = vcmp.ge.f32.partialorder %v274, 0.0
    %vm307 = vcmp.ge.f32.partialorder %v275, 0.0
    %vm308 = vcmp.ge.f32.partialorder %v276, 0.0
    %vm309 = vcmp.ge.f32.partialorder %v277, 0.0
    %vm310 = vcmp.ge.f32.partialorder %v278, 0.0
    %vm311 = vcmp.ge.f32.partialorder %v279, 0.0
    %vm312 = vcmp.ge.f32.partialorder %v280, 0.0
    %vm313 = vcmp.ge.f32.partialorder %v281, 0.0
    %vm314 = vcmp.ge.f32.partialorder %v282, 0.0
    %vm315 = vcmp.ge.f32.partialorder %v283, 0.0
    %vm316 = vcmp.ge.f32.partialorder %v284, 0.0
    %vm317 = vcmp.ge.f32.partialorder %v285, 0.0
    %vm318 = vcmp.ge.f32.partialorder %v286, 0.0
    %vm319 = vcmp.ge.f32.partialorder %v287, 0.0
    %vm320 = vcmp.ge.f32.partialorder %v288, 0.0
    %vm321 = vcmp.ge.f32.partialorder %v289, 0.0
    %vm322 = vcmp.ge.f32.partialorder %v290, 0.0
    %vm323 = vcmp.ge.f32.partialorder %v291, 0.0
    %vm324 = vcmp.ge.f32.partialorder %v292, 0.0
    %vm325 = vcmp.ge.f32.partialorder %v293, 0.0
    %vm326 = vcmp.ge.f32.partialorder %v294, 0.0
    %vm327 = vcmp.ge.f32.partialorder %v295, 0.0
    %v328 = vmul.f32 %v264, 0.01
    %v329 = vmul.f32 %v265, 0.01
    %v330 = vmul.f32 %v266, 0.01
    %v331 = vmul.f32 %v267, 0.01
    %v332 = vmul.f32 %v268, 0.01
    %v333 = vmul.f32 %v269, 0.01
    %v334 = vmul.f32 %v270, 0.01
    %v335 = vmul.f32 %v271, 0.01
    %v336 = vmul.f32 %v272, 0.01
    %v337 = vmul.f32 %v273, 0.01
    %v338 = vmul.f32 %v274, 0.01
    %v339 = vmul.f32 %v275, 0.01
    %v340 = vmul.f32 %v276, 0.01
    %v341 = vmul.f32 %v277, 0.01
    %v342 = vmul.f32 %v278, 0.01
    %v343 = vmul.f32 %v279, 0.01
    %v344 = vmul.f32 %v280, 0.01
    %v345 = vmul.f32 %v281, 0.01
    %v346 = vmul.f32 %v282, 0.01
    %v347 = vmul.f32 %v283, 0.01
    %v348 = vmul.f32 %v284, 0.01
    %v349 = vmul.f32 %v285, 0.01
    %v350 = vmul.f32 %v286, 0.01
    %v351 = vmul.f32 %v287, 0.01
    %v352 = vmul.f32 %v288, 0.01
    %v353 = vmul.f32 %v289, 0.01
    %v354 = vmul.f32 %v290, 0.01
    %v355 = vmul.f32 %v291, 0.01
    %v356 = vmul.f32 %v292, 0.01
    %v357 = vmul.f32 %v293, 0.01
    %v358 = vmul.f32 %v294, 0.01
    %v359 = vmul.f32 %v295, 0.01
    %v360 = vsel %vm296, %v264, %v328
    %v361 = vsel %vm297, %v265, %v329
    %v362 = vsel %vm298, %v266, %v330
    %v363 = vsel %vm299, %v267, %v331
    %v364 = vsel %vm300, %v268, %v332
    %v365 = vsel %vm301, %v269, %v333
    %v366 = vsel %vm302, %v270, %v334
    %v367 = vsel %vm303, %v271, %v335
    %v368 = vsel %vm304, %v272, %v336
    %v369 = vsel %vm305, %v273, %v337
    %v370 = vsel %vm306, %v274, %v338
    %v371 = vsel %vm307, %v275, %v339
    %v372 = vsel %vm308, %v276, %v340
    %v373 = vsel %vm309, %v277, %v341
    %v374 = vsel %vm310, %v278, %v342
    %v375 = vsel %vm311, %v279, %v343
    %v376 = vsel %vm312, %v280, %v344
    %v377 = vsel %vm313, %v281, %v345
    %v378 = vsel %vm314, %v282, %v346
    %v379 = vsel %vm315, %v283, %v347
    %v380 = vsel %vm316, %v284, %v348
    %v381 = vsel %vm317, %v285, %v349
    %v382 = vsel %vm318, %v286, %v350
    %v383 = vsel %vm319, %v287, %v351
    %v384 = vsel %vm320, %v288, %v352
    %v385 = vsel %vm321, %v289, %v353
    %v386 = vsel %vm322, %v290, %v354
    %v387 = vsel %vm323, %v291, %v355
    %v388 = vsel %vm324, %v292, %v356
    %v389 = vsel %vm325, %v293, %v357
    %v390 = vsel %vm326, %v294, %v358
    %v391 = vsel %vm327, %v295, %v359
    %392 = vset.pattern.permute.xlu0 3
    %393 = vperm.xlu0 %392, %v18
    %v394 = vpop.permute.xlu0 %393
    %396 = vset.pattern.permute.xlu0 3
    %397 = vperm.xlu0 %396, %v19
    %v398 = vpop.permute.xlu0 %397
    %400 = vset.pattern.permute.xlu0 3
    %401 = vperm.xlu0 %400, %v20
    %v402 = vpop.permute.xlu0 %401
    %404 = vset.pattern.permute.xlu0 3
    %405 = vperm.xlu0 %404, %v21
    %v406 = vpop.permute.xlu0 %405
    %v408 = vmul.f32 %v360, %v394
    %v409 = vmul.f32 %v361, %v398
    %v410 = vmul.f32 %v362, %v402
    %v411 = vmul.f32 %v363, %v406
    %v412 = vmul.f32 %v364, %v394
    %v413 = vmul.f32 %v365, %v398
    %v414 = vmul.f32 %v366, %v402
    %v415 = vmul.f32 %v367, %v406
    %v416 = vmul.f32 %v368, %v394
    %v417 = vmul.f32 %v369, %v398
    %v418 = vmul.f32 %v370, %v402
    %v419 = vmul.f32 %v371, %v406
    %v420 = vmul.f32 %v372, %v394
    %v421 = vmul.f32 %v373, %v398
    %v422 = vmul.f32 %v374, %v402
    %v423 = vmul.f32 %v375, %v406
    %v424 = vmul.f32 %v376, %v394
    %v425 = vmul.f32 %v377, %v398
    %v426 = vmul.f32 %v378, %v402
    %v427 = vmul.f32 %v379, %v406
    %v428 = vmul.f32 %v380, %v394
    %v429 = vmul.f32 %v381, %v398
    %v430 = vmul.f32 %v382, %v402
    %v431 = vmul.f32 %v383, %v406
    %v432 = vmul.f32 %v384, %v394
    %v433 = vmul.f32 %v385, %v398
    %v434 = vmul.f32 %v386, %v402
    %v435 = vmul.f32 %v387, %v406
    %v436 = vmul.f32 %v388, %v394
    %v437 = vmul.f32 %v389, %v398
    %v438 = vmul.f32 %v390, %v402
    %v439 = vmul.f32 %v391, %v406
    %v440 = vadd.f32 %v408, %v409
    %v441 = vadd.f32 %v440, %v410
    %v442 = vadd.f32 %v441, %v411
    %v443 = vrot.slane %v442, 4
    %v444 = vadd.f32 %v442, %v443
    %v445 = vrot.slane %v444, 2
    %v446 = vadd.f32 %v444, %v445
    %v447 = vrot.slane %v446, 1
    %v448 = vadd.f32 %v446, %v447
    %v449 = vadd.f32 %v412, %v413
    %v450 = vadd.f32 %v449, %v414
    %v451 = vadd.f32 %v450, %v415
    %v452 = vrot.slane %v451, 4
    %v453 = vadd.f32 %v451, %v452
    %v454 = vrot.slane %v453, 2
    %v455 = vadd.f32 %v453, %v454
    %v456 = vrot.slane %v455, 1
    %v457 = vadd.f32 %v455, %v456
    %v458 = vadd.f32 %v416, %v417
    %v459 = vadd.f32 %v458, %v418
    %v460 = vadd.f32 %v459, %v419
    %v461 = vrot.slane %v460, 4
    %v462 = vadd.f32 %v460, %v461
    %v463 = vrot.slane %v462, 2
    %v464 = vadd.f32 %v462, %v463
    %v465 = vrot.slane %v464, 1
    %v466 = vadd.f32 %v464, %v465
    %v467 = vadd.f32 %v420, %v421
    %v468 = vadd.f32 %v467, %v422
    %v469 = vadd.f32 %v468, %v423
    %v470 = vrot.slane %v469, 4
    %v471 = vadd.f32 %v469, %v470
    %v472 = vrot.slane %v471, 2
    %v473 = vadd.f32 %v471, %v472
    %v474 = vrot.slane %v473, 1
    %v475 = vadd.f32 %v473, %v474
    %v476 = vadd.f32 %v424, %v425
    %v477 = vadd.f32 %v476, %v426
    %v478 = vadd.f32 %v477, %v427
    %v479 = vrot.slane %v478, 4
    %v480 = vadd.f32 %v478, %v479
    %v481 = vrot.slane %v480, 2
    %v482 = vadd.f32 %v480, %v481
    %v483 = vrot.slane %v482, 1
    %v484 = vadd.f32 %v482, %v483
    %v485 = vadd.f32 %v428, %v429
    %v486 = vadd.f32 %v485, %v430
    %v487 = vadd.f32 %v486, %v431
    %v488 = vrot.slane %v487, 4
    %v489 = vadd.f32 %v487, %v488
    %v490 = vrot.slane %v489, 2
    %v491 = vadd.f32 %v489, %v490
    %v492 = vrot.slane %v491, 1
    %v493 = vadd.f32 %v491, %v492
    %v494 = vadd.f32 %v432, %v433
    %v495 = vadd.f32 %v494, %v434
    %v496 = vadd.f32 %v495, %v435
    %v497 = vrot.slane %v496, 4
    %v498 = vadd.f32 %v496, %v497
    %v499 = vrot.slane %v498, 2
    %v500 = vadd.f32 %v498, %v499
    %v501 = vrot.slane %v500, 1
    %v502 = vadd.f32 %v500, %v501
    %v503 = vadd.f32 %v436, %v437
    %v504 = vadd.f32 %v503, %v438
    %v505 = vadd.f32 %v504, %v439
    %v506 = vrot.slane %v505, 4
    %v507 = vadd.f32 %v505, %v506
    %v508 = vrot.slane %v507, 2
    %v509 = vadd.f32 %v507, %v508
    %v510 = vrot.slane %v509, 1
    %v511 = vadd.f32 %v509, %v510
    %s512 = vtos %v22
    %v513 = vstv %s512
    %v515 = vadd.f32 %v448, %v513
    %v516 = vadd.f32 %v457, %v513
    %v517 = vadd.f32 %v466, %v513
    %v518 = vadd.f32 %v475, %v513
    %v519 = vadd.f32 %v484, %v513
    %v520 = vadd.f32 %v493, %v513
    %v521 = vadd.f32 %v502, %v513
    %v522 = vadd.f32 %v511, %v513
    %523 = vset.pattern.permute.xlu0 4
    %524 = vperm.xlu0 %523, %v18
    %v525 = vpop.permute.xlu0 %524
    %527 = vset.pattern.permute.xlu0 4
    %528 = vperm.xlu0 %527, %v19
    %v529 = vpop.permute.xlu0 %528
    %531 = vset.pattern.permute.xlu0 4
    %532 = vperm.xlu0 %531, %v20
    %v533 = vpop.permute.xlu0 %532
    %535 = vset.pattern.permute.xlu0 4
    %536 = vperm.xlu0 %535, %v21
    %v537 = vpop.permute.xlu0 %536
    %v539 = vmul.f32 %v360, %v525
    %v540 = vmul.f32 %v361, %v529
    %v541 = vmul.f32 %v362, %v533
    %v542 = vmul.f32 %v363, %v537
    %v543 = vmul.f32 %v364, %v525
    %v544 = vmul.f32 %v365, %v529
    %v545 = vmul.f32 %v366, %v533
    %v546 = vmul.f32 %v367, %v537
    %v547 = vmul.f32 %v368, %v525
    %v548 = vmul.f32 %v369, %v529
    %v549 = vmul.f32 %v370, %v533
    %v550 = vmul.f32 %v371, %v537
    %v551 = vmul.f32 %v372, %v525
    %v552 = vmul.f32 %v373, %v529
    %v553 = vmul.f32 %v374, %v533
    %v554 = vmul.f32 %v375, %v537
    %v555 = vmul.f32 %v376, %v525
    %v556 = vmul.f32 %v377, %v529
    %v557 = vmul.f32 %v378, %v533
    %v558 = vmul.f32 %v379, %v537
    %v559 = vmul.f32 %v380, %v525
    %v560 = vmul.f32 %v381, %v529
    %v561 = vmul.f32 %v382, %v533
    %v562 = vmul.f32 %v383, %v537
    %v563 = vmul.f32 %v384, %v525
    %v564 = vmul.f32 %v385, %v529
    %v565 = vmul.f32 %v386, %v533
    %v566 = vmul.f32 %v387, %v537
    %v567 = vmul.f32 %v388, %v525
    %v568 = vmul.f32 %v389, %v529
    %v569 = vmul.f32 %v390, %v533
    %v570 = vmul.f32 %v391, %v537
    %v571 = vadd.f32 %v539, %v540
    %v572 = vadd.f32 %v571, %v541
    %v573 = vadd.f32 %v572, %v542
    %v574 = vrot.slane %v573, 4
    %v575 = vadd.f32 %v573, %v574
    %v576 = vrot.slane %v575, 2
    %v577 = vadd.f32 %v575, %v576
    %v578 = vrot.slane %v577, 1
    %v579 = vadd.f32 %v577, %v578
    %v580 = vadd.f32 %v543, %v544
    %v581 = vadd.f32 %v580, %v545
    %v582 = vadd.f32 %v581, %v546
    %v583 = vrot.slane %v582, 4
    %v584 = vadd.f32 %v582, %v583
    %v585 = vrot.slane %v584, 2
    %v586 = vadd.f32 %v584, %v585
    %v587 = vrot.slane %v586, 1
    %v588 = vadd.f32 %v586, %v587
    %v589 = vadd.f32 %v547, %v548
    %v590 = vadd.f32 %v589, %v549
    %v591 = vadd.f32 %v590, %v550
    %v592 = vrot.slane %v591, 4
    %v593 = vadd.f32 %v591, %v592
    %v594 = vrot.slane %v593, 2
    %v595 = vadd.f32 %v593, %v594
    %v596 = vrot.slane %v595, 1
    %v597 = vadd.f32 %v595, %v596
    %v598 = vadd.f32 %v551, %v552
    %v599 = vadd.f32 %v598, %v553
    %v600 = vadd.f32 %v599, %v554
    %v601 = vrot.slane %v600, 4
    %v602 = vadd.f32 %v600, %v601
    %v603 = vrot.slane %v602, 2
    %v604 = vadd.f32 %v602, %v603
    %v605 = vrot.slane %v604, 1
    %v606 = vadd.f32 %v604, %v605
    %v607 = vadd.f32 %v555, %v556
    %v608 = vadd.f32 %v607, %v557
    %v609 = vadd.f32 %v608, %v558
    %v610 = vrot.slane %v609, 4
    %v611 = vadd.f32 %v609, %v610
    %v612 = vrot.slane %v611, 2
    %v613 = vadd.f32 %v611, %v612
    %v614 = vrot.slane %v613, 1
    %v615 = vadd.f32 %v613, %v614
    %v616 = vadd.f32 %v559, %v560
    %v617 = vadd.f32 %v616, %v561
    %v618 = vadd.f32 %v617, %v562
    %v619 = vrot.slane %v618, 4
    %v620 = vadd.f32 %v618, %v619
    %v621 = vrot.slane %v620, 2
    %v622 = vadd.f32 %v620, %v621
    %v623 = vrot.slane %v622, 1
    %v624 = vadd.f32 %v622, %v623
    %v625 = vadd.f32 %v563, %v564
    %v626 = vadd.f32 %v625, %v565
    %v627 = vadd.f32 %v626, %v566
    %v628 = vrot.slane %v627, 4
    %v629 = vadd.f32 %v627, %v628
    %v630 = vrot.slane %v629, 2
    %v631 = vadd.f32 %v629, %v630
    %v632 = vrot.slane %v631, 1
    %v633 = vadd.f32 %v631, %v632
    %v634 = vadd.f32 %v567, %v568
    %v635 = vadd.f32 %v634, %v569
    %v636 = vadd.f32 %v635, %v570
    %v637 = vrot.slane %v636, 4
    %v638 = vadd.f32 %v636, %v637
    %v639 = vrot.slane %v638, 2
    %v640 = vadd.f32 %v638, %v639
    %v641 = vrot.slane %v640, 1
    %v642 = vadd.f32 %v640, %v641
    %v643 = vrot.slane %v22, 1
    %s644 = vtos %v643
    %v645 = vstv %s644
    %v647 = vadd.f32 %v579, %v645
    %v648 = vadd.f32 %v588, %v645
    %v649 = vadd.f32 %v597, %v645
    %v650 = vadd.f32 %v606, %v645
    %v651 = vadd.f32 %v615, %v645
    %v652 = vadd.f32 %v624, %v645
    %v653 = vadd.f32 %v633, %v645
    %v654 = vadd.f32 %v642, %v645
    %vm655 = vcmp.ge.f32.partialorder %v515, 0.0
    %vm656 = vcmp.ge.f32.partialorder %v516, 0.0
    %vm657 = vcmp.ge.f32.partialorder %v517, 0.0
    %vm658 = vcmp.ge.f32.partialorder %v518, 0.0
    %vm659 = vcmp.ge.f32.partialorder %v519, 0.0
    %vm660 = vcmp.ge.f32.partialorder %v520, 0.0
    %vm661 = vcmp.ge.f32.partialorder %v521, 0.0
    %vm662 = vcmp.ge.f32.partialorder %v522, 0.0
    %v663 = vmul.f32 %v515, 0.01
    %v664 = vmul.f32 %v516, 0.01
    %v665 = vmul.f32 %v517, 0.01
    %v666 = vmul.f32 %v518, 0.01
    %v667 = vmul.f32 %v519, 0.01
    %v668 = vmul.f32 %v520, 0.01
    %v669 = vmul.f32 %v521, 0.01
    %v670 = vmul.f32 %v522, 0.01
    %v671 = vsel %vm655, %v515, %v663
    %v672 = vsel %vm656, %v516, %v664
    %v673 = vsel %vm657, %v517, %v665
    %v674 = vsel %vm658, %v518, %v666
    %v675 = vsel %vm659, %v519, %v667
    %v676 = vsel %vm660, %v520, %v668
    %v677 = vsel %vm661, %v521, %v669
    %v678 = vsel %vm662, %v522, %v670
    %vm679 = vcmp.ge.f32.partialorder %v647, 0.0
    %vm680 = vcmp.ge.f32.partialorder %v648, 0.0
    %vm681 = vcmp.ge.f32.partialorder %v649, 0.0
    %vm682 = vcmp.ge.f32.partialorder %v650, 0.0
    %vm683 = vcmp.ge.f32.partialorder %v651, 0.0
    %vm684 = vcmp.ge.f32.partialorder %v652, 0.0
    %vm685 = vcmp.ge.f32.partialorder %v653, 0.0
    %vm686 = vcmp.ge.f32.partialorder %v654, 0.0
    %v687 = vmul.f32 %v647, 0.01
    %v688 = vmul.f32 %v648, 0.01
    %v689 = vmul.f32 %v649, 0.01
    %v690 = vmul.f32 %v650, 0.01
    %v691 = vmul.f32 %v651, 0.01
    %v692 = vmul.f32 %v652, 0.01
    %v693 = vmul.f32 %v653, 0.01
    %v694 = vmul.f32 %v654, 0.01
    %v695 = vsel %vm679, %v647, %v687
    %v696 = vsel %vm680, %v648, %v688
    %v697 = vsel %vm681, %v649, %v689
    %v698 = vsel %vm682, %v650, %v690
    %v699 = vsel %vm683, %v651, %v691
    %v700 = vsel %vm684, %v652, %v692
    %v701 = vsel %vm685, %v653, %v693
    %v702 = vsel %vm686, %v654, %v694
    %v703 = vmul.f32 %v671, %v695
    %v704 = vmul.f32 %v672, %v696
    %v705 = vmul.f32 %v673, %v697
    %v706 = vmul.f32 %v674, %v698
    %v707 = vmul.f32 %v675, %v699
    %v708 = vmul.f32 %v676, %v700
    %v709 = vmul.f32 %v677, %v701
    %v710 = vmul.f32 %v678, %v702
    %711 = vset.pattern.permute.xlu0 5
    %712 = vperm.xlu0 %711, %v18
    %v713 = vpop.permute.xlu0 %712
    %715 = vset.pattern.permute.xlu0 5
    %716 = vperm.xlu0 %715, %v19
    %v717 = vpop.permute.xlu0 %716
    %719 = vset.pattern.permute.xlu0 5
    %720 = vperm.xlu0 %719, %v20
    %v721 = vpop.permute.xlu0 %720
    %723 = vset.pattern.permute.xlu0 5
    %724 = vperm.xlu0 %723, %v21
    %v725 = vpop.permute.xlu0 %724
    %727 = vset.pattern.permute.xlu0 5
    %728 = vperm.xlu0 %727, %v22
    %v729 = vpop.permute.xlu0 %728
    %731 = vset.pattern.permute.xlu0 5
    %732 = vperm.xlu0 %731, %v23
    %v733 = vpop.permute.xlu0 %732
    %735 = vset.pattern.permute.xlu0 5
    %736 = vperm.xlu0 %735, %v24
    %v737 = vpop.permute.xlu0 %736
    %739 = vset.pattern.permute.xlu0 5
    %740 = vperm.xlu0 %739, %v25
    %v741 = vpop.permute.xlu0 %740
    %v743 = vmul.f32 %v703, %v713
    %v744 = vmul.f32 %v703, %v717
    %v745 = vmul.f32 %v703, %v721
    %v746 = vmul.f32 %v703, %v725
    %v747 = vmul.f32 %v703, %v729
    %v748 = vmul.f32 %v703, %v733
    %v749 = vmul.f32 %v703, %v737
    %v750 = vmul.f32 %v703, %v741
    %v751 = vmul.f32 %v704, %v713
    %v752 = vmul.f32 %v704, %v717
    %v753 = vmul.f32 %v704, %v721
    %v754 = vmul.f32 %v704, %v725
    %v755 = vmul.f32 %v704, %v729
    %v756 = vmul.f32 %v704, %v733
    %v757 = vmul.f32 %v704, %v737
    %v758 = vmul.f32 %v704, %v741
    %v759 = vmul.f32 %v705, %v713
    %v760 = vmul.f32 %v705, %v717
    %v761 = vmul.f32 %v705, %v721
    %v762 = vmul.f32 %v705, %v725
    %v763 = vmul.f32 %v705, %v729
    %v764 = vmul.f32 %v705, %v733
    %v765 = vmul.f32 %v705, %v737
    %v766 = vmul.f32 %v705, %v741
    %v767 = vmul.f32 %v706, %v713
    %v768 = vmul.f32 %v706, %v717
    %v769 = vmul.f32 %v706, %v721
    %v770 = vmul.f32 %v706, %v725
    %v771 = vmul.f32 %v706, %v729
    %v772 = vmul.f32 %v706, %v733
    %v773 = vmul.f32 %v706, %v737
    %v774 = vmul.f32 %v706, %v741
    %v775 = vmul.f32 %v707, %v713
    %v776 = vmul.f32 %v707, %v717
    %v777 = vmul.f32 %v707, %v721
    %v778 = vmul.f32 %v707, %v725
    %v779 = vmul.f32 %v707, %v729
    %v780 = vmul.f32 %v707, %v733
    %v781 = vmul.f32 %v707, %v737
    %v782 = vmul.f32 %v707, %v741
    %v783 = vmul.f32 %v708, %v713
    %v784 = vmul.f32 %v708, %v717
    %v785 = vmul.f32 %v708, %v721
    %v786 = vmul.f32 %v708, %v725
    %v787 = vmul.f32 %v708, %v729
    %v788 = vmul.f32 %v708, %v733
    %v789 = vmul.f32 %v708, %v737
    %v790 = vmul.f32 %v708, %v741
    %v791 = vmul.f32 %v709, %v713
    %v792 = vmul.f32 %v709, %v717
    %v793 = vmul.f32 %v709, %v721
    %v794 = vmul.f32 %v709, %v725
    %v795 = vmul.f32 %v709, %v729
    %v796 = vmul.f32 %v709, %v733
    %v797 = vmul.f32 %v709, %v737
    %v798 = vmul.f32 %v709, %v741
    %v799 = vmul.f32 %v710, %v713
    %v800 = vmul.f32 %v710, %v717
    %v801 = vmul.f32 %v710, %v721
    %v802 = vmul.f32 %v710, %v725
    %v803 = vmul.f32 %v710, %v729
    %v804 = vmul.f32 %v710, %v733
    %v805 = vmul.f32 %v710, %v737
    %v806 = vmul.f32 %v710, %v741
    %807 = vset.pattern.permute.xlu0 6
    %808 = vperm.xlu0 %807, %v18
    %v809 = vpop.permute.xlu0 %808
    %811 = vset.pattern.permute.xlu0 6
    %812 = vperm.xlu0 %811, %v19
    %v813 = vpop.permute.xlu0 %812
    %815 = vset.pattern.permute.xlu0 6
    %816 = vperm.xlu0 %815, %v20
    %v817 = vpop.permute.xlu0 %816
    %819 = vset.pattern.permute.xlu0 6
    %820 = vperm.xlu0 %819, %v21
    %v821 = vpop.permute.xlu0 %820
    %823 = vset.pattern.permute.xlu0 6
    %824 = vperm.xlu0 %823, %v22
    %v825 = vpop.permute.xlu0 %824
    %827 = vset.pattern.permute.xlu0 6
    %828 = vperm.xlu0 %827, %v23
    %v829 = vpop.permute.xlu0 %828
    %831 = vset.pattern.permute.xlu0 6
    %832 = vperm.xlu0 %831, %v24
    %v833 = vpop.permute.xlu0 %832
    %835 = vset.pattern.permute.xlu0 6
    %836 = vperm.xlu0 %835, %v25
    %v837 = vpop.permute.xlu0 %836
    %v839 = vadd.f32 %v743, %v809
    %v840 = vadd.f32 %v744, %v813
    %v841 = vadd.f32 %v745, %v817
    %v842 = vadd.f32 %v746, %v821
    %v843 = vadd.f32 %v747, %v825
    %v844 = vadd.f32 %v748, %v829
    %v845 = vadd.f32 %v749, %v833
    %v846 = vadd.f32 %v750, %v837
    %v847 = vadd.f32 %v751, %v809
    %v848 = vadd.f32 %v752, %v813
    %v849 = vadd.f32 %v753, %v817
    %v850 = vadd.f32 %v754, %v821
    %v851 = vadd.f32 %v755, %v825
    %v852 = vadd.f32 %v756, %v829
    %v853 = vadd.f32 %v757, %v833
    %v854 = vadd.f32 %v758, %v837
    %v855 = vadd.f32 %v759, %v809
    %v856 = vadd.f32 %v760, %v813
    %v857 = vadd.f32 %v761, %v817
    %v858 = vadd.f32 %v762, %v821
    %v859 = vadd.f32 %v763, %v825
    %v860 = vadd.f32 %v764, %v829
    %v861 = vadd.f32 %v765, %v833
    %v862 = vadd.f32 %v766, %v837
    %v863 = vadd.f32 %v767, %v809
    %v864 = vadd.f32 %v768, %v813
    %v865 = vadd.f32 %v769, %v817
    %v866 = vadd.f32 %v770, %v821
    %v867 = vadd.f32 %v771, %v825
    %v868 = vadd.f32 %v772, %v829
    %v869 = vadd.f32 %v773, %v833
    %v870 = vadd.f32 %v774, %v837
    %v871 = vadd.f32 %v775, %v809
    %v872 = vadd.f32 %v776, %v813
    %v873 = vadd.f32 %v777, %v817
    %v874 = vadd.f32 %v778, %v821
    %v875 = vadd.f32 %v779, %v825
    %v876 = vadd.f32 %v780, %v829
    %v877 = vadd.f32 %v781, %v833
    %v878 = vadd.f32 %v782, %v837
    %v879 = vadd.f32 %v783, %v809
    %v880 = vadd.f32 %v784, %v813
    %v881 = vadd.f32 %v785, %v817
    %v882 = vadd.f32 %v786, %v821
    %v883 = vadd.f32 %v787, %v825
    %v884 = vadd.f32 %v788, %v829
    %v885 = vadd.f32 %v789, %v833
    %v886 = vadd.f32 %v790, %v837
    %v887 = vadd.f32 %v791, %v809
    %v888 = vadd.f32 %v792, %v813
    %v889 = vadd.f32 %v793, %v817
    %v890 = vadd.f32 %v794, %v821
    %v891 = vadd.f32 %v795, %v825
    %v892 = vadd.f32 %v796, %v829
    %v893 = vadd.f32 %v797, %v833
    %v894 = vadd.f32 %v798, %v837
    %v895 = vadd.f32 %v799, %v809
    %v896 = vadd.f32 %v800, %v813
    %v897 = vadd.f32 %v801, %v817
    %v898 = vadd.f32 %v802, %v821
    %v899 = vadd.f32 %v803, %v825
    %v900 = vadd.f32 %v804, %v829
    %v901 = vadd.f32 %v805, %v833
    %v902 = vadd.f32 %v806, %v837
    %904 = vset.pattern.permute.xlu0 5
    %905 = vperm.xlu0 %904, %v26
    %v906 = vpop.permute.xlu0 %905
    %909 = vset.pattern.permute.xlu0 5
    %910 = vperm.xlu0 %909, %v27
    %v911 = vpop.permute.xlu0 %910
    %914 = vset.pattern.permute.xlu0 5
    %915 = vperm.xlu0 %914, %v28
    %v916 = vpop.permute.xlu0 %915
    %919 = vset.pattern.permute.xlu0 5
    %920 = vperm.xlu0 %919, %v29
    %v921 = vpop.permute.xlu0 %920
    %v923 = vmul.f32 %v703, %v906
    %v924 = vmul.f32 %v703, %v911
    %v925 = vmul.f32 %v703, %v916
    %v926 = vmul.f32 %v703, %v921
    %v927 = vmul.f32 %v704, %v906
    %v928 = vmul.f32 %v704, %v911
    %v929 = vmul.f32 %v704, %v916
    %v930 = vmul.f32 %v704, %v921
    %v931 = vmul.f32 %v705, %v906
    %v932 = vmul.f32 %v705, %v911
    %v933 = vmul.f32 %v705, %v916
    %v934 = vmul.f32 %v705, %v921
    %v935 = vmul.f32 %v706, %v906
    %v936 = vmul.f32 %v706, %v911
    %v937 = vmul.f32 %v706, %v916
    %v938 = vmul.f32 %v706, %v921
    %v939 = vmul.f32 %v707, %v906
    %v940 = vmul.f32 %v707, %v911
    %v941 = vmul.f32 %v707, %v916
    %v942 = vmul.f32 %v707, %v921
    %v943 = vmul.f32 %v708, %v906
    %v944 = vmul.f32 %v708, %v911
    %v945 = vmul.f32 %v708, %v916
    %v946 = vmul.f32 %v708, %v921
    %v947 = vmul.f32 %v709, %v906
    %v948 = vmul.f32 %v709, %v911
    %v949 = vmul.f32 %v709, %v916
    %v950 = vmul.f32 %v709, %v921
    %v951 = vmul.f32 %v710, %v906
    %v952 = vmul.f32 %v710, %v911
    %v953 = vmul.f32 %v710, %v916
    %v954 = vmul.f32 %v710, %v921
    %955 = vset.pattern.permute.xlu0 6
    %956 = vperm.xlu0 %955, %v26
    %v957 = vpop.permute.xlu0 %956
    %959 = vset.pattern.permute.xlu0 6
    %960 = vperm.xlu0 %959, %v27
    %v961 = vpop.permute.xlu0 %960
    %963 = vset.pattern.permute.xlu0 6
    %964 = vperm.xlu0 %963, %v28
    %v965 = vpop.permute.xlu0 %964
    %967 = vset.pattern.permute.xlu0 6
    %968 = vperm.xlu0 %967, %v29
    %v969 = vpop.permute.xlu0 %968
    %v971 = vadd.f32 %v923, %v957
    %v972 = vadd.f32 %v924, %v961
    %v973 = vadd.f32 %v925, %v965
    %v974 = vadd.f32 %v926, %v969
    %v975 = vadd.f32 %v927, %v957
    %v976 = vadd.f32 %v928, %v961
    %v977 = vadd.f32 %v929, %v965
    %v978 = vadd.f32 %v930, %v969
    %v979 = vadd.f32 %v931, %v957
    %v980 = vadd.f32 %v932, %v961
    %v981 = vadd.f32 %v933, %v965
    %v982 = vadd.f32 %v934, %v969
    %v983 = vadd.f32 %v935, %v957
    %v984 = vadd.f32 %v936, %v961
    %v985 = vadd.f32 %v937, %v965
    %v986 = vadd.f32 %v938, %v969
    %v987 = vadd.f32 %v939, %v957
    %v988 = vadd.f32 %v940, %v961
    %v989 = vadd.f32 %v941, %v965
    %v990 = vadd.f32 %v942, %v969
    %v991 = vadd.f32 %v943, %v957
    %v992 = vadd.f32 %v944, %v961
    %v993 = vadd.f32 %v945, %v965
    %v994 = vadd.f32 %v946, %v969
    %v995 = vadd.f32 %v947, %v957
    %v996 = vadd.f32 %v948, %v961
    %v997 = vadd.f32 %v949, %v965
    %v998 = vadd.f32 %v950, %v969
    %v999 = vadd.f32 %v951, %v957
    %v1000 = vadd.f32 %v952, %v961
    %v1001 = vadd.f32 %v953, %v965
    %v1002 = vadd.f32 %v954, %v969
    %v1003 = vld [vmem:[%s3] sm:$0xff]
    %v1004 = vld [vmem:[%s3 + $0x8] sm:$0xff]
    %v1005 = vld [vmem:[%s3 + $0x10] sm:$0xff]
    %v1006 = vld [vmem:[%s3 + $0x18] sm:$0xff]
    %v1007 = vld [vmem:[%s3 + $0x20] sm:$0xff]
    %v1008 = vld [vmem:[%s3 + $0x28] sm:$0xff]
    %v1009 = vld [vmem:[%s3 + $0x30] sm:$0xff]
    %v1010 = vld [vmem:[%s3 + $0x38] sm:$0xff]
    %v1011 = vld [vmem:[%s3 + $0x40] sm:$0xff]
    %v1012 = vld [vmem:[%s3 + $0x48] sm:$0xff]
    %v1013 = vld [vmem:[%s3 + $0x50] sm:$0xff]
    %v1014 = vld [vmem:[%s3 + $0x58] sm:$0xff]
    %vm1015 = vcmask 261120
    %v1017 = vsel %vm1015, %v1003, 0
    %v1020 = vsel %vm1015, %v1004, 0
    %v1023 = vsel %vm1015, %v1005, 0
    %v1026 = vsel %vm1015, %v1006, 0
    %v1029 = vsel %vm1015, %v1007, 0
    %v1032 = vsel %vm1015, %v1008, 0
    %v1035 = vsel %vm1015, %v1009, 0
    %v1038 = vsel %vm1015, %v1010, 0
    %v1041 = vsel %vm1015, %v1011, 0
    %v1044 = vsel %vm1015, %v1012, 0
    %v1047 = vsel %vm1015, %v1013, 0
    %v1050 = vsel %vm1015, %v1014, 0
    %1052 = vmatpush.msra.mxu0 0.0
    %1053 = vmatpush.msra.mxu0 0.0
    %1054 = vmatpush.msra.mxu0 0.0
    %1055 = vmatpush.msra.mxu0 0.0
    %1056 = vmatpush.msra.mxu0 0.0
    %1057 = vmatpush.msra.mxu0 0.0
    %1058 = vmatpush.msra.mxu0 0.0
    %1059 = vmatpush.msra.mxu0 0.0
    %1060 = vmatpush.msra.mxu0 0.0
    %1061 = vmatpush.msra.mxu0 0.0
    %1062 = vmatpush.msra.mxu0 0.0
    %1063 = vmatpush.msra.mxu0 0.0
    %1064 = vmatpush.msra.mxu0 0.0
    %1065 = vmatpush.msra.mxu0 0.0
    %1066 = vmatpush.msra.mxu0 0.0
    %1067 = vmatpush.msra.mxu0 0.0
    %1068 = vmatmul.f32.gmra.mxu0 %v1017
    %v1069 = vpop.f32.mrf.mxu0
    %v1070 = vadd.f32 0.0, %v1069
    %1071 = vmatmul.f32.gmra.mxu0 %v1020
    %v1072 = vpop.f32.mrf.mxu0
    %v1073 = vadd.f32 0.0, %v1072
    %1074 = vmatmul.f32.gmra.mxu0 %v1023
    %v1075 = vpop.f32.mrf.mxu0
    %v1076 = vadd.f32 0.0, %v1075
    %1077 = vmatmul.f32.gmra.mxu0 %v1026
    %v1078 = vpop.f32.mrf.mxu0
    %v1079 = vadd.f32 0.0, %v1078
    %1080 = vmatmul.f32.gmra.mxu0 %v1029
    %v1081 = vpop.f32.mrf.mxu0
    %v1082 = vadd.f32 0.0, %v1081
    %1083 = vmatmul.f32.gmra.mxu0 %v1032
    %v1084 = vpop.f32.mrf.mxu0
    %v1085 = vadd.f32 0.0, %v1084
    %1086 = vmatmul.f32.gmra.mxu0 %v1035
    %v1087 = vpop.f32.mrf.mxu0
    %v1088 = vadd.f32 0.0, %v1087
    %1089 = vmatmul.f32.gmra.mxu0 %v1038
    %v1090 = vpop.f32.mrf.mxu0
    %v1091 = vadd.f32 0.0, %v1090
    %1092 = vmatmul.f32.gmra.mxu0 %v1041
    %v1093 = vpop.f32.mrf.mxu0
    %v1094 = vadd.f32 0.0, %v1093
    %1095 = vmatmul.f32.gmra.mxu0 %v1044
    %v1096 = vpop.f32.mrf.mxu0
    %v1097 = vadd.f32 0.0, %v1096
    %1098 = vmatmul.f32.gmra.mxu0 %v1047
    %v1099 = vpop.f32.mrf.mxu0
    %v1100 = vadd.f32 0.0, %v1099
    %1101 = vmatmul.f32.gmra.mxu0 %v1050
    %v1102 = vpop.f32.mrf.mxu0
    %v1103 = vadd.f32 0.0, %v1102
    %1104 = vdwg.mxu0
    %v1105 = vadd.f32 %v839, %v1070
    %v1106 = vadd.f32 %v840, %v1073
    %v1107 = vadd.f32 %v841, %v1076
    %v1108 = vadd.f32 %v842, %v1079
    %v1109 = vadd.f32 %v843, %v1082
    %v1110 = vadd.f32 %v844, %v1085
    %v1111 = vadd.f32 %v845, %v1088
    %v1112 = vadd.f32 %v846, %v1091
    %v1113 = vxor.u32 %v1105, 2147483648
    %v1114 = vxor.u32 %v1106, 2147483648
    %v1115 = vxor.u32 %v1107, 2147483648
    %v1116 = vxor.u32 %v1108, 2147483648
    %v1117 = vxor.u32 %v1109, 2147483648
    %v1118 = vxor.u32 %v1110, 2147483648
    %v1119 = vxor.u32 %v1111, 2147483648
    %v1120 = vxor.u32 %v1112, 2147483648
    %v1121 = vmul.f32 %v1113, 1.442695
    %v1122 = vpow.pop %v1121
    %v1123 = vmul.f32 %v1114, 1.442695
    %v1124 = vpow.pop %v1123
    %v1125 = vmul.f32 %v1115, 1.442695
    %v1126 = vpow.pop %v1125
    %v1127 = vmul.f32 %v1116, 1.442695
    %v1128 = vpow.pop %v1127
    %v1129 = vmul.f32 %v1117, 1.442695
    %v1130 = vpow.pop %v1129
    %v1131 = vmul.f32 %v1118, 1.442695
    %v1132 = vpow.pop %v1131
    %v1133 = vmul.f32 %v1119, 1.442695
    %v1134 = vpow.pop %v1133
    %v1135 = vmul.f32 %v1120, 1.442695
    %v1136 = vpow.pop %v1135
    %v1137 = vadd.f32 %v1122, 1.0
    %v1138 = vadd.f32 %v1124, 1.0
    %v1139 = vadd.f32 %v1126, 1.0
    %v1140 = vadd.f32 %v1128, 1.0
    %v1141 = vadd.f32 %v1130, 1.0
    %v1142 = vadd.f32 %v1132, 1.0
    %v1143 = vadd.f32 %v1134, 1.0
    %v1144 = vadd.f32 %v1136, 1.0
    %v1145 = vrcp.pop %v1137
    %v1146 = vmul.f32 %v1137, %v1145
    %v1147 = vsub.f32 1.0, %v1146
    %v1148 = vmul.f32 %v1145, %v1147
    %v1149 = vadd.f32 %v1145, %v1148
    %vm1150 = vweird.f32 %v1137
    %vm1151 = vweird.f32 %v1145
    %vm1152 = vmor %vm1150, %vm1151
    %v1153 = vsel %vm1152, %v1145, %v1149
    %v1154 = vand.u32 2147483647, %v1137
    %vm1155 = vcmp.eq.f32.partialorder %v1154, 8.507059e+37
    %v1156 = vand.u32 %v1137, 2147483648
    %v1157 = vor.u32 1.1754944e-38, %v1156
    %v1158 = vsel %vm1155, %v1157, %v1153
    %v1159 = vmul.f32 1.0, %v1158
    %v1160 = vrcp.pop %v1138
    %v1161 = vmul.f32 %v1138, %v1160
    %v1162 = vsub.f32 1.0, %v1161
    %v1163 = vmul.f32 %v1160, %v1162
    %v1164 = vadd.f32 %v1160, %v1163
    %vm1165 = vweird.f32 %v1138
    %vm1166 = vweird.f32 %v1160
    %vm1167 = vmor %vm1165, %vm1166
    %v1168 = vsel %vm1167, %v1160, %v1164
    %v1169 = vand.u32 2147483647, %v1138
    %vm1170 = vcmp.eq.f32.partialorder %v1169, 8.507059e+37
    %v1171 = vand.u32 %v1138, 2147483648
    %v1172 = vor.u32 1.1754944e-38, %v1171
    %v1173 = vsel %vm1170, %v1172, %v1168
    %v1174 = vmul.f32 1.0, %v1173
    %v1175 = vrcp.pop %v1139
    %v1176 = vmul.f32 %v1139, %v1175
    %v1177 = vsub.f32 1.0, %v1176
    %v1178 = vmul.f32 %v1175, %v1177
    %v1179 = vadd.f32 %v1175, %v1178
    %vm1180 = vweird.f32 %v1139
    %vm1181 = vweird.f32 %v1175
    %vm1182 = vmor %vm1180, %vm1181
    %v1183 = vsel %vm1182, %v1175, %v1179
    %v1184 = vand.u32 2147483647, %v1139
    %vm1185 = vcmp.eq.f32.partialorder %v1184, 8.507059e+37
    %v1186 = vand.u32 %v1139, 2147483648
    %v1187 = vor.u32 1.1754944e-38, %v1186
    %v1188 = vsel %vm1185, %v1187, %v1183
    %v1189 = vmul.f32 1.0, %v1188
    %v1190 = vrcp.pop %v1140
    %v1191 = vmul.f32 %v1140, %v1190
    %v1192 = vsub.f32 1.0, %v1191
    %v1193 = vmul.f32 %v1190, %v1192
    %v1194 = vadd.f32 %v1190, %v1193
    %vm1195 = vweird.f32 %v1140
    %vm1196 = vweird.f32 %v1190
    %vm1197 = vmor %vm1195, %vm1196
    %v1198 = vsel %vm1197, %v1190, %v1194
    %v1199 = vand.u32 2147483647, %v1140
    %vm1200 = vcmp.eq.f32.partialorder %v1199, 8.507059e+37
    %v1201 = vand.u32 %v1140, 2147483648
    %v1202 = vor.u32 1.1754944e-38, %v1201
    %v1203 = vsel %vm1200, %v1202, %v1198
    %v1204 = vmul.f32 1.0, %v1203
    %v1205 = vrcp.pop %v1141
    %v1206 = vmul.f32 %v1141, %v1205
    %v1207 = vsub.f32 1.0, %v1206
    %v1208 = vmul.f32 %v1205, %v1207
    %v1209 = vadd.f32 %v1205, %v1208
    %vm1210 = vweird.f32 %v1141
    %vm1211 = vweird.f32 %v1205
    %vm1212 = vmor %vm1210, %vm1211
    %v1213 = vsel %vm1212, %v1205, %v1209
    %v1214 = vand.u32 2147483647, %v1141
    %vm1215 = vcmp.eq.f32.partialorder %v1214, 8.507059e+37
    %v1216 = vand.u32 %v1141, 2147483648
    %v1217 = vor.u32 1.1754944e-38, %v1216
    %v1218 = vsel %vm1215, %v1217, %v1213
    %v1219 = vmul.f32 1.0, %v1218
    %v1220 = vrcp.pop %v1142
    %v1221 = vmul.f32 %v1142, %v1220
    %v1222 = vsub.f32 1.0, %v1221
    %v1223 = vmul.f32 %v1220, %v1222
    %v1224 = vadd.f32 %v1220, %v1223
    %vm1225 = vweird.f32 %v1142
    %vm1226 = vweird.f32 %v1220
    %vm1227 = vmor %vm1225, %vm1226
    %v1228 = vsel %vm1227, %v1220, %v1224
    %v1229 = vand.u32 2147483647, %v1142
    %vm1230 = vcmp.eq.f32.partialorder %v1229, 8.507059e+37
    %v1231 = vand.u32 %v1142, 2147483648
    %v1232 = vor.u32 1.1754944e-38, %v1231
    %v1233 = vsel %vm1230, %v1232, %v1228
    %v1234 = vmul.f32 1.0, %v1233
    %v1235 = vrcp.pop %v1143
    %v1236 = vmul.f32 %v1143, %v1235
    %v1237 = vsub.f32 1.0, %v1236
    %v1238 = vmul.f32 %v1235, %v1237
    %v1239 = vadd.f32 %v1235, %v1238
    %vm1240 = vweird.f32 %v1143
    %vm1241 = vweird.f32 %v1235
    %vm1242 = vmor %vm1240, %vm1241
    %v1243 = vsel %vm1242, %v1235, %v1239
    %v1244 = vand.u32 2147483647, %v1143
    %vm1245 = vcmp.eq.f32.partialorder %v1244, 8.507059e+37
    %v1246 = vand.u32 %v1143, 2147483648
    %v1247 = vor.u32 1.1754944e-38, %v1246
    %v1248 = vsel %vm1245, %v1247, %v1243
    %v1249 = vmul.f32 1.0, %v1248
    %v1250 = vrcp.pop %v1144
    %v1251 = vmul.f32 %v1144, %v1250
    %v1252 = vsub.f32 1.0, %v1251
    %v1253 = vmul.f32 %v1250, %v1252
    %v1254 = vadd.f32 %v1250, %v1253
    %vm1255 = vweird.f32 %v1144
    %vm1256 = vweird.f32 %v1250
    %vm1257 = vmor %vm1255, %vm1256
    %v1258 = vsel %vm1257, %v1250, %v1254
    %v1259 = vand.u32 2147483647, %v1144
    %vm1260 = vcmp.eq.f32.partialorder %v1259, 8.507059e+37
    %v1261 = vand.u32 %v1144, 2147483648
    %v1262 = vor.u32 1.1754944e-38, %v1261
    %v1263 = vsel %vm1260, %v1262, %v1258
    %v1264 = vmul.f32 1.0, %v1263
    %v1265 = vadd.f32 %v1094, %v33
    %v1266 = vadd.f32 %v1097, %v38
    %v1267 = vadd.f32 %v1100, %v43
    %v1268 = vadd.f32 %v1103, %v48
    %v1269 = vmul.f32 %v1159, %v1265
    %v1270 = vmul.f32 %v1174, %v1266
    %v1271 = vmul.f32 %v1189, %v1267
    %v1272 = vmul.f32 %v1204, %v1268
    %v1273 = vadd.f32 %v971, %v1269
    %v1274 = vadd.f32 %v972, %v1270
    %v1275 = vadd.f32 %v973, %v1271
    %v1276 = vadd.f32 %v974, %v1272
    %v1277 = vtanh.pop %v1273
    %v1278 = vtanh.pop %v1274
    %v1279 = vtanh.pop %v1275
    %v1280 = vtanh.pop %v1276
    %v1281 = vsub.f32 0.0, %v1277
    %v1282 = vsub.f32 0.0, %v1278
    %v1283 = vsub.f32 0.0, %v1279
    %v1284 = vsub.f32 0.0, %v1280
    %v1285 = vmul.f32 %v1219, %v1281
    %v1286 = vmul.f32 %v1234, %v1282
    %v1287 = vmul.f32 %v1249, %v1283
    %v1288 = vmul.f32 %v1264, %v1284
    %v1289 = vadd.f32 %v1277, %v1285
    %v1290 = vadd.f32 %v1278, %v1286
    %v1291 = vadd.f32 %v1279, %v1287
    %v1292 = vadd.f32 %v1280, %v1288
    %v1293 = vmul.f32 %v1289, %v53
    %v1294 = vmul.f32 %v1290, %v58
    %v1295 = vmul.f32 %v1291, %v63
    %v1296 = vmul.f32 %v1292, %v68
    %v1297 = vadd.f32 %v1293, %v1294
    %v1298 = vadd.f32 %v1297, %v1295
    %v1299 = vadd.f32 %v1298, %v1296
    %v1300 = vrot.slane %v1299, 4
    %v1301 = vadd.f32 %v1299, %v1300
    %v1302 = vrot.slane %v1301, 2
    %v1303 = vadd.f32 %v1301, %v1302
    %v1304 = vrot.slane %v1303, 1
    %v1305 = vadd.f32 %v1303, %v1304
    %1306 = vset.pattern.permute.xlu0 0
    %1307 = vperm.xlu0 %1306, %v22
    %v1308 = vpop.permute.xlu0 %1307
    %v1310 = vadd.f32 %v1305, %v1308
    %vm1311 = vcmp.ge.f32.partialorder %v1310, 0.0
    %v1312 = vmul.f32 %v1310, 0.01
    %v1313 = vsel %vm1311, %v1310, %v1312
    %1314 = vmatpush.msra.mxu0 0.0
    %1315 = vmatpush.msra.mxu0 0.0
    %1316 = vmatpush.msra.mxu0 0.0
    %1317 = vmatpush.msra.mxu0 0.0
    %1318 = vmatpush.msra.mxu0 0.0
    %1319 = vmatpush.msra.mxu0 0.0
    %1320 = vmatpush.msra.mxu0 0.0
    %1321 = vmatpush.msra.mxu0 0.0
    %1322 = vmatpush.msra.mxu0 0.0
    %1323 = vmatpush.msra.mxu0 0.0
    %1324 = vmatpush.msra.mxu0 0.0
    %1325 = vmatpush.msra.mxu0 0.0
    %1326 = vmatpush.msra.mxu0 %v1292
    %1327 = vmatpush.msra.mxu0 %v1291
    %1328 = vmatpush.msra.mxu0 %v1290
    %1329 = vmatpush.msra.mxu0 %v1289
    %1330 = vmatmul.f32.gmra.mxu0 %v1017
    %v1331 = vpop.f32.mrf.mxu0
    %v1332 = vadd.f32 0.0, %v1331
    %1333 = vmatmul.f32.gmra.mxu0 %v1020
    %v1334 = vpop.f32.mrf.mxu0
    %v1335 = vadd.f32 0.0, %v1334
    %1336 = vmatmul.f32.gmra.mxu0 %v1023
    %v1337 = vpop.f32.mrf.mxu0
    %v1338 = vadd.f32 0.0, %v1337
    %1339 = vmatmul.f32.gmra.mxu0 %v1026
    %v1340 = vpop.f32.mrf.mxu0
    %v1341 = vadd.f32 0.0, %v1340
    %1342 = vmatmul.f32.gmra.mxu0 %v1029
    %v1343 = vpop.f32.mrf.mxu0
    %v1344 = vadd.f32 0.0, %v1343
    %1345 = vmatmul.f32.gmra.mxu0 %v1032
    %v1346 = vpop.f32.mrf.mxu0
    %v1347 = vadd.f32 0.0, %v1346
    %1348 = vmatmul.f32.gmra.mxu0 %v1035
    %v1349 = vpop.f32.mrf.mxu0
    %v1350 = vadd.f32 0.0, %v1349
    %1351 = vmatmul.f32.gmra.mxu0 %v1038
    %v1352 = vpop.f32.mrf.mxu0
    %v1353 = vadd.f32 0.0, %v1352
    %1354 = vmatmul.f32.gmra.mxu0 %v1041
    %v1355 = vpop.f32.mrf.mxu0
    %v1356 = vadd.f32 0.0, %v1355
    %1357 = vmatmul.f32.gmra.mxu0 %v1044
    %v1358 = vpop.f32.mrf.mxu0
    %v1359 = vadd.f32 0.0, %v1358
    %1360 = vmatmul.f32.gmra.mxu0 %v1047
    %v1361 = vpop.f32.mrf.mxu0
    %v1362 = vadd.f32 0.0, %v1361
    %1363 = vmatmul.f32.gmra.mxu0 %v1050
    %v1364 = vpop.f32.mrf.mxu0
    %v1365 = vadd.f32 0.0, %v1364
    %1366 = vdwg.mxu0
    %v1367 = vadd.f32 %v847, %v1332
    %v1368 = vadd.f32 %v848, %v1335
    %v1369 = vadd.f32 %v849, %v1338
    %v1370 = vadd.f32 %v850, %v1341
    %v1371 = vadd.f32 %v851, %v1344
    %v1372 = vadd.f32 %v852, %v1347
    %v1373 = vadd.f32 %v853, %v1350
    %v1374 = vadd.f32 %v854, %v1353
    %v1375 = vxor.u32 %v1367, 2147483648
    %v1376 = vxor.u32 %v1368, 2147483648
    %v1377 = vxor.u32 %v1369, 2147483648
    %v1378 = vxor.u32 %v1370, 2147483648
    %v1379 = vxor.u32 %v1371, 2147483648
    %v1380 = vxor.u32 %v1372, 2147483648
    %v1381 = vxor.u32 %v1373, 2147483648
    %v1382 = vxor.u32 %v1374, 2147483648
    %v1383 = vmul.f32 %v1375, 1.442695
    %v1384 = vpow.pop %v1383
    %v1385 = vmul.f32 %v1376, 1.442695
    %v1386 = vpow.pop %v1385
    %v1387 = vmul.f32 %v1377, 1.442695
    %v1388 = vpow.pop %v1387
    %v1389 = vmul.f32 %v1378, 1.442695
    %v1390 = vpow.pop %v1389
    %v1391 = vmul.f32 %v1379, 1.442695
    %v1392 = vpow.pop %v1391
    %v1393 = vmul.f32 %v1380, 1.442695
    %v1394 = vpow.pop %v1393
    %v1395 = vmul.f32 %v1381, 1.442695
    %v1396 = vpow.pop %v1395
    %v1397 = vmul.f32 %v1382, 1.442695
    %v1398 = vpow.pop %v1397
    %v1399 = vadd.f32 %v1384, 1.0
    %v1400 = vadd.f32 %v1386, 1.0
    %v1401 = vadd.f32 %v1388, 1.0
    %v1402 = vadd.f32 %v1390, 1.0
    %v1403 = vadd.f32 %v1392, 1.0
    %v1404 = vadd.f32 %v1394, 1.0
    %v1405 = vadd.f32 %v1396, 1.0
    %v1406 = vadd.f32 %v1398, 1.0
    %v1407 = vrcp.pop %v1399
    %v1408 = vmul.f32 %v1399, %v1407
    %v1409 = vsub.f32 1.0, %v1408
    %v1410 = vmul.f32 %v1407, %v1409
    %v1411 = vadd.f32 %v1407, %v1410
    %vm1412 = vweird.f32 %v1399
    %vm1413 = vweird.f32 %v1407
    %vm1414 = vmor %vm1412, %vm1413
    %v1415 = vsel %vm1414, %v1407, %v1411
    %v1416 = vand.u32 2147483647, %v1399
    %vm1417 = vcmp.eq.f32.partialorder %v1416, 8.507059e+37
    %v1418 = vand.u32 %v1399, 2147483648
    %v1419 = vor.u32 1.1754944e-38, %v1418
    %v1420 = vsel %vm1417, %v1419, %v1415
    %v1421 = vmul.f32 1.0, %v1420
    %v1422 = vrcp.pop %v1400
    %v1423 = vmul.f32 %v1400, %v1422
    %v1424 = vsub.f32 1.0, %v1423
    %v1425 = vmul.f32 %v1422, %v1424
    %v1426 = vadd.f32 %v1422, %v1425
    %vm1427 = vweird.f32 %v1400
    %vm1428 = vweird.f32 %v1422
    %vm1429 = vmor %vm1427, %vm1428
    %v1430 = vsel %vm1429, %v1422, %v1426
    %v1431 = vand.u32 2147483647, %v1400
    %vm1432 = vcmp.eq.f32.partialorder %v1431, 8.507059e+37
    %v1433 = vand.u32 %v1400, 2147483648
    %v1434 = vor.u32 1.1754944e-38, %v1433
    %v1435 = vsel %vm1432, %v1434, %v1430
    %v1436 = vmul.f32 1.0, %v1435
    %v1437 = vrcp.pop %v1401
    %v1438 = vmul.f32 %v1401, %v1437
    %v1439 = vsub.f32 1.0, %v1438
    %v1440 = vmul.f32 %v1437, %v1439
    %v1441 = vadd.f32 %v1437, %v1440
    %vm1442 = vweird.f32 %v1401
    %vm1443 = vweird.f32 %v1437
    %vm1444 = vmor %vm1442, %vm1443
    %v1445 = vsel %vm1444, %v1437, %v1441
    %v1446 = vand.u32 2147483647, %v1401
    %vm1447 = vcmp.eq.f32.partialorder %v1446, 8.507059e+37
    %v1448 = vand.u32 %v1401, 2147483648
    %v1449 = vor.u32 1.1754944e-38, %v1448
    %v1450 = vsel %vm1447, %v1449, %v1445
    %v1451 = vmul.f32 1.0, %v1450
    %v1452 = vrcp.pop %v1402
    %v1453 = vmul.f32 %v1402, %v1452
    %v1454 = vsub.f32 1.0, %v1453
    %v1455 = vmul.f32 %v1452, %v1454
    %v1456 = vadd.f32 %v1452, %v1455
    %vm1457 = vweird.f32 %v1402
    %vm1458 = vweird.f32 %v1452
    %vm1459 = vmor %vm1457, %vm1458
    %v1460 = vsel %vm1459, %v1452, %v1456
    %v1461 = vand.u32 2147483647, %v1402
    %vm1462 = vcmp.eq.f32.partialorder %v1461, 8.507059e+37
    %v1463 = vand.u32 %v1402, 2147483648
    %v1464 = vor.u32 1.1754944e-38, %v1463
    %v1465 = vsel %vm1462, %v1464, %v1460
    %v1466 = vmul.f32 1.0, %v1465
    %v1467 = vrcp.pop %v1403
    %v1468 = vmul.f32 %v1403, %v1467
    %v1469 = vsub.f32 1.0, %v1468
    %v1470 = vmul.f32 %v1467, %v1469
    %v1471 = vadd.f32 %v1467, %v1470
    %vm1472 = vweird.f32 %v1403
    %vm1473 = vweird.f32 %v1467
    %vm1474 = vmor %vm1472, %vm1473
    %v1475 = vsel %vm1474, %v1467, %v1471
    %v1476 = vand.u32 2147483647, %v1403
    %vm1477 = vcmp.eq.f32.partialorder %v1476, 8.507059e+37
    %v1478 = vand.u32 %v1403, 2147483648
    %v1479 = vor.u32 1.1754944e-38, %v1478
    %v1480 = vsel %vm1477, %v1479, %v1475
    %v1481 = vmul.f32 1.0, %v1480
    %v1482 = vrcp.pop %v1404
    %v1483 = vmul.f32 %v1404, %v1482
    %v1484 = vsub.f32 1.0, %v1483
    %v1485 = vmul.f32 %v1482, %v1484
    %v1486 = vadd.f32 %v1482, %v1485
    %vm1487 = vweird.f32 %v1404
    %vm1488 = vweird.f32 %v1482
    %vm1489 = vmor %vm1487, %vm1488
    %v1490 = vsel %vm1489, %v1482, %v1486
    %v1491 = vand.u32 2147483647, %v1404
    %vm1492 = vcmp.eq.f32.partialorder %v1491, 8.507059e+37
    %v1493 = vand.u32 %v1404, 2147483648
    %v1494 = vor.u32 1.1754944e-38, %v1493
    %v1495 = vsel %vm1492, %v1494, %v1490
    %v1496 = vmul.f32 1.0, %v1495
    %v1497 = vrcp.pop %v1405
    %v1498 = vmul.f32 %v1405, %v1497
    %v1499 = vsub.f32 1.0, %v1498
    %v1500 = vmul.f32 %v1497, %v1499
    %v1501 = vadd.f32 %v1497, %v1500
    %vm1502 = vweird.f32 %v1405
    %vm1503 = vweird.f32 %v1497
    %vm1504 = vmor %vm1502, %vm1503
    %v1505 = vsel %vm1504, %v1497, %v1501
    %v1506 = vand.u32 2147483647, %v1405
    %vm1507 = vcmp.eq.f32.partialorder %v1506, 8.507059e+37
    %v1508 = vand.u32 %v1405, 2147483648
    %v1509 = vor.u32 1.1754944e-38, %v1508
    %v1510 = vsel %vm1507, %v1509, %v1505
    %v1511 = vmul.f32 1.0, %v1510
    %v1512 = vrcp.pop %v1406
    %v1513 = vmul.f32 %v1406, %v1512
    %v1514 = vsub.f32 1.0, %v1513
    %v1515 = vmul.f32 %v1512, %v1514
    %v1516 = vadd.f32 %v1512, %v1515
    %vm1517 = vweird.f32 %v1406
    %vm1518 = vweird.f32 %v1512
    %vm1519 = vmor %vm1517, %vm1518
    %v1520 = vsel %vm1519, %v1512, %v1516
    %v1521 = vand.u32 2147483647, %v1406
    %vm1522 = vcmp.eq.f32.partialorder %v1521, 8.507059e+37
    %v1523 = vand.u32 %v1406, 2147483648
    %v1524 = vor.u32 1.1754944e-38, %v1523
    %v1525 = vsel %vm1522, %v1524, %v1520
    %v1526 = vmul.f32 1.0, %v1525
    %v1527 = vadd.f32 %v1356, %v33
    %v1528 = vadd.f32 %v1359, %v38
    %v1529 = vadd.f32 %v1362, %v43
    %v1530 = vadd.f32 %v1365, %v48
    %v1531 = vmul.f32 %v1421, %v1527
    %v1532 = vmul.f32 %v1436, %v1528
    %v1533 = vmul.f32 %v1451, %v1529
    %v1534 = vmul.f32 %v1466, %v1530
    %v1535 = vadd.f32 %v975, %v1531
    %v1536 = vadd.f32 %v976, %v1532
    %v1537 = vadd.f32 %v977, %v1533
    %v1538 = vadd.f32 %v978, %v1534
    %v1539 = vtanh.pop %v1535
    %v1540 = vtanh.pop %v1536
    %v1541 = vtanh.pop %v1537
    %v1542 = vtanh.pop %v1538
    %v1543 = vsub.f32 %v1289, %v1539
    %v1544 = vsub.f32 %v1290, %v1540
    %v1545 = vsub.f32 %v1291, %v1541
    %v1546 = vsub.f32 %v1292, %v1542
    %v1547 = vmul.f32 %v1481, %v1543
    %v1548 = vmul.f32 %v1496, %v1544
    %v1549 = vmul.f32 %v1511, %v1545
    %v1550 = vmul.f32 %v1526, %v1546
    %v1551 = vadd.f32 %v1539, %v1547
    %v1552 = vadd.f32 %v1540, %v1548
    %v1553 = vadd.f32 %v1541, %v1549
    %v1554 = vadd.f32 %v1542, %v1550
    %v1555 = vmul.f32 %v1551, %v53
    %v1556 = vmul.f32 %v1552, %v58
    %v1557 = vmul.f32 %v1553, %v63
    %v1558 = vmul.f32 %v1554, %v68
    %v1559 = vadd.f32 %v1555, %v1556
    %v1560 = vadd.f32 %v1559, %v1557
    %v1561 = vadd.f32 %v1560, %v1558
    %v1562 = vrot.slane %v1561, 4
    %v1563 = vadd.f32 %v1561, %v1562
    %v1564 = vrot.slane %v1563, 2
    %v1565 = vadd.f32 %v1563, %v1564
    %v1566 = vrot.slane %v1565, 1
    %v1567 = vadd.f32 %v1565, %v1566
    %v1568 = vadd.f32 %v1567, %v1308
    %vm1569 = vcmp.ge.f32.partialorder %v1568, 0.0
    %v1570 = vmul.f32 %v1568, 0.01
    %v1571 = vsel %vm1569, %v1568, %v1570
    %1572 = vmatpush.msra.mxu0 0.0
    %1573 = vmatpush.msra.mxu0 0.0
    %1574 = vmatpush.msra.mxu0 0.0
    %1575 = vmatpush.msra.mxu0 0.0
    %1576 = vmatpush.msra.mxu0 0.0
    %1577 = vmatpush.msra.mxu0 0.0
    %1578 = vmatpush.msra.mxu0 0.0
    %1579 = vmatpush.msra.mxu0 0.0
    %1580 = vmatpush.msra.mxu0 0.0
    %1581 = vmatpush.msra.mxu0 0.0
    %1582 = vmatpush.msra.mxu0 0.0
    %1583 = vmatpush.msra.mxu0 0.0
    %1584 = vmatpush.msra.mxu0 %v1554
    %1585 = vmatpush.msra.mxu0 %v1553
    %1586 = vmatpush.msra.mxu0 %v1552
    %1587 = vmatpush.msra.mxu0 %v1551
    %1588 = vmatmul.f32.gmra.mxu0 %v1017
    %v1589 = vpop.f32.mrf.mxu0
    %v1590 = vadd.f32 0.0, %v1589
    %1591 = vmatmul.f32.gmra.mxu0 %v1020
    %v1592 = vpop.f32.mrf.mxu0
    %v1593 = vadd.f32 0.0, %v1592
    %1594 = vmatmul.f32.gmra.mxu0 %v1023
    %v1595 = vpop.f32.mrf.mxu0
    %v1596 = vadd.f32 0.0, %v1595
    %1597 = vmatmul.f32.gmra.mxu0 %v1026
    %v1598 = vpop.f32.mrf.mxu0
    %v1599 = vadd.f32 0.0, %v1598
    %1600 = vmatmul.f32.gmra.mxu0 %v1029
    %v1601 = vpop.f32.mrf.mxu0
    %v1602 = vadd.f32 0.0, %v1601
    %1603 = vmatmul.f32.gmra.mxu0 %v1032
    %v1604 = vpop.f32.mrf.mxu0
    %v1605 = vadd.f32 0.0, %v1604
    %1606 = vmatmul.f32.gmra.mxu0 %v1035
    %v1607 = vpop.f32.mrf.mxu0
    %v1608 = vadd.f32 0.0, %v1607
    %1609 = vmatmul.f32.gmra.mxu0 %v1038
    %v1610 = vpop.f32.mrf.mxu0
    %v1611 = vadd.f32 0.0, %v1610
    %1612 = vmatmul.f32.gmra.mxu0 %v1041
    %v1613 = vpop.f32.mrf.mxu0
    %v1614 = vadd.f32 0.0, %v1613
    %1615 = vmatmul.f32.gmra.mxu0 %v1044
    %v1616 = vpop.f32.mrf.mxu0
    %v1617 = vadd.f32 0.0, %v1616
    %1618 = vmatmul.f32.gmra.mxu0 %v1047
    %v1619 = vpop.f32.mrf.mxu0
    %v1620 = vadd.f32 0.0, %v1619
    %1621 = vmatmul.f32.gmra.mxu0 %v1050
    %v1622 = vpop.f32.mrf.mxu0
    %v1623 = vadd.f32 0.0, %v1622
    %1624 = vdwg.mxu0
    %v1625 = vadd.f32 %v855, %v1590
    %v1626 = vadd.f32 %v856, %v1593
    %v1627 = vadd.f32 %v857, %v1596
    %v1628 = vadd.f32 %v858, %v1599
    %v1629 = vadd.f32 %v859, %v1602
    %v1630 = vadd.f32 %v860, %v1605
    %v1631 = vadd.f32 %v861, %v1608
    %v1632 = vadd.f32 %v862, %v1611
    %v1633 = vxor.u32 %v1625, 2147483648
    %v1634 = vxor.u32 %v1626, 2147483648
    %v1635 = vxor.u32 %v1627, 2147483648
    %v1636 = vxor.u32 %v1628, 2147483648
    %v1637 = vxor.u32 %v1629, 2147483648
    %v1638 = vxor.u32 %v1630, 2147483648
    %v1639 = vxor.u32 %v1631, 2147483648
    %v1640 = vxor.u32 %v1632, 2147483648
    %v1641 = vmul.f32 %v1633, 1.442695
    %v1642 = vpow.pop %v1641
    %v1643 = vmul.f32 %v1634, 1.442695
    %v1644 = vpow.pop %v1643
    %v1645 = vmul.f32 %v1635, 1.442695
    %v1646 = vpow.pop %v1645
    %v1647 = vmul.f32 %v1636, 1.442695
    %v1648 = vpow.pop %v1647
    %v1649 = vmul.f32 %v1637, 1.442695
    %v1650 = vpow.pop %v1649
    %v1651 = vmul.f32 %v1638, 1.442695
    %v1652 = vpow.pop %v1651
    %v1653 = vmul.f32 %v1639, 1.442695
    %v1654 = vpow.pop %v1653
    %v1655 = vmul.f32 %v1640, 1.442695
    %v1656 = vpow.pop %v1655
    %v1657 = vadd.f32 %v1642, 1.0
    %v1658 = vadd.f32 %v1644, 1.0
    %v1659 = vadd.f32 %v1646, 1.0
    %v1660 = vadd.f32 %v1648, 1.0
    %v1661 = vadd.f32 %v1650, 1.0
    %v1662 = vadd.f32 %v1652, 1.0
    %v1663 = vadd.f32 %v1654, 1.0
    %v1664 = vadd.f32 %v1656, 1.0
    %v1665 = vrcp.pop %v1657
    %v1666 = vmul.f32 %v1657, %v1665
    %v1667 = vsub.f32 1.0, %v1666
    %v1668 = vmul.f32 %v1665, %v1667
    %v1669 = vadd.f32 %v1665, %v1668
    %vm1670 = vweird.f32 %v1657
    %vm1671 = vweird.f32 %v1665
    %vm1672 = vmor %vm1670, %vm1671
    %v1673 = vsel %vm1672, %v1665, %v1669
    %v1674 = vand.u32 2147483647, %v1657
    %vm1675 = vcmp.eq.f32.partialorder %v1674, 8.507059e+37
    %v1676 = vand.u32 %v1657, 2147483648
    %v1677 = vor.u32 1.1754944e-38, %v1676
    %v1678 = vsel %vm1675, %v1677, %v1673
    %v1679 = vmul.f32 1.0, %v1678
    %v1680 = vrcp.pop %v1658
    %v1681 = vmul.f32 %v1658, %v1680
    %v1682 = vsub.f32 1.0, %v1681
    %v1683 = vmul.f32 %v1680, %v1682
    %v1684 = vadd.f32 %v1680, %v1683
    %vm1685 = vweird.f32 %v1658
    %vm1686 = vweird.f32 %v1680
    %vm1687 = vmor %vm1685, %vm1686
    %v1688 = vsel %vm1687, %v1680, %v1684
    %v1689 = vand.u32 2147483647, %v1658
    %vm1690 = vcmp.eq.f32.partialorder %v1689, 8.507059e+37
    %v1691 = vand.u32 %v1658, 2147483648
    %v1692 = vor.u32 1.1754944e-38, %v1691
    %v1693 = vsel %vm1690, %v1692, %v1688
    %v1694 = vmul.f32 1.0, %v1693
    %v1695 = vrcp.pop %v1659
    %v1696 = vmul.f32 %v1659, %v1695
    %v1697 = vsub.f32 1.0, %v1696
    %v1698 = vmul.f32 %v1695, %v1697
    %v1699 = vadd.f32 %v1695, %v1698
    %vm1700 = vweird.f32 %v1659
    %vm1701 = vweird.f32 %v1695
    %vm1702 = vmor %vm1700, %vm1701
    %v1703 = vsel %vm1702, %v1695, %v1699
    %v1704 = vand.u32 2147483647, %v1659
    %vm1705 = vcmp.eq.f32.partialorder %v1704, 8.507059e+37
    %v1706 = vand.u32 %v1659, 2147483648
    %v1707 = vor.u32 1.1754944e-38, %v1706
    %v1708 = vsel %vm1705, %v1707, %v1703
    %v1709 = vmul.f32 1.0, %v1708
    %v1710 = vrcp.pop %v1660
    %v1711 = vmul.f32 %v1660, %v1710
    %v1712 = vsub.f32 1.0, %v1711
    %v1713 = vmul.f32 %v1710, %v1712
    %v1714 = vadd.f32 %v1710, %v1713
    %vm1715 = vweird.f32 %v1660
    %vm1716 = vweird.f32 %v1710
    %vm1717 = vmor %vm1715, %vm1716
    %v1718 = vsel %vm1717, %v1710, %v1714
    %v1719 = vand.u32 2147483647, %v1660
    %vm1720 = vcmp.eq.f32.partialorder %v1719, 8.507059e+37
    %v1721 = vand.u32 %v1660, 2147483648
    %v1722 = vor.u32 1.1754944e-38, %v1721
    %v1723 = vsel %vm1720, %v1722, %v1718
    %v1724 = vmul.f32 1.0, %v1723
    %v1725 = vrcp.pop %v1661
    %v1726 = vmul.f32 %v1661, %v1725
    %v1727 = vsub.f32 1.0, %v1726
    %v1728 = vmul.f32 %v1725, %v1727
    %v1729 = vadd.f32 %v1725, %v1728
    %vm1730 = vweird.f32 %v1661
    %vm1731 = vweird.f32 %v1725
    %vm1732 = vmor %vm1730, %vm1731
    %v1733 = vsel %vm1732, %v1725, %v1729
    %v1734 = vand.u32 2147483647, %v1661
    %vm1735 = vcmp.eq.f32.partialorder %v1734, 8.507059e+37
    %v1736 = vand.u32 %v1661, 2147483648
    %v1737 = vor.u32 1.1754944e-38, %v1736
    %v1738 = vsel %vm1735, %v1737, %v1733
    %v1739 = vmul.f32 1.0, %v1738
    %v1740 = vrcp.pop %v1662
    %v1741 = vmul.f32 %v1662, %v1740
    %v1742 = vsub.f32 1.0, %v1741
    %v1743 = vmul.f32 %v1740, %v1742
    %v1744 = vadd.f32 %v1740, %v1743
    %vm1745 = vweird.f32 %v1662
    %vm1746 = vweird.f32 %v1740
    %vm1747 = vmor %vm1745, %vm1746
    %v1748 = vsel %vm1747, %v1740, %v1744
    %v1749 = vand.u32 2147483647, %v1662
    %vm1750 = vcmp.eq.f32.partialorder %v1749, 8.507059e+37
    %v1751 = vand.u32 %v1662, 2147483648
    %v1752 = vor.u32 1.1754944e-38, %v1751
    %v1753 = vsel %vm1750, %v1752, %v1748
    %v1754 = vmul.f32 1.0, %v1753
    %v1755 = vrcp.pop %v1663
    %v1756 = vmul.f32 %v1663, %v1755
    %v1757 = vsub.f32 1.0, %v1756
    %v1758 = vmul.f32 %v1755, %v1757
    %v1759 = vadd.f32 %v1755, %v1758
    %vm1760 = vweird.f32 %v1663
    %vm1761 = vweird.f32 %v1755
    %vm1762 = vmor %vm1760, %vm1761
    %v1763 = vsel %vm1762, %v1755, %v1759
    %v1764 = vand.u32 2147483647, %v1663
    %vm1765 = vcmp.eq.f32.partialorder %v1764, 8.507059e+37
    %v1766 = vand.u32 %v1663, 2147483648
    %v1767 = vor.u32 1.1754944e-38, %v1766
    %v1768 = vsel %vm1765, %v1767, %v1763
    %v1769 = vmul.f32 1.0, %v1768
    %v1770 = vrcp.pop %v1664
    %v1771 = vmul.f32 %v1664, %v1770
    %v1772 = vsub.f32 1.0, %v1771
    %v1773 = vmul.f32 %v1770, %v1772
    %v1774 = vadd.f32 %v1770, %v1773
    %vm1775 = vweird.f32 %v1664
    %vm1776 = vweird.f32 %v1770
    %vm1777 = vmor %vm1775, %vm1776
    %v1778 = vsel %vm1777, %v1770, %v1774
    %v1779 = vand.u32 2147483647, %v1664
    %vm1780 = vcmp.eq.f32.partialorder %v1779, 8.507059e+37
    %v1781 = vand.u32 %v1664, 2147483648
    %v1782 = vor.u32 1.1754944e-38, %v1781
    %v1783 = vsel %vm1780, %v1782, %v1778
    %v1784 = vmul.f32 1.0, %v1783
    %v1785 = vadd.f32 %v1614, %v33
    %v1786 = vadd.f32 %v1617, %v38
    %v1787 = vadd.f32 %v1620, %v43
    %v1788 = vadd.f32 %v1623, %v48
    %v1789 = vmul.f32 %v1679, %v1785
    %v1790 = vmul.f32 %v1694, %v1786
    %v1791 = vmul.f32 %v1709, %v1787
    %v1792 = vmul.f32 %v1724, %v1788
    %v1793 = vadd.f32 %v979, %v1789
    %v1794 = vadd.f32 %v980, %v1790
    %v1795 = vadd.f32 %v981, %v1791
    %v1796 = vadd.f32 %v982, %v1792
    %v1797 = vtanh.pop %v1793
    %v1798 = vtanh.pop %v1794
    %v1799 = vtanh.pop %v1795
    %v1800 = vtanh.pop %v1796
    %v1801 = vsub.f32 %v1551, %v1797
    %v1802 = vsub.f32 %v1552, %v1798
    %v1803 = vsub.f32 %v1553, %v1799
    %v1804 = vsub.f32 %v1554, %v1800
    %v1805 = vmul.f32 %v1739, %v1801
    %v1806 = vmul.f32 %v1754, %v1802
    %v1807 = vmul.f32 %v1769, %v1803
    %v1808 = vmul.f32 %v1784, %v1804
    %v1809 = vadd.f32 %v1797, %v1805
    %v1810 = vadd.f32 %v1798, %v1806
    %v1811 = vadd.f32 %v1799, %v1807
    %v1812 = vadd.f32 %v1800, %v1808
    %v1813 = vmul.f32 %v1809, %v53
    %v1814 = vmul.f32 %v1810, %v58
    %v1815 = vmul.f32 %v1811, %v63
    %v1816 = vmul.f32 %v1812, %v68
    %v1817 = vadd.f32 %v1813, %v1814
    %v1818 = vadd.f32 %v1817, %v1815
    %v1819 = vadd.f32 %v1818, %v1816
    %v1820 = vrot.slane %v1819, 4
    %v1821 = vadd.f32 %v1819, %v1820
    %v1822 = vrot.slane %v1821, 2
    %v1823 = vadd.f32 %v1821, %v1822
    %v1824 = vrot.slane %v1823, 1
    %v1825 = vadd.f32 %v1823, %v1824
    %v1826 = vadd.f32 %v1825, %v1308
    %vm1827 = vcmp.ge.f32.partialorder %v1826, 0.0
    %v1828 = vmul.f32 %v1826, 0.01
    %v1829 = vsel %vm1827, %v1826, %v1828
    %1830 = vmatpush.msra.mxu0 0.0
    %1831 = vmatpush.msra.mxu0 0.0
    %1832 = vmatpush.msra.mxu0 0.0
    %1833 = vmatpush.msra.mxu0 0.0
    %1834 = vmatpush.msra.mxu0 0.0
    %1835 = vmatpush.msra.mxu0 0.0
    %1836 = vmatpush.msra.mxu0 0.0
    %1837 = vmatpush.msra.mxu0 0.0
    %1838 = vmatpush.msra.mxu0 0.0
    %1839 = vmatpush.msra.mxu0 0.0
    %1840 = vmatpush.msra.mxu0 0.0
    %1841 = vmatpush.msra.mxu0 0.0
    %1842 = vmatpush.msra.mxu0 %v1812
    %1843 = vmatpush.msra.mxu0 %v1811
    %1844 = vmatpush.msra.mxu0 %v1810
    %1845 = vmatpush.msra.mxu0 %v1809
    %1846 = vmatmul.f32.gmra.mxu0 %v1017
    %v1847 = vpop.f32.mrf.mxu0
    %v1848 = vadd.f32 0.0, %v1847
    %1849 = vmatmul.f32.gmra.mxu0 %v1020
    %v1850 = vpop.f32.mrf.mxu0
    %v1851 = vadd.f32 0.0, %v1850
    %1852 = vmatmul.f32.gmra.mxu0 %v1023
    %v1853 = vpop.f32.mrf.mxu0
    %v1854 = vadd.f32 0.0, %v1853
    %1855 = vmatmul.f32.gmra.mxu0 %v1026
    %v1856 = vpop.f32.mrf.mxu0
    %v1857 = vadd.f32 0.0, %v1856
    %1858 = vmatmul.f32.gmra.mxu0 %v1029
    %v1859 = vpop.f32.mrf.mxu0
    %v1860 = vadd.f32 0.0, %v1859
    %1861 = vmatmul.f32.gmra.mxu0 %v1032
    %v1862 = vpop.f32.mrf.mxu0
    %v1863 = vadd.f32 0.0, %v1862
    %1864 = vmatmul.f32.gmra.mxu0 %v1035
    %v1865 = vpop.f32.mrf.mxu0
    %v1866 = vadd.f32 0.0, %v1865
    %1867 = vmatmul.f32.gmra.mxu0 %v1038
    %v1868 = vpop.f32.mrf.mxu0
    %v1869 = vadd.f32 0.0, %v1868
    %1870 = vmatmul.f32.gmra.mxu0 %v1041
    %v1871 = vpop.f32.mrf.mxu0
    %v1872 = vadd.f32 0.0, %v1871
    %1873 = vmatmul.f32.gmra.mxu0 %v1044
    %v1874 = vpop.f32.mrf.mxu0
    %v1875 = vadd.f32 0.0, %v1874
    %1876 = vmatmul.f32.gmra.mxu0 %v1047
    %v1877 = vpop.f32.mrf.mxu0
    %v1878 = vadd.f32 0.0, %v1877
    %1879 = vmatmul.f32.gmra.mxu0 %v1050
    %v1880 = vpop.f32.mrf.mxu0
    %v1881 = vadd.f32 0.0, %v1880
    %1882 = vdwg.mxu0
    %v1883 = vadd.f32 %v863, %v1848
    %v1884 = vadd.f32 %v864, %v1851
    %v1885 = vadd.f32 %v865, %v1854
    %v1886 = vadd.f32 %v866, %v1857
    %v1887 = vadd.f32 %v867, %v1860
    %v1888 = vadd.f32 %v868, %v1863
    %v1889 = vadd.f32 %v869, %v1866
    %v1890 = vadd.f32 %v870, %v1869
    %v1891 = vxor.u32 %v1883, 2147483648
    %v1892 = vxor.u32 %v1884, 2147483648
    %v1893 = vxor.u32 %v1885, 2147483648
    %v1894 = vxor.u32 %v1886, 2147483648
    %v1895 = vxor.u32 %v1887, 2147483648
    %v1896 = vxor.u32 %v1888, 2147483648
    %v1897 = vxor.u32 %v1889, 2147483648
    %v1898 = vxor.u32 %v1890, 2147483648
    %v1899 = vmul.f32 %v1891, 1.442695
    %v1900 = vpow.pop %v1899
    %v1901 = vmul.f32 %v1892, 1.442695
    %v1902 = vpow.pop %v1901
    %v1903 = vmul.f32 %v1893, 1.442695
    %v1904 = vpow.pop %v1903
    %v1905 = vmul.f32 %v1894, 1.442695
    %v1906 = vpow.pop %v1905
    %v1907 = vmul.f32 %v1895, 1.442695
    %v1908 = vpow.pop %v1907
    %v1909 = vmul.f32 %v1896, 1.442695
    %v1910 = vpow.pop %v1909
    %v1911 = vmul.f32 %v1897, 1.442695
    %v1912 = vpow.pop %v1911
    %v1913 = vmul.f32 %v1898, 1.442695
    %v1914 = vpow.pop %v1913
    %v1915 = vadd.f32 %v1900, 1.0
    %v1916 = vadd.f32 %v1902, 1.0
    %v1917 = vadd.f32 %v1904, 1.0
    %v1918 = vadd.f32 %v1906, 1.0
    %v1919 = vadd.f32 %v1908, 1.0
    %v1920 = vadd.f32 %v1910, 1.0
    %v1921 = vadd.f32 %v1912, 1.0
    %v1922 = vadd.f32 %v1914, 1.0
    %v1923 = vrcp.pop %v1915
    %v1924 = vmul.f32 %v1915, %v1923
    %v1925 = vsub.f32 1.0, %v1924
    %v1926 = vmul.f32 %v1923, %v1925
    %v1927 = vadd.f32 %v1923, %v1926
    %vm1928 = vweird.f32 %v1915
    %vm1929 = vweird.f32 %v1923
    %vm1930 = vmor %vm1928, %vm1929
    %v1931 = vsel %vm1930, %v1923, %v1927
    %v1932 = vand.u32 2147483647, %v1915
    %vm1933 = vcmp.eq.f32.partialorder %v1932, 8.507059e+37
    %v1934 = vand.u32 %v1915, 2147483648
    %v1935 = vor.u32 1.1754944e-38, %v1934
    %v1936 = vsel %vm1933, %v1935, %v1931
    %v1937 = vmul.f32 1.0, %v1936
    %v1938 = vrcp.pop %v1916
    %v1939 = vmul.f32 %v1916, %v1938
    %v1940 = vsub.f32 1.0, %v1939
    %v1941 = vmul.f32 %v1938, %v1940
    %v1942 = vadd.f32 %v1938, %v1941
    %vm1943 = vweird.f32 %v1916
    %vm1944 = vweird.f32 %v1938
    %vm1945 = vmor %vm1943, %vm1944
    %v1946 = vsel %vm1945, %v1938, %v1942
    %v1947 = vand.u32 2147483647, %v1916
    %vm1948 = vcmp.eq.f32.partialorder %v1947, 8.507059e+37
    %v1949 = vand.u32 %v1916, 2147483648
    %v1950 = vor.u32 1.1754944e-38, %v1949
    %v1951 = vsel %vm1948, %v1950, %v1946
    %v1952 = vmul.f32 1.0, %v1951
    %v1953 = vrcp.pop %v1917
    %v1954 = vmul.f32 %v1917, %v1953
    %v1955 = vsub.f32 1.0, %v1954
    %v1956 = vmul.f32 %v1953, %v1955
    %v1957 = vadd.f32 %v1953, %v1956
    %vm1958 = vweird.f32 %v1917
    %vm1959 = vweird.f32 %v1953
    %vm1960 = vmor %vm1958, %vm1959
    %v1961 = vsel %vm1960, %v1953, %v1957
    %v1962 = vand.u32 2147483647, %v1917
    %vm1963 = vcmp.eq.f32.partialorder %v1962, 8.507059e+37
    %v1964 = vand.u32 %v1917, 2147483648
    %v1965 = vor.u32 1.1754944e-38, %v1964
    %v1966 = vsel %vm1963, %v1965, %v1961
    %v1967 = vmul.f32 1.0, %v1966
    %v1968 = vrcp.pop %v1918
    %v1969 = vmul.f32 %v1918, %v1968
    %v1970 = vsub.f32 1.0, %v1969
    %v1971 = vmul.f32 %v1968, %v1970
    %v1972 = vadd.f32 %v1968, %v1971
    %vm1973 = vweird.f32 %v1918
    %vm1974 = vweird.f32 %v1968
    %vm1975 = vmor %vm1973, %vm1974
    %v1976 = vsel %vm1975, %v1968, %v1972
    %v1977 = vand.u32 2147483647, %v1918
    %vm1978 = vcmp.eq.f32.partialorder %v1977, 8.507059e+37
    %v1979 = vand.u32 %v1918, 2147483648
    %v1980 = vor.u32 1.1754944e-38, %v1979
    %v1981 = vsel %vm1978, %v1980, %v1976
    %v1982 = vmul.f32 1.0, %v1981
    %v1983 = vrcp.pop %v1919
    %v1984 = vmul.f32 %v1919, %v1983
    %v1985 = vsub.f32 1.0, %v1984
    %v1986 = vmul.f32 %v1983, %v1985
    %v1987 = vadd.f32 %v1983, %v1986
    %vm1988 = vweird.f32 %v1919
    %vm1989 = vweird.f32 %v1983
    %vm1990 = vmor %vm1988, %vm1989
    %v1991 = vsel %vm1990, %v1983, %v1987
    %v1992 = vand.u32 2147483647, %v1919
    %vm1993 = vcmp.eq.f32.partialorder %v1992, 8.507059e+37
    %v1994 = vand.u32 %v1919, 2147483648
    %v1995 = vor.u32 1.1754944e-38, %v1994
    %v1996 = vsel %vm1993, %v1995, %v1991
    %v1997 = vmul.f32 1.0, %v1996
    %v1998 = vrcp.pop %v1920
    %v1999 = vmul.f32 %v1920, %v1998
    %v2000 = vsub.f32 1.0, %v1999
    %v2001 = vmul.f32 %v1998, %v2000
    %v2002 = vadd.f32 %v1998, %v2001
    %vm2003 = vweird.f32 %v1920
    %vm2004 = vweird.f32 %v1998
    %vm2005 = vmor %vm2003, %vm2004
    %v2006 = vsel %vm2005, %v1998, %v2002
    %v2007 = vand.u32 2147483647, %v1920
    %vm2008 = vcmp.eq.f32.partialorder %v2007, 8.507059e+37
    %v2009 = vand.u32 %v1920, 2147483648
    %v2010 = vor.u32 1.1754944e-38, %v2009
    %v2011 = vsel %vm2008, %v2010, %v2006
    %v2012 = vmul.f32 1.0, %v2011
    %v2013 = vrcp.pop %v1921
    %v2014 = vmul.f32 %v1921, %v2013
    %v2015 = vsub.f32 1.0, %v2014
    %v2016 = vmul.f32 %v2013, %v2015
    %v2017 = vadd.f32 %v2013, %v2016
    %vm2018 = vweird.f32 %v1921
    %vm2019 = vweird.f32 %v2013
    %vm2020 = vmor %vm2018, %vm2019
    %v2021 = vsel %vm2020, %v2013, %v2017
    %v2022 = vand.u32 2147483647, %v1921
    %vm2023 = vcmp.eq.f32.partialorder %v2022, 8.507059e+37
    %v2024 = vand.u32 %v1921, 2147483648
    %v2025 = vor.u32 1.1754944e-38, %v2024
    %v2026 = vsel %vm2023, %v2025, %v2021
    %v2027 = vmul.f32 1.0, %v2026
    %v2028 = vrcp.pop %v1922
    %v2029 = vmul.f32 %v1922, %v2028
    %v2030 = vsub.f32 1.0, %v2029
    %v2031 = vmul.f32 %v2028, %v2030
    %v2032 = vadd.f32 %v2028, %v2031
    %vm2033 = vweird.f32 %v1922
    %vm2034 = vweird.f32 %v2028
    %vm2035 = vmor %vm2033, %vm2034
    %v2036 = vsel %vm2035, %v2028, %v2032
    %v2037 = vand.u32 2147483647, %v1922
    %vm2038 = vcmp.eq.f32.partialorder %v2037, 8.507059e+37
    %v2039 = vand.u32 %v1922, 2147483648
    %v2040 = vor.u32 1.1754944e-38, %v2039
    %v2041 = vsel %vm2038, %v2040, %v2036
    %v2042 = vmul.f32 1.0, %v2041
    %v2043 = vadd.f32 %v1872, %v33
    %v2044 = vadd.f32 %v1875, %v38
    %v2045 = vadd.f32 %v1878, %v43
    %v2046 = vadd.f32 %v1881, %v48
    %v2047 = vmul.f32 %v1937, %v2043
    %v2048 = vmul.f32 %v1952, %v2044
    %v2049 = vmul.f32 %v1967, %v2045
    %v2050 = vmul.f32 %v1982, %v2046
    %v2051 = vadd.f32 %v983, %v2047
    %v2052 = vadd.f32 %v984, %v2048
    %v2053 = vadd.f32 %v985, %v2049
    %v2054 = vadd.f32 %v986, %v2050
    %v2055 = vtanh.pop %v2051
    %v2056 = vtanh.pop %v2052
    %v2057 = vtanh.pop %v2053
    %v2058 = vtanh.pop %v2054
    %v2059 = vsub.f32 %v1809, %v2055
    %v2060 = vsub.f32 %v1810, %v2056
    %v2061 = vsub.f32 %v1811, %v2057
    %v2062 = vsub.f32 %v1812, %v2058
    %v2063 = vmul.f32 %v1997, %v2059
    %v2064 = vmul.f32 %v2012, %v2060
    %v2065 = vmul.f32 %v2027, %v2061
    %v2066 = vmul.f32 %v2042, %v2062
    %v2067 = vadd.f32 %v2055, %v2063
    %v2068 = vadd.f32 %v2056, %v2064
    %v2069 = vadd.f32 %v2057, %v2065
    %v2070 = vadd.f32 %v2058, %v2066
    %v2071 = vmul.f32 %v2067, %v53
    %v2072 = vmul.f32 %v2068, %v58
    %v2073 = vmul.f32 %v2069, %v63
    %v2074 = vmul.f32 %v2070, %v68
    %v2075 = vadd.f32 %v2071, %v2072
    %v2076 = vadd.f32 %v2075, %v2073
    %v2077 = vadd.f32 %v2076, %v2074
    %v2078 = vrot.slane %v2077, 4
    %v2079 = vadd.f32 %v2077, %v2078
    %v2080 = vrot.slane %v2079, 2
    %v2081 = vadd.f32 %v2079, %v2080
    %v2082 = vrot.slane %v2081, 1
    %v2083 = vadd.f32 %v2081, %v2082
    %v2084 = vadd.f32 %v2083, %v1308
    %vm2085 = vcmp.ge.f32.partialorder %v2084, 0.0
    %v2086 = vmul.f32 %v2084, 0.01
    %v2087 = vsel %vm2085, %v2084, %v2086
    %2088 = vmatpush.msra.mxu0 0.0
    %2089 = vmatpush.msra.mxu0 0.0
    %2090 = vmatpush.msra.mxu0 0.0
    %2091 = vmatpush.msra.mxu0 0.0
    %2092 = vmatpush.msra.mxu0 0.0
    %2093 = vmatpush.msra.mxu0 0.0
    %2094 = vmatpush.msra.mxu0 0.0
    %2095 = vmatpush.msra.mxu0 0.0
    %2096 = vmatpush.msra.mxu0 0.0
    %2097 = vmatpush.msra.mxu0 0.0
    %2098 = vmatpush.msra.mxu0 0.0
    %2099 = vmatpush.msra.mxu0 0.0
    %2100 = vmatpush.msra.mxu0 %v2070
    %2101 = vmatpush.msra.mxu0 %v2069
    %2102 = vmatpush.msra.mxu0 %v2068
    %2103 = vmatpush.msra.mxu0 %v2067
    %2104 = vmatmul.f32.gmra.mxu0 %v1017
    %v2105 = vpop.f32.mrf.mxu0
    %v2106 = vadd.f32 0.0, %v2105
    %2107 = vmatmul.f32.gmra.mxu0 %v1020
    %v2108 = vpop.f32.mrf.mxu0
    %v2109 = vadd.f32 0.0, %v2108
    %2110 = vmatmul.f32.gmra.mxu0 %v1023
    %v2111 = vpop.f32.mrf.mxu0
    %v2112 = vadd.f32 0.0, %v2111
    %2113 = vmatmul.f32.gmra.mxu0 %v1026
    %v2114 = vpop.f32.mrf.mxu0
    %v2115 = vadd.f32 0.0, %v2114
    %2116 = vmatmul.f32.gmra.mxu0 %v1029
    %v2117 = vpop.f32.mrf.mxu0
    %v2118 = vadd.f32 0.0, %v2117
    %2119 = vmatmul.f32.gmra.mxu0 %v1032
    %v2120 = vpop.f32.mrf.mxu0
    %v2121 = vadd.f32 0.0, %v2120
    %2122 = vmatmul.f32.gmra.mxu0 %v1035
    %v2123 = vpop.f32.mrf.mxu0
    %v2124 = vadd.f32 0.0, %v2123
    %2125 = vmatmul.f32.gmra.mxu0 %v1038
    %v2126 = vpop.f32.mrf.mxu0
    %v2127 = vadd.f32 0.0, %v2126
    %2128 = vmatmul.f32.gmra.mxu0 %v1041
    %v2129 = vpop.f32.mrf.mxu0
    %v2130 = vadd.f32 0.0, %v2129
    %2131 = vmatmul.f32.gmra.mxu0 %v1044
    %v2132 = vpop.f32.mrf.mxu0
    %v2133 = vadd.f32 0.0, %v2132
    %2134 = vmatmul.f32.gmra.mxu0 %v1047
    %v2135 = vpop.f32.mrf.mxu0
    %v2136 = vadd.f32 0.0, %v2135
    %2137 = vmatmul.f32.gmra.mxu0 %v1050
    %v2138 = vpop.f32.mrf.mxu0
    %v2139 = vadd.f32 0.0, %v2138
    %2140 = vdwg.mxu0
    %v2141 = vadd.f32 %v871, %v2106
    %v2142 = vadd.f32 %v872, %v2109
    %v2143 = vadd.f32 %v873, %v2112
    %v2144 = vadd.f32 %v874, %v2115
    %v2145 = vadd.f32 %v875, %v2118
    %v2146 = vadd.f32 %v876, %v2121
    %v2147 = vadd.f32 %v877, %v2124
    %v2148 = vadd.f32 %v878, %v2127
    %v2149 = vxor.u32 %v2141, 2147483648
    %v2150 = vxor.u32 %v2142, 2147483648
    %v2151 = vxor.u32 %v2143, 2147483648
    %v2152 = vxor.u32 %v2144, 2147483648
    %v2153 = vxor.u32 %v2145, 2147483648
    %v2154 = vxor.u32 %v2146, 2147483648
    %v2155 = vxor.u32 %v2147, 2147483648
    %v2156 = vxor.u32 %v2148, 2147483648
    %v2157 = vmul.f32 %v2149, 1.442695
    %v2158 = vpow.pop %v2157
    %v2159 = vmul.f32 %v2150, 1.442695
    %v2160 = vpow.pop %v2159
    %v2161 = vmul.f32 %v2151, 1.442695
    %v2162 = vpow.pop %v2161
    %v2163 = vmul.f32 %v2152, 1.442695
    %v2164 = vpow.pop %v2163
    %v2165 = vmul.f32 %v2153, 1.442695
    %v2166 = vpow.pop %v2165
    %v2167 = vmul.f32 %v2154, 1.442695
    %v2168 = vpow.pop %v2167
    %v2169 = vmul.f32 %v2155, 1.442695
    %v2170 = vpow.pop %v2169
    %v2171 = vmul.f32 %v2156, 1.442695
    %v2172 = vpow.pop %v2171
    %v2173 = vadd.f32 %v2158, 1.0
    %v2174 = vadd.f32 %v2160, 1.0
    %v2175 = vadd.f32 %v2162, 1.0
    %v2176 = vadd.f32 %v2164, 1.0
    %v2177 = vadd.f32 %v2166, 1.0
    %v2178 = vadd.f32 %v2168, 1.0
    %v2179 = vadd.f32 %v2170, 1.0
    %v2180 = vadd.f32 %v2172, 1.0
    %v2181 = vrcp.pop %v2173
    %v2182 = vmul.f32 %v2173, %v2181
    %v2183 = vsub.f32 1.0, %v2182
    %v2184 = vmul.f32 %v2181, %v2183
    %v2185 = vadd.f32 %v2181, %v2184
    %vm2186 = vweird.f32 %v2173
    %vm2187 = vweird.f32 %v2181
    %vm2188 = vmor %vm2186, %vm2187
    %v2189 = vsel %vm2188, %v2181, %v2185
    %v2190 = vand.u32 2147483647, %v2173
    %vm2191 = vcmp.eq.f32.partialorder %v2190, 8.507059e+37
    %v2192 = vand.u32 %v2173, 2147483648
    %v2193 = vor.u32 1.1754944e-38, %v2192
    %v2194 = vsel %vm2191, %v2193, %v2189
    %v2195 = vmul.f32 1.0, %v2194
    %v2196 = vrcp.pop %v2174
    %v2197 = vmul.f32 %v2174, %v2196
    %v2198 = vsub.f32 1.0, %v2197
    %v2199 = vmul.f32 %v2196, %v2198
    %v2200 = vadd.f32 %v2196, %v2199
    %vm2201 = vweird.f32 %v2174
    %vm2202 = vweird.f32 %v2196
    %vm2203 = vmor %vm2201, %vm2202
    %v2204 = vsel %vm2203, %v2196, %v2200
    %v2205 = vand.u32 2147483647, %v2174
    %vm2206 = vcmp.eq.f32.partialorder %v2205, 8.507059e+37
    %v2207 = vand.u32 %v2174, 2147483648
    %v2208 = vor.u32 1.1754944e-38, %v2207
    %v2209 = vsel %vm2206, %v2208, %v2204
    %v2210 = vmul.f32 1.0, %v2209
    %v2211 = vrcp.pop %v2175
    %v2212 = vmul.f32 %v2175, %v2211
    %v2213 = vsub.f32 1.0, %v2212
    %v2214 = vmul.f32 %v2211, %v2213
    %v2215 = vadd.f32 %v2211, %v2214
    %vm2216 = vweird.f32 %v2175
    %vm2217 = vweird.f32 %v2211
    %vm2218 = vmor %vm2216, %vm2217
    %v2219 = vsel %vm2218, %v2211, %v2215
    %v2220 = vand.u32 2147483647, %v2175
    %vm2221 = vcmp.eq.f32.partialorder %v2220, 8.507059e+37
    %v2222 = vand.u32 %v2175, 2147483648
    %v2223 = vor.u32 1.1754944e-38, %v2222
    %v2224 = vsel %vm2221, %v2223, %v2219
    %v2225 = vmul.f32 1.0, %v2224
    %v2226 = vrcp.pop %v2176
    %v2227 = vmul.f32 %v2176, %v2226
    %v2228 = vsub.f32 1.0, %v2227
    %v2229 = vmul.f32 %v2226, %v2228
    %v2230 = vadd.f32 %v2226, %v2229
    %vm2231 = vweird.f32 %v2176
    %vm2232 = vweird.f32 %v2226
    %vm2233 = vmor %vm2231, %vm2232
    %v2234 = vsel %vm2233, %v2226, %v2230
    %v2235 = vand.u32 2147483647, %v2176
    %vm2236 = vcmp.eq.f32.partialorder %v2235, 8.507059e+37
    %v2237 = vand.u32 %v2176, 2147483648
    %v2238 = vor.u32 1.1754944e-38, %v2237
    %v2239 = vsel %vm2236, %v2238, %v2234
    %v2240 = vmul.f32 1.0, %v2239
    %v2241 = vrcp.pop %v2177
    %v2242 = vmul.f32 %v2177, %v2241
    %v2243 = vsub.f32 1.0, %v2242
    %v2244 = vmul.f32 %v2241, %v2243
    %v2245 = vadd.f32 %v2241, %v2244
    %vm2246 = vweird.f32 %v2177
    %vm2247 = vweird.f32 %v2241
    %vm2248 = vmor %vm2246, %vm2247
    %v2249 = vsel %vm2248, %v2241, %v2245
    %v2250 = vand.u32 2147483647, %v2177
    %vm2251 = vcmp.eq.f32.partialorder %v2250, 8.507059e+37
    %v2252 = vand.u32 %v2177, 2147483648
    %v2253 = vor.u32 1.1754944e-38, %v2252
    %v2254 = vsel %vm2251, %v2253, %v2249
    %v2255 = vmul.f32 1.0, %v2254
    %v2256 = vrcp.pop %v2178
    %v2257 = vmul.f32 %v2178, %v2256
    %v2258 = vsub.f32 1.0, %v2257
    %v2259 = vmul.f32 %v2256, %v2258
    %v2260 = vadd.f32 %v2256, %v2259
    %vm2261 = vweird.f32 %v2178
    %vm2262 = vweird.f32 %v2256
    %vm2263 = vmor %vm2261, %vm2262
    %v2264 = vsel %vm2263, %v2256, %v2260
    %v2265 = vand.u32 2147483647, %v2178
    %vm2266 = vcmp.eq.f32.partialorder %v2265, 8.507059e+37
    %v2267 = vand.u32 %v2178, 2147483648
    %v2268 = vor.u32 1.1754944e-38, %v2267
    %v2269 = vsel %vm2266, %v2268, %v2264
    %v2270 = vmul.f32 1.0, %v2269
    %v2271 = vrcp.pop %v2179
    %v2272 = vmul.f32 %v2179, %v2271
    %v2273 = vsub.f32 1.0, %v2272
    %v2274 = vmul.f32 %v2271, %v2273
    %v2275 = vadd.f32 %v2271, %v2274
    %vm2276 = vweird.f32 %v2179
    %vm2277 = vweird.f32 %v2271
    %vm2278 = vmor %vm2276, %vm2277
    %v2279 = vsel %vm2278, %v2271, %v2275
    %v2280 = vand.u32 2147483647, %v2179
    %vm2281 = vcmp.eq.f32.partialorder %v2280, 8.507059e+37
    %v2282 = vand.u32 %v2179, 2147483648
    %v2283 = vor.u32 1.1754944e-38, %v2282
    %v2284 = vsel %vm2281, %v2283, %v2279
    %v2285 = vmul.f32 1.0, %v2284
    %v2286 = vrcp.pop %v2180
    %v2287 = vmul.f32 %v2180, %v2286
    %v2288 = vsub.f32 1.0, %v2287
    %v2289 = vmul.f32 %v2286, %v2288
    %v2290 = vadd.f32 %v2286, %v2289
    %vm2291 = vweird.f32 %v2180
    %vm2292 = vweird.f32 %v2286
    %vm2293 = vmor %vm2291, %vm2292
    %v2294 = vsel %vm2293, %v2286, %v2290
    %v2295 = vand.u32 2147483647, %v2180
    %vm2296 = vcmp.eq.f32.partialorder %v2295, 8.507059e+37
    %v2297 = vand.u32 %v2180, 2147483648
    %v2298 = vor.u32 1.1754944e-38, %v2297
    %v2299 = vsel %vm2296, %v2298, %v2294
    %v2300 = vmul.f32 1.0, %v2299
    %v2301 = vadd.f32 %v2130, %v33
    %v2302 = vadd.f32 %v2133, %v38
    %v2303 = vadd.f32 %v2136, %v43
    %v2304 = vadd.f32 %v2139, %v48
    %v2305 = vmul.f32 %v2195, %v2301
    %v2306 = vmul.f32 %v2210, %v2302
    %v2307 = vmul.f32 %v2225, %v2303
    %v2308 = vmul.f32 %v2240, %v2304
    %v2309 = vadd.f32 %v987, %v2305
    %v2310 = vadd.f32 %v988, %v2306
    %v2311 = vadd.f32 %v989, %v2307
    %v2312 = vadd.f32 %v990, %v2308
    %v2313 = vtanh.pop %v2309
    %v2314 = vtanh.pop %v2310
    %v2315 = vtanh.pop %v2311
    %v2316 = vtanh.pop %v2312
    %v2317 = vsub.f32 %v2067, %v2313
    %v2318 = vsub.f32 %v2068, %v2314
    %v2319 = vsub.f32 %v2069, %v2315
    %v2320 = vsub.f32 %v2070, %v2316
    %v2321 = vmul.f32 %v2255, %v2317
    %v2322 = vmul.f32 %v2270, %v2318
    %v2323 = vmul.f32 %v2285, %v2319
    %v2324 = vmul.f32 %v2300, %v2320
    %v2325 = vadd.f32 %v2313, %v2321
    %v2326 = vadd.f32 %v2314, %v2322
    %v2327 = vadd.f32 %v2315, %v2323
    %v2328 = vadd.f32 %v2316, %v2324
    %v2329 = vmul.f32 %v2325, %v53
    %v2330 = vmul.f32 %v2326, %v58
    %v2331 = vmul.f32 %v2327, %v63
    %v2332 = vmul.f32 %v2328, %v68
    %v2333 = vadd.f32 %v2329, %v2330
    %v2334 = vadd.f32 %v2333, %v2331
    %v2335 = vadd.f32 %v2334, %v2332
    %v2336 = vrot.slane %v2335, 4
    %v2337 = vadd.f32 %v2335, %v2336
    %v2338 = vrot.slane %v2337, 2
    %v2339 = vadd.f32 %v2337, %v2338
    %v2340 = vrot.slane %v2339, 1
    %v2341 = vadd.f32 %v2339, %v2340
    %v2342 = vadd.f32 %v2341, %v1308
    %vm2343 = vcmp.ge.f32.partialorder %v2342, 0.0
    %v2344 = vmul.f32 %v2342, 0.01
    %v2345 = vsel %vm2343, %v2342, %v2344
    %2346 = vmatpush.msra.mxu0 0.0
    %2347 = vmatpush.msra.mxu0 0.0
    %2348 = vmatpush.msra.mxu0 0.0
    %2349 = vmatpush.msra.mxu0 0.0
    %2350 = vmatpush.msra.mxu0 0.0
    %2351 = vmatpush.msra.mxu0 0.0
    %2352 = vmatpush.msra.mxu0 0.0
    %2353 = vmatpush.msra.mxu0 0.0
    %2354 = vmatpush.msra.mxu0 0.0
    %2355 = vmatpush.msra.mxu0 0.0
    %2356 = vmatpush.msra.mxu0 0.0
    %2357 = vmatpush.msra.mxu0 0.0
    %2358 = vmatpush.msra.mxu0 %v2328
    %2359 = vmatpush.msra.mxu0 %v2327
    %2360 = vmatpush.msra.mxu0 %v2326
    %2361 = vmatpush.msra.mxu0 %v2325
    %2362 = vmatmul.f32.gmra.mxu0 %v1017
    %v2363 = vpop.f32.mrf.mxu0
    %v2364 = vadd.f32 0.0, %v2363
    %2365 = vmatmul.f32.gmra.mxu0 %v1020
    %v2366 = vpop.f32.mrf.mxu0
    %v2367 = vadd.f32 0.0, %v2366
    %2368 = vmatmul.f32.gmra.mxu0 %v1023
    %v2369 = vpop.f32.mrf.mxu0
    %v2370 = vadd.f32 0.0, %v2369
    %2371 = vmatmul.f32.gmra.mxu0 %v1026
    %v2372 = vpop.f32.mrf.mxu0
    %v2373 = vadd.f32 0.0, %v2372
    %2374 = vmatmul.f32.gmra.mxu0 %v1029
    %v2375 = vpop.f32.mrf.mxu0
    %v2376 = vadd.f32 0.0, %v2375
    %2377 = vmatmul.f32.gmra.mxu0 %v1032
    %v2378 = vpop.f32.mrf.mxu0
    %v2379 = vadd.f32 0.0, %v2378
    %2380 = vmatmul.f32.gmra.mxu0 %v1035
    %v2381 = vpop.f32.mrf.mxu0
    %v2382 = vadd.f32 0.0, %v2381
    %2383 = vmatmul.f32.gmra.mxu0 %v1038
    %v2384 = vpop.f32.mrf.mxu0
    %v2385 = vadd.f32 0.0, %v2384
    %2386 = vmatmul.f32.gmra.mxu0 %v1041
    %v2387 = vpop.f32.mrf.mxu0
    %v2388 = vadd.f32 0.0, %v2387
    %2389 = vmatmul.f32.gmra.mxu0 %v1044
    %v2390 = vpop.f32.mrf.mxu0
    %v2391 = vadd.f32 0.0, %v2390
    %2392 = vmatmul.f32.gmra.mxu0 %v1047
    %v2393 = vpop.f32.mrf.mxu0
    %v2394 = vadd.f32 0.0, %v2393
    %2395 = vmatmul.f32.gmra.mxu0 %v1050
    %v2396 = vpop.f32.mrf.mxu0
    %v2397 = vadd.f32 0.0, %v2396
    %2398 = vdwg.mxu0
    %v2399 = vadd.f32 %v879, %v2364
    %v2400 = vadd.f32 %v880, %v2367
    %v2401 = vadd.f32 %v881, %v2370
    %v2402 = vadd.f32 %v882, %v2373
    %v2403 = vadd.f32 %v883, %v2376
    %v2404 = vadd.f32 %v884, %v2379
    %v2405 = vadd.f32 %v885, %v2382
    %v2406 = vadd.f32 %v886, %v2385
    %v2407 = vxor.u32 %v2399, 2147483648
    %v2408 = vxor.u32 %v2400, 2147483648
    %v2409 = vxor.u32 %v2401, 2147483648
    %v2410 = vxor.u32 %v2402, 2147483648
    %v2411 = vxor.u32 %v2403, 2147483648
    %v2412 = vxor.u32 %v2404, 2147483648
    %v2413 = vxor.u32 %v2405, 2147483648
    %v2414 = vxor.u32 %v2406, 2147483648
    %v2415 = vmul.f32 %v2407, 1.442695
    %v2416 = vpow.pop %v2415
    %v2417 = vmul.f32 %v2408, 1.442695
    %v2418 = vpow.pop %v2417
    %v2419 = vmul.f32 %v2409, 1.442695
    %v2420 = vpow.pop %v2419
    %v2421 = vmul.f32 %v2410, 1.442695
    %v2422 = vpow.pop %v2421
    %v2423 = vmul.f32 %v2411, 1.442695
    %v2424 = vpow.pop %v2423
    %v2425 = vmul.f32 %v2412, 1.442695
    %v2426 = vpow.pop %v2425
    %v2427 = vmul.f32 %v2413, 1.442695
    %v2428 = vpow.pop %v2427
    %v2429 = vmul.f32 %v2414, 1.442695
    %v2430 = vpow.pop %v2429
    %v2431 = vadd.f32 %v2416, 1.0
    %v2432 = vadd.f32 %v2418, 1.0
    %v2433 = vadd.f32 %v2420, 1.0
    %v2434 = vadd.f32 %v2422, 1.0
    %v2435 = vadd.f32 %v2424, 1.0
    %v2436 = vadd.f32 %v2426, 1.0
    %v2437 = vadd.f32 %v2428, 1.0
    %v2438 = vadd.f32 %v2430, 1.0
    %v2439 = vrcp.pop %v2431
    %v2440 = vmul.f32 %v2431, %v2439
    %v2441 = vsub.f32 1.0, %v2440
    %v2442 = vmul.f32 %v2439, %v2441
    %v2443 = vadd.f32 %v2439, %v2442
    %vm2444 = vweird.f32 %v2431
    %vm2445 = vweird.f32 %v2439
    %vm2446 = vmor %vm2444, %vm2445
    %v2447 = vsel %vm2446, %v2439, %v2443
    %v2448 = vand.u32 2147483647, %v2431
    %vm2449 = vcmp.eq.f32.partialorder %v2448, 8.507059e+37
    %v2450 = vand.u32 %v2431, 2147483648
    %v2451 = vor.u32 1.1754944e-38, %v2450
    %v2452 = vsel %vm2449, %v2451, %v2447
    %v2453 = vmul.f32 1.0, %v2452
    %v2454 = vrcp.pop %v2432
    %v2455 = vmul.f32 %v2432, %v2454
    %v2456 = vsub.f32 1.0, %v2455
    %v2457 = vmul.f32 %v2454, %v2456
    %v2458 = vadd.f32 %v2454, %v2457
    %vm2459 = vweird.f32 %v2432
    %vm2460 = vweird.f32 %v2454
    %vm2461 = vmor %vm2459, %vm2460
    %v2462 = vsel %vm2461, %v2454, %v2458
    %v2463 = vand.u32 2147483647, %v2432
    %vm2464 = vcmp.eq.f32.partialorder %v2463, 8.507059e+37
    %v2465 = vand.u32 %v2432, 2147483648
    %v2466 = vor.u32 1.1754944e-38, %v2465
    %v2467 = vsel %vm2464, %v2466, %v2462
    %v2468 = vmul.f32 1.0, %v2467
    %v2469 = vrcp.pop %v2433
    %v2470 = vmul.f32 %v2433, %v2469
    %v2471 = vsub.f32 1.0, %v2470
    %v2472 = vmul.f32 %v2469, %v2471
    %v2473 = vadd.f32 %v2469, %v2472
    %vm2474 = vweird.f32 %v2433
    %vm2475 = vweird.f32 %v2469
    %vm2476 = vmor %vm2474, %vm2475
    %v2477 = vsel %vm2476, %v2469, %v2473
    %v2478 = vand.u32 2147483647, %v2433
    %vm2479 = vcmp.eq.f32.partialorder %v2478, 8.507059e+37
    %v2480 = vand.u32 %v2433, 2147483648
    %v2481 = vor.u32 1.1754944e-38, %v2480
    %v2482 = vsel %vm2479, %v2481, %v2477
    %v2483 = vmul.f32 1.0, %v2482
    %v2484 = vrcp.pop %v2434
    %v2485 = vmul.f32 %v2434, %v2484
    %v2486 = vsub.f32 1.0, %v2485
    %v2487 = vmul.f32 %v2484, %v2486
    %v2488 = vadd.f32 %v2484, %v2487
    %vm2489 = vweird.f32 %v2434
    %vm2490 = vweird.f32 %v2484
    %vm2491 = vmor %vm2489, %vm2490
    %v2492 = vsel %vm2491, %v2484, %v2488
    %v2493 = vand.u32 2147483647, %v2434
    %vm2494 = vcmp.eq.f32.partialorder %v2493, 8.507059e+37
    %v2495 = vand.u32 %v2434, 2147483648
    %v2496 = vor.u32 1.1754944e-38, %v2495
    %v2497 = vsel %vm2494, %v2496, %v2492
    %v2498 = vmul.f32 1.0, %v2497
    %v2499 = vrcp.pop %v2435
    %v2500 = vmul.f32 %v2435, %v2499
    %v2501 = vsub.f32 1.0, %v2500
    %v2502 = vmul.f32 %v2499, %v2501
    %v2503 = vadd.f32 %v2499, %v2502
    %vm2504 = vweird.f32 %v2435
    %vm2505 = vweird.f32 %v2499
    %vm2506 = vmor %vm2504, %vm2505
    %v2507 = vsel %vm2506, %v2499, %v2503
    %v2508 = vand.u32 2147483647, %v2435
    %vm2509 = vcmp.eq.f32.partialorder %v2508, 8.507059e+37
    %v2510 = vand.u32 %v2435, 2147483648
    %v2511 = vor.u32 1.1754944e-38, %v2510
    %v2512 = vsel %vm2509, %v2511, %v2507
    %v2513 = vmul.f32 1.0, %v2512
    %v2514 = vrcp.pop %v2436
    %v2515 = vmul.f32 %v2436, %v2514
    %v2516 = vsub.f32 1.0, %v2515
    %v2517 = vmul.f32 %v2514, %v2516
    %v2518 = vadd.f32 %v2514, %v2517
    %vm2519 = vweird.f32 %v2436
    %vm2520 = vweird.f32 %v2514
    %vm2521 = vmor %vm2519, %vm2520
    %v2522 = vsel %vm2521, %v2514, %v2518
    %v2523 = vand.u32 2147483647, %v2436
    %vm2524 = vcmp.eq.f32.partialorder %v2523, 8.507059e+37
    %v2525 = vand.u32 %v2436, 2147483648
    %v2526 = vor.u32 1.1754944e-38, %v2525
    %v2527 = vsel %vm2524, %v2526, %v2522
    %v2528 = vmul.f32 1.0, %v2527
    %v2529 = vrcp.pop %v2437
    %v2530 = vmul.f32 %v2437, %v2529
    %v2531 = vsub.f32 1.0, %v2530
    %v2532 = vmul.f32 %v2529, %v2531
    %v2533 = vadd.f32 %v2529, %v2532
    %vm2534 = vweird.f32 %v2437
    %vm2535 = vweird.f32 %v2529
    %vm2536 = vmor %vm2534, %vm2535
    %v2537 = vsel %vm2536, %v2529, %v2533
    %v2538 = vand.u32 2147483647, %v2437
    %vm2539 = vcmp.eq.f32.partialorder %v2538, 8.507059e+37
    %v2540 = vand.u32 %v2437, 2147483648
    %v2541 = vor.u32 1.1754944e-38, %v2540
    %v2542 = vsel %vm2539, %v2541, %v2537
    %v2543 = vmul.f32 1.0, %v2542
    %v2544 = vrcp.pop %v2438
    %v2545 = vmul.f32 %v2438, %v2544
    %v2546 = vsub.f32 1.0, %v2545
    %v2547 = vmul.f32 %v2544, %v2546
    %v2548 = vadd.f32 %v2544, %v2547
    %vm2549 = vweird.f32 %v2438
    %vm2550 = vweird.f32 %v2544
    %vm2551 = vmor %vm2549, %vm2550
    %v2552 = vsel %vm2551, %v2544, %v2548
    %v2553 = vand.u32 2147483647, %v2438
    %vm2554 = vcmp.eq.f32.partialorder %v2553, 8.507059e+37
    %v2555 = vand.u32 %v2438, 2147483648
    %v2556 = vor.u32 1.1754944e-38, %v2555
    %v2557 = vsel %vm2554, %v2556, %v2552
    %v2558 = vmul.f32 1.0, %v2557
    %v2559 = vadd.f32 %v2388, %v33
    %v2560 = vadd.f32 %v2391, %v38
    %v2561 = vadd.f32 %v2394, %v43
    %v2562 = vadd.f32 %v2397, %v48
    %v2563 = vmul.f32 %v2453, %v2559
    %v2564 = vmul.f32 %v2468, %v2560
    %v2565 = vmul.f32 %v2483, %v2561
    %v2566 = vmul.f32 %v2498, %v2562
    %v2567 = vadd.f32 %v991, %v2563
    %v2568 = vadd.f32 %v992, %v2564
    %v2569 = vadd.f32 %v993, %v2565
    %v2570 = vadd.f32 %v994, %v2566
    %v2571 = vtanh.pop %v2567
    %v2572 = vtanh.pop %v2568
    %v2573 = vtanh.pop %v2569
    %v2574 = vtanh.pop %v2570
    %v2575 = vsub.f32 %v2325, %v2571
    %v2576 = vsub.f32 %v2326, %v2572
    %v2577 = vsub.f32 %v2327, %v2573
    %v2578 = vsub.f32 %v2328, %v2574
    %v2579 = vmul.f32 %v2513, %v2575
    %v2580 = vmul.f32 %v2528, %v2576
    %v2581 = vmul.f32 %v2543, %v2577
    %v2582 = vmul.f32 %v2558, %v2578
    %v2583 = vadd.f32 %v2571, %v2579
    %v2584 = vadd.f32 %v2572, %v2580
    %v2585 = vadd.f32 %v2573, %v2581
    %v2586 = vadd.f32 %v2574, %v2582
    %v2587 = vmul.f32 %v2583, %v53
    %v2588 = vmul.f32 %v2584, %v58
    %v2589 = vmul.f32 %v2585, %v63
    %v2590 = vmul.f32 %v2586, %v68
    %v2591 = vadd.f32 %v2587, %v2588
    %v2592 = vadd.f32 %v2591, %v2589
    %v2593 = vadd.f32 %v2592, %v2590
    %v2594 = vrot.slane %v2593, 4
    %v2595 = vadd.f32 %v2593, %v2594
    %v2596 = vrot.slane %v2595, 2
    %v2597 = vadd.f32 %v2595, %v2596
    %v2598 = vrot.slane %v2597, 1
    %v2599 = vadd.f32 %v2597, %v2598
    %v2600 = vadd.f32 %v2599, %v1308
    %vm2601 = vcmp.ge.f32.partialorder %v2600, 0.0
    %v2602 = vmul.f32 %v2600, 0.01
    %v2603 = vsel %vm2601, %v2600, %v2602
    %2604 = vmatpush.msra.mxu0 0.0
    %2605 = vmatpush.msra.mxu0 0.0
    %2606 = vmatpush.msra.mxu0 0.0
    %2607 = vmatpush.msra.mxu0 0.0
    %2608 = vmatpush.msra.mxu0 0.0
    %2609 = vmatpush.msra.mxu0 0.0
    %2610 = vmatpush.msra.mxu0 0.0
    %2611 = vmatpush.msra.mxu0 0.0
    %2612 = vmatpush.msra.mxu0 0.0
    %2613 = vmatpush.msra.mxu0 0.0
    %2614 = vmatpush.msra.mxu0 0.0
    %2615 = vmatpush.msra.mxu0 0.0
    %2616 = vmatpush.msra.mxu0 %v2586
    %2617 = vmatpush.msra.mxu0 %v2585
    %2618 = vmatpush.msra.mxu0 %v2584
    %2619 = vmatpush.msra.mxu0 %v2583
    %2620 = vmatmul.f32.gmra.mxu0 %v1017
    %v2621 = vpop.f32.mrf.mxu0
    %v2622 = vadd.f32 0.0, %v2621
    %2623 = vmatmul.f32.gmra.mxu0 %v1020
    %v2624 = vpop.f32.mrf.mxu0
    %v2625 = vadd.f32 0.0, %v2624
    %2626 = vmatmul.f32.gmra.mxu0 %v1023
    %v2627 = vpop.f32.mrf.mxu0
    %v2628 = vadd.f32 0.0, %v2627
    %2629 = vmatmul.f32.gmra.mxu0 %v1026
    %v2630 = vpop.f32.mrf.mxu0
    %v2631 = vadd.f32 0.0, %v2630
    %2632 = vmatmul.f32.gmra.mxu0 %v1029
    %v2633 = vpop.f32.mrf.mxu0
    %v2634 = vadd.f32 0.0, %v2633
    %2635 = vmatmul.f32.gmra.mxu0 %v1032
    %v2636 = vpop.f32.mrf.mxu0
    %v2637 = vadd.f32 0.0, %v2636
    %2638 = vmatmul.f32.gmra.mxu0 %v1035
    %v2639 = vpop.f32.mrf.mxu0
    %v2640 = vadd.f32 0.0, %v2639
    %2641 = vmatmul.f32.gmra.mxu0 %v1038
    %v2642 = vpop.f32.mrf.mxu0
    %v2643 = vadd.f32 0.0, %v2642
    %2644 = vmatmul.f32.gmra.mxu0 %v1041
    %v2645 = vpop.f32.mrf.mxu0
    %v2646 = vadd.f32 0.0, %v2645
    %2647 = vmatmul.f32.gmra.mxu0 %v1044
    %v2648 = vpop.f32.mrf.mxu0
    %v2649 = vadd.f32 0.0, %v2648
    %2650 = vmatmul.f32.gmra.mxu0 %v1047
    %v2651 = vpop.f32.mrf.mxu0
    %v2652 = vadd.f32 0.0, %v2651
    %2653 = vmatmul.f32.gmra.mxu0 %v1050
    %v2654 = vpop.f32.mrf.mxu0
    %v2655 = vadd.f32 0.0, %v2654
    %2656 = vdwg.mxu0
    %v2657 = vadd.f32 %v887, %v2622
    %v2658 = vadd.f32 %v888, %v2625
    %v2659 = vadd.f32 %v889, %v2628
    %v2660 = vadd.f32 %v890, %v2631
    %v2661 = vadd.f32 %v891, %v2634
    %v2662 = vadd.f32 %v892, %v2637
    %v2663 = vadd.f32 %v893, %v2640
    %v2664 = vadd.f32 %v894, %v2643
    %v2665 = vxor.u32 %v2657, 2147483648
    %v2666 = vxor.u32 %v2658, 2147483648
    %v2667 = vxor.u32 %v2659, 2147483648
    %v2668 = vxor.u32 %v2660, 2147483648
    %v2669 = vxor.u32 %v2661, 2147483648
    %v2670 = vxor.u32 %v2662, 2147483648
    %v2671 = vxor.u32 %v2663, 2147483648
    %v2672 = vxor.u32 %v2664, 2147483648
    %v2673 = vmul.f32 %v2665, 1.442695
    %v2674 = vpow.pop %v2673
    %v2675 = vmul.f32 %v2666, 1.442695
    %v2676 = vpow.pop %v2675
    %v2677 = vmul.f32 %v2667, 1.442695
    %v2678 = vpow.pop %v2677
    %v2679 = vmul.f32 %v2668, 1.442695
    %v2680 = vpow.pop %v2679
    %v2681 = vmul.f32 %v2669, 1.442695
    %v2682 = vpow.pop %v2681
    %v2683 = vmul.f32 %v2670, 1.442695
    %v2684 = vpow.pop %v2683
    %v2685 = vmul.f32 %v2671, 1.442695
    %v2686 = vpow.pop %v2685
    %v2687 = vmul.f32 %v2672, 1.442695
    %v2688 = vpow.pop %v2687
    %v2689 = vadd.f32 %v2674, 1.0
    %v2690 = vadd.f32 %v2676, 1.0
    %v2691 = vadd.f32 %v2678, 1.0
    %v2692 = vadd.f32 %v2680, 1.0
    %v2693 = vadd.f32 %v2682, 1.0
    %v2694 = vadd.f32 %v2684, 1.0
    %v2695 = vadd.f32 %v2686, 1.0
    %v2696 = vadd.f32 %v2688, 1.0
    %v2697 = vrcp.pop %v2689
    %v2698 = vmul.f32 %v2689, %v2697
    %v2699 = vsub.f32 1.0, %v2698
    %v2700 = vmul.f32 %v2697, %v2699
    %v2701 = vadd.f32 %v2697, %v2700
    %vm2702 = vweird.f32 %v2689
    %vm2703 = vweird.f32 %v2697
    %vm2704 = vmor %vm2702, %vm2703
    %v2705 = vsel %vm2704, %v2697, %v2701
    %v2706 = vand.u32 2147483647, %v2689
    %vm2707 = vcmp.eq.f32.partialorder %v2706, 8.507059e+37
    %v2708 = vand.u32 %v2689, 2147483648
    %v2709 = vor.u32 1.1754944e-38, %v2708
    %v2710 = vsel %vm2707, %v2709, %v2705
    %v2711 = vmul.f32 1.0, %v2710
    %v2712 = vrcp.pop %v2690
    %v2713 = vmul.f32 %v2690, %v2712
    %v2714 = vsub.f32 1.0, %v2713
    %v2715 = vmul.f32 %v2712, %v2714
    %v2716 = vadd.f32 %v2712, %v2715
    %vm2717 = vweird.f32 %v2690
    %vm2718 = vweird.f32 %v2712
    %vm2719 = vmor %vm2717, %vm2718
    %v2720 = vsel %vm2719, %v2712, %v2716
    %v2721 = vand.u32 2147483647, %v2690
    %vm2722 = vcmp.eq.f32.partialorder %v2721, 8.507059e+37
    %v2723 = vand.u32 %v2690, 2147483648
    %v2724 = vor.u32 1.1754944e-38, %v2723
    %v2725 = vsel %vm2722, %v2724, %v2720
    %v2726 = vmul.f32 1.0, %v2725
    %v2727 = vrcp.pop %v2691
    %v2728 = vmul.f32 %v2691, %v2727
    %v2729 = vsub.f32 1.0, %v2728
    %v2730 = vmul.f32 %v2727, %v2729
    %v2731 = vadd.f32 %v2727, %v2730
    %vm2732 = vweird.f32 %v2691
    %vm2733 = vweird.f32 %v2727
    %vm2734 = vmor %vm2732, %vm2733
    %v2735 = vsel %vm2734, %v2727, %v2731
    %v2736 = vand.u32 2147483647, %v2691
    %vm2737 = vcmp.eq.f32.partialorder %v2736, 8.507059e+37
    %v2738 = vand.u32 %v2691, 2147483648
    %v2739 = vor.u32 1.1754944e-38, %v2738
    %v2740 = vsel %vm2737, %v2739, %v2735
    %v2741 = vmul.f32 1.0, %v2740
    %v2742 = vrcp.pop %v2692
    %v2743 = vmul.f32 %v2692, %v2742
    %v2744 = vsub.f32 1.0, %v2743
    %v2745 = vmul.f32 %v2742, %v2744
    %v2746 = vadd.f32 %v2742, %v2745
    %vm2747 = vweird.f32 %v2692
    %vm2748 = vweird.f32 %v2742
    %vm2749 = vmor %vm2747, %vm2748
    %v2750 = vsel %vm2749, %v2742, %v2746
    %v2751 = vand.u32 2147483647, %v2692
    %vm2752 = vcmp.eq.f32.partialorder %v2751, 8.507059e+37
    %v2753 = vand.u32 %v2692, 2147483648
    %v2754 = vor.u32 1.1754944e-38, %v2753
    %v2755 = vsel %vm2752, %v2754, %v2750
    %v2756 = vmul.f32 1.0, %v2755
    %v2757 = vrcp.pop %v2693
    %v2758 = vmul.f32 %v2693, %v2757
    %v2759 = vsub.f32 1.0, %v2758
    %v2760 = vmul.f32 %v2757, %v2759
    %v2761 = vadd.f32 %v2757, %v2760
    %vm2762 = vweird.f32 %v2693
    %vm2763 = vweird.f32 %v2757
    %vm2764 = vmor %vm2762, %vm2763
    %v2765 = vsel %vm2764, %v2757, %v2761
    %v2766 = vand.u32 2147483647, %v2693
    %vm2767 = vcmp.eq.f32.partialorder %v2766, 8.507059e+37
    %v2768 = vand.u32 %v2693, 2147483648
    %v2769 = vor.u32 1.1754944e-38, %v2768
    %v2770 = vsel %vm2767, %v2769, %v2765
    %v2771 = vmul.f32 1.0, %v2770
    %v2772 = vrcp.pop %v2694
    %v2773 = vmul.f32 %v2694, %v2772
    %v2774 = vsub.f32 1.0, %v2773
    %v2775 = vmul.f32 %v2772, %v2774
    %v2776 = vadd.f32 %v2772, %v2775
    %vm2777 = vweird.f32 %v2694
    %vm2778 = vweird.f32 %v2772
    %vm2779 = vmor %vm2777, %vm2778
    %v2780 = vsel %vm2779, %v2772, %v2776
    %v2781 = vand.u32 2147483647, %v2694
    %vm2782 = vcmp.eq.f32.partialorder %v2781, 8.507059e+37
    %v2783 = vand.u32 %v2694, 2147483648
    %v2784 = vor.u32 1.1754944e-38, %v2783
    %v2785 = vsel %vm2782, %v2784, %v2780
    %v2786 = vmul.f32 1.0, %v2785
    %v2787 = vrcp.pop %v2695
    %v2788 = vmul.f32 %v2695, %v2787
    %v2789 = vsub.f32 1.0, %v2788
    %v2790 = vmul.f32 %v2787, %v2789
    %v2791 = vadd.f32 %v2787, %v2790
    %vm2792 = vweird.f32 %v2695
    %vm2793 = vweird.f32 %v2787
    %vm2794 = vmor %vm2792, %vm2793
    %v2795 = vsel %vm2794, %v2787, %v2791
    %v2796 = vand.u32 2147483647, %v2695
    %vm2797 = vcmp.eq.f32.partialorder %v2796, 8.507059e+37
    %v2798 = vand.u32 %v2695, 2147483648
    %v2799 = vor.u32 1.1754944e-38, %v2798
    %v2800 = vsel %vm2797, %v2799, %v2795
    %v2801 = vmul.f32 1.0, %v2800
    %v2802 = vrcp.pop %v2696
    %v2803 = vmul.f32 %v2696, %v2802
    %v2804 = vsub.f32 1.0, %v2803
    %v2805 = vmul.f32 %v2802, %v2804
    %v2806 = vadd.f32 %v2802, %v2805
    %vm2807 = vweird.f32 %v2696
    %vm2808 = vweird.f32 %v2802
    %vm2809 = vmor %vm2807, %vm2808
    %v2810 = vsel %vm2809, %v2802, %v2806
    %v2811 = vand.u32 2147483647, %v2696
    %vm2812 = vcmp.eq.f32.partialorder %v2811, 8.507059e+37
    %v2813 = vand.u32 %v2696, 2147483648
    %v2814 = vor.u32 1.1754944e-38, %v2813
    %v2815 = vsel %vm2812, %v2814, %v2810
    %v2816 = vmul.f32 1.0, %v2815
    %v2817 = vadd.f32 %v2646, %v33
    %v2818 = vadd.f32 %v2649, %v38
    %v2819 = vadd.f32 %v2652, %v43
    %v2820 = vadd.f32 %v2655, %v48
    %v2821 = vmul.f32 %v2711, %v2817
    %v2822 = vmul.f32 %v2726, %v2818
    %v2823 = vmul.f32 %v2741, %v2819
    %v2824 = vmul.f32 %v2756, %v2820
    %v2825 = vadd.f32 %v995, %v2821
    %v2826 = vadd.f32 %v996, %v2822
    %v2827 = vadd.f32 %v997, %v2823
    %v2828 = vadd.f32 %v998, %v2824
    %v2829 = vtanh.pop %v2825
    %v2830 = vtanh.pop %v2826
    %v2831 = vtanh.pop %v2827
    %v2832 = vtanh.pop %v2828
    %v2833 = vsub.f32 %v2583, %v2829
    %v2834 = vsub.f32 %v2584, %v2830
    %v2835 = vsub.f32 %v2585, %v2831
    %v2836 = vsub.f32 %v2586, %v2832
    %v2837 = vmul.f32 %v2771, %v2833
    %v2838 = vmul.f32 %v2786, %v2834
    %v2839 = vmul.f32 %v2801, %v2835
    %v2840 = vmul.f32 %v2816, %v2836
    %v2841 = vadd.f32 %v2829, %v2837
    %v2842 = vadd.f32 %v2830, %v2838
    %v2843 = vadd.f32 %v2831, %v2839
    %v2844 = vadd.f32 %v2832, %v2840
    %v2845 = vmul.f32 %v2841, %v53
    %v2846 = vmul.f32 %v2842, %v58
    %v2847 = vmul.f32 %v2843, %v63
    %v2848 = vmul.f32 %v2844, %v68
    %v2849 = vadd.f32 %v2845, %v2846
    %v2850 = vadd.f32 %v2849, %v2847
    %v2851 = vadd.f32 %v2850, %v2848
    %v2852 = vrot.slane %v2851, 4
    %v2853 = vadd.f32 %v2851, %v2852
    %v2854 = vrot.slane %v2853, 2
    %v2855 = vadd.f32 %v2853, %v2854
    %v2856 = vrot.slane %v2855, 1
    %v2857 = vadd.f32 %v2855, %v2856
    %v2858 = vadd.f32 %v2857, %v1308
    %vm2859 = vcmp.ge.f32.partialorder %v2858, 0.0
    %v2860 = vmul.f32 %v2858, 0.01
    %v2861 = vsel %vm2859, %v2858, %v2860
    %2862 = vmatpush.msra.mxu0 0.0
    %2863 = vmatpush.msra.mxu0 0.0
    %2864 = vmatpush.msra.mxu0 0.0
    %2865 = vmatpush.msra.mxu0 0.0
    %2866 = vmatpush.msra.mxu0 0.0
    %2867 = vmatpush.msra.mxu0 0.0
    %2868 = vmatpush.msra.mxu0 0.0
    %2869 = vmatpush.msra.mxu0 0.0
    %2870 = vmatpush.msra.mxu0 0.0
    %2871 = vmatpush.msra.mxu0 0.0
    %2872 = vmatpush.msra.mxu0 0.0
    %2873 = vmatpush.msra.mxu0 0.0
    %2874 = vmatpush.msra.mxu0 %v2844
    %2875 = vmatpush.msra.mxu0 %v2843
    %2876 = vmatpush.msra.mxu0 %v2842
    %2877 = vmatpush.msra.mxu0 %v2841
    %2878 = vmatmul.f32.gmra.mxu0 %v1017
    %v2879 = vpop.f32.mrf.mxu0
    %v2880 = vadd.f32 0.0, %v2879
    %2881 = vmatmul.f32.gmra.mxu0 %v1020
    %v2882 = vpop.f32.mrf.mxu0
    %v2883 = vadd.f32 0.0, %v2882
    %2884 = vmatmul.f32.gmra.mxu0 %v1023
    %v2885 = vpop.f32.mrf.mxu0
    %v2886 = vadd.f32 0.0, %v2885
    %2887 = vmatmul.f32.gmra.mxu0 %v1026
    %v2888 = vpop.f32.mrf.mxu0
    %v2889 = vadd.f32 0.0, %v2888
    %2890 = vmatmul.f32.gmra.mxu0 %v1029
    %v2891 = vpop.f32.mrf.mxu0
    %v2892 = vadd.f32 0.0, %v2891
    %2893 = vmatmul.f32.gmra.mxu0 %v1032
    %v2894 = vpop.f32.mrf.mxu0
    %v2895 = vadd.f32 0.0, %v2894
    %2896 = vmatmul.f32.gmra.mxu0 %v1035
    %v2897 = vpop.f32.mrf.mxu0
    %v2898 = vadd.f32 0.0, %v2897
    %2899 = vmatmul.f32.gmra.mxu0 %v1038
    %v2900 = vpop.f32.mrf.mxu0
    %v2901 = vadd.f32 0.0, %v2900
    %2902 = vmatmul.f32.gmra.mxu0 %v1041
    %v2903 = vpop.f32.mrf.mxu0
    %v2904 = vadd.f32 0.0, %v2903
    %2905 = vmatmul.f32.gmra.mxu0 %v1044
    %v2906 = vpop.f32.mrf.mxu0
    %v2907 = vadd.f32 0.0, %v2906
    %2908 = vmatmul.f32.gmra.mxu0 %v1047
    %v2909 = vpop.f32.mrf.mxu0
    %v2910 = vadd.f32 0.0, %v2909
    %2911 = vmatmul.f32.gmra.mxu0 %v1050
    %v2912 = vpop.f32.mrf.mxu0
    %v2913 = vadd.f32 0.0, %v2912
    %2914 = vdwg.mxu0
    %v2915 = vadd.f32 %v895, %v2880
    %v2916 = vadd.f32 %v896, %v2883
    %v2917 = vadd.f32 %v897, %v2886
    %v2918 = vadd.f32 %v898, %v2889
    %v2919 = vadd.f32 %v899, %v2892
    %v2920 = vadd.f32 %v900, %v2895
    %v2921 = vadd.f32 %v901, %v2898
    %v2922 = vadd.f32 %v902, %v2901
    %v2923 = vxor.u32 %v2915, 2147483648
    %v2924 = vxor.u32 %v2916, 2147483648
    %v2925 = vxor.u32 %v2917, 2147483648
    %v2926 = vxor.u32 %v2918, 2147483648
    %v2927 = vxor.u32 %v2919, 2147483648
    %v2928 = vxor.u32 %v2920, 2147483648
    %v2929 = vxor.u32 %v2921, 2147483648
    %v2930 = vxor.u32 %v2922, 2147483648
    %v2931 = vmul.f32 %v2923, 1.442695
    %v2932 = vpow.pop %v2931
    %v2933 = vmul.f32 %v2924, 1.442695
    %v2934 = vpow.pop %v2933
    %v2935 = vmul.f32 %v2925, 1.442695
    %v2936 = vpow.pop %v2935
    %v2937 = vmul.f32 %v2926, 1.442695
    %v2938 = vpow.pop %v2937
    %v2939 = vmul.f32 %v2927, 1.442695
    %v2940 = vpow.pop %v2939
    %v2941 = vmul.f32 %v2928, 1.442695
    %v2942 = vpow.pop %v2941
    %v2943 = vmul.f32 %v2929, 1.442695
    %v2944 = vpow.pop %v2943
    %v2945 = vmul.f32 %v2930, 1.442695
    %v2946 = vpow.pop %v2945
    %v2947 = vadd.f32 %v2932, 1.0
    %v2948 = vadd.f32 %v2934, 1.0
    %v2949 = vadd.f32 %v2936, 1.0
    %v2950 = vadd.f32 %v2938, 1.0
    %v2951 = vadd.f32 %v2940, 1.0
    %v2952 = vadd.f32 %v2942, 1.0
    %v2953 = vadd.f32 %v2944, 1.0
    %v2954 = vadd.f32 %v2946, 1.0
    %v2955 = vrcp.pop %v2947
    %v2956 = vmul.f32 %v2947, %v2955
    %v2957 = vsub.f32 1.0, %v2956
    %v2958 = vmul.f32 %v2955, %v2957
    %v2959 = vadd.f32 %v2955, %v2958
    %vm2960 = vweird.f32 %v2947
    %vm2961 = vweird.f32 %v2955
    %vm2962 = vmor %vm2960, %vm2961
    %v2963 = vsel %vm2962, %v2955, %v2959
    %v2964 = vand.u32 2147483647, %v2947
    %vm2965 = vcmp.eq.f32.partialorder %v2964, 8.507059e+37
    %v2966 = vand.u32 %v2947, 2147483648
    %v2967 = vor.u32 1.1754944e-38, %v2966
    %v2968 = vsel %vm2965, %v2967, %v2963
    %v2969 = vmul.f32 1.0, %v2968
    %v2970 = vrcp.pop %v2948
    %v2971 = vmul.f32 %v2948, %v2970
    %v2972 = vsub.f32 1.0, %v2971
    %v2973 = vmul.f32 %v2970, %v2972
    %v2974 = vadd.f32 %v2970, %v2973
    %vm2975 = vweird.f32 %v2948
    %vm2976 = vweird.f32 %v2970
    %vm2977 = vmor %vm2975, %vm2976
    %v2978 = vsel %vm2977, %v2970, %v2974
    %v2979 = vand.u32 2147483647, %v2948
    %vm2980 = vcmp.eq.f32.partialorder %v2979, 8.507059e+37
    %v2981 = vand.u32 %v2948, 2147483648
    %v2982 = vor.u32 1.1754944e-38, %v2981
    %v2983 = vsel %vm2980, %v2982, %v2978
    %v2984 = vmul.f32 1.0, %v2983
    %v2985 = vrcp.pop %v2949
    %v2986 = vmul.f32 %v2949, %v2985
    %v2987 = vsub.f32 1.0, %v2986
    %v2988 = vmul.f32 %v2985, %v2987
    %v2989 = vadd.f32 %v2985, %v2988
    %vm2990 = vweird.f32 %v2949
    %vm2991 = vweird.f32 %v2985
    %vm2992 = vmor %vm2990, %vm2991
    %v2993 = vsel %vm2992, %v2985, %v2989
    %v2994 = vand.u32 2147483647, %v2949
    %vm2995 = vcmp.eq.f32.partialorder %v2994, 8.507059e+37
    %v2996 = vand.u32 %v2949, 2147483648
    %v2997 = vor.u32 1.1754944e-38, %v2996
    %v2998 = vsel %vm2995, %v2997, %v2993
    %v2999 = vmul.f32 1.0, %v2998
    %v3000 = vrcp.pop %v2950
    %v3001 = vmul.f32 %v2950, %v3000
    %v3002 = vsub.f32 1.0, %v3001
    %v3003 = vmul.f32 %v3000, %v3002
    %v3004 = vadd.f32 %v3000, %v3003
    %vm3005 = vweird.f32 %v2950
    %vm3006 = vweird.f32 %v3000
    %vm3007 = vmor %vm3005, %vm3006
    %v3008 = vsel %vm3007, %v3000, %v3004
    %v3009 = vand.u32 2147483647, %v2950
    %vm3010 = vcmp.eq.f32.partialorder %v3009, 8.507059e+37
    %v3011 = vand.u32 %v2950, 2147483648
    %v3012 = vor.u32 1.1754944e-38, %v3011
    %v3013 = vsel %vm3010, %v3012, %v3008
    %v3014 = vmul.f32 1.0, %v3013
    %v3015 = vrcp.pop %v2951
    %v3016 = vmul.f32 %v2951, %v3015
    %v3017 = vsub.f32 1.0, %v3016
    %v3018 = vmul.f32 %v3015, %v3017
    %v3019 = vadd.f32 %v3015, %v3018
    %vm3020 = vweird.f32 %v2951
    %vm3021 = vweird.f32 %v3015
    %vm3022 = vmor %vm3020, %vm3021
    %v3023 = vsel %vm3022, %v3015, %v3019
    %v3024 = vand.u32 2147483647, %v2951
    %vm3025 = vcmp.eq.f32.partialorder %v3024, 8.507059e+37
    %v3026 = vand.u32 %v2951, 2147483648
    %v3027 = vor.u32 1.1754944e-38, %v3026
    %v3028 = vsel %vm3025, %v3027, %v3023
    %v3029 = vmul.f32 1.0, %v3028
    %v3030 = vrcp.pop %v2952
    %v3031 = vmul.f32 %v2952, %v3030
    %v3032 = vsub.f32 1.0, %v3031
    %v3033 = vmul.f32 %v3030, %v3032
    %v3034 = vadd.f32 %v3030, %v3033
    %vm3035 = vweird.f32 %v2952
    %vm3036 = vweird.f32 %v3030
    %vm3037 = vmor %vm3035, %vm3036
    %v3038 = vsel %vm3037, %v3030, %v3034
    %v3039 = vand.u32 2147483647, %v2952
    %vm3040 = vcmp.eq.f32.partialorder %v3039, 8.507059e+37
    %v3041 = vand.u32 %v2952, 2147483648
    %v3042 = vor.u32 1.1754944e-38, %v3041
    %v3043 = vsel %vm3040, %v3042, %v3038
    %v3044 = vmul.f32 1.0, %v3043
    %v3045 = vrcp.pop %v2953
    %v3046 = vmul.f32 %v2953, %v3045
    %v3047 = vsub.f32 1.0, %v3046
    %v3048 = vmul.f32 %v3045, %v3047
    %v3049 = vadd.f32 %v3045, %v3048
    %vm3050 = vweird.f32 %v2953
    %vm3051 = vweird.f32 %v3045
    %vm3052 = vmor %vm3050, %vm3051
    %v3053 = vsel %vm3052, %v3045, %v3049
    %v3054 = vand.u32 2147483647, %v2953
    %vm3055 = vcmp.eq.f32.partialorder %v3054, 8.507059e+37
    %v3056 = vand.u32 %v2953, 2147483648
    %v3057 = vor.u32 1.1754944e-38, %v3056
    %v3058 = vsel %vm3055, %v3057, %v3053
    %v3059 = vmul.f32 1.0, %v3058
    %v3060 = vrcp.pop %v2954
    %v3061 = vmul.f32 %v2954, %v3060
    %v3062 = vsub.f32 1.0, %v3061
    %v3063 = vmul.f32 %v3060, %v3062
    %v3064 = vadd.f32 %v3060, %v3063
    %vm3065 = vweird.f32 %v2954
    %vm3066 = vweird.f32 %v3060
    %vm3067 = vmor %vm3065, %vm3066
    %v3068 = vsel %vm3067, %v3060, %v3064
    %v3069 = vand.u32 2147483647, %v2954
    %vm3070 = vcmp.eq.f32.partialorder %v3069, 8.507059e+37
    %v3071 = vand.u32 %v2954, 2147483648
    %v3072 = vor.u32 1.1754944e-38, %v3071
    %v3073 = vsel %vm3070, %v3072, %v3068
    %v3074 = vmul.f32 1.0, %v3073
    %v3075 = vadd.f32 %v2904, %v33
    %v3076 = vadd.f32 %v2907, %v38
    %v3077 = vadd.f32 %v2910, %v43
    %v3078 = vadd.f32 %v2913, %v48
    %v3079 = vmul.f32 %v2969, %v3075
    %v3080 = vmul.f32 %v2984, %v3076
    %v3081 = vmul.f32 %v2999, %v3077
    %v3082 = vmul.f32 %v3014, %v3078
    %v3083 = vadd.f32 %v999, %v3079
    %v3084 = vadd.f32 %v1000, %v3080
    %v3085 = vadd.f32 %v1001, %v3081
    %v3086 = vadd.f32 %v1002, %v3082
    %v3087 = vtanh.pop %v3083
    %v3088 = vtanh.pop %v3084
    %v3089 = vtanh.pop %v3085
    %v3090 = vtanh.pop %v3086
    %v3091 = vsub.f32 %v2841, %v3087
    %v3092 = vsub.f32 %v2842, %v3088
    %v3093 = vsub.f32 %v2843, %v3089
    %v3094 = vsub.f32 %v2844, %v3090
    %v3095 = vmul.f32 %v3029, %v3091
    %v3096 = vmul.f32 %v3044, %v3092
    %v3097 = vmul.f32 %v3059, %v3093
    %v3098 = vmul.f32 %v3074, %v3094
    %v3099 = vadd.f32 %v3087, %v3095
    %v3100 = vadd.f32 %v3088, %v3096
    %v3101 = vadd.f32 %v3089, %v3097
    %v3102 = vadd.f32 %v3090, %v3098
    %v3103 = vmul.f32 %v3099, %v53
    %v3104 = vmul.f32 %v3100, %v58
    %v3105 = vmul.f32 %v3101, %v63
    %v3106 = vmul.f32 %v3102, %v68
    %v3107 = vadd.f32 %v3103, %v3104
    %v3108 = vadd.f32 %v3107, %v3105
    %v3109 = vadd.f32 %v3108, %v3106
    %v3110 = vrot.slane %v3109, 4
    %v3111 = vadd.f32 %v3109, %v3110
    %v3112 = vrot.slane %v3111, 2
    %v3113 = vadd.f32 %v3111, %v3112
    %v3114 = vrot.slane %v3113, 1
    %v3115 = vadd.f32 %v3113, %v3114
    %v3116 = vadd.f32 %v3115, %v1308
    %vm3117 = vcmp.ge.f32.partialorder %v3116, 0.0
    %v3118 = vmul.f32 %v3116, 0.01
    %v3119 = vsel %vm3117, %v3116, %v3118
    %v3121 = vrot.slane %v1313, 2
    %v3124 = vrot.slane %v1571, 1
    %v3127 = vrot.slane %v2087, 7
    %v3130 = vrot.slane %v2345, 6
    %v3133 = vrot.slane %v2603, 5
    %v3136 = vrot.slane %v2861, 4
    %v3139 = vrot.slane %v3119, 3
    %vm3141 = vcmask 1040384
    %v3142 = vsel %vm3141, %v3121, %v3124
    %vm3143 = vcmask 1041408
    %v3144 = vsel %vm3143, %v3142, %v1829
    %vm3145 = vcmask 1042432
    %v3146 = vsel %vm3145, %v3144, %v3127
    %vm3147 = vcmask 1043456
    %v3148 = vsel %vm3147, %v3146, %v3130
    %vm3149 = vcmask 1044480
    %v3150 = vsel %vm3149, %v3148, %v3133
    %vm3151 = vcmask 1045504
    %v3152 = vsel %vm3151, %v3150, %v3136
    %vm3153 = vcmask 1046528
    %v3154 = vsel %vm3153, %v3152, %v3139
    %3155 = vst [vmem:[#allocation2] sm:$0xff] %v3154
    %3156 = vst [vmem:[#allocation2 + $0x8] sm:$0xff] 0.0
    %3157 = vst [vmem:[#allocation2 + $0x10] sm:$0xff] 0.0
    %3158 = vst [vmem:[#allocation2 + $0x18] sm:$0xff] 0.0
    %3159 = vst [vmem:[#allocation2 + $0x20] sm:$0xff] 0.0
    // Predicated region
    $region18: #{tpu_custom_call.1} parent=1 // pred_check
      _
    $region19: #{tpu_custom_call.1} parent=1 // pred_check_branch
      %3161 = sbr.rel (0) target = $region21
    $region20: #{tpu_custom_call.1} parent=1 // pred_region
      %3163 = vsyncadd [#allocation3], 0
      %s3164 = sshll.u32 [#allocation2], 4
      %s3165 = int_to_ptr.vmem [resolvable:$true] %s3164
      %s3166 = sshll.u32 %s4, 4
      %s3167 = int_to_ptr.hbm [resolvable:$true] %s3166
      %3172 = dma.vmem_to_hbm [thread:$0]  %s3165, 640, %s3167, [#allocation3], 128, 128, 8
    $region21: #{tpu_custom_call.1} parent=1 // pred_fallthru
      _
    // Predicated region
    $region22: #{tpu_custom_call.1} parent=1 // pred_check
      _
    $region23: #{tpu_custom_call.1} parent=1 // pred_check_branch
      %3174 = sbr.rel (0) target = $region25
    $region24: #{tpu_custom_call.1} parent=1 // pred_region
      %3176 = dma.done [#allocation3], 640
    $region25: #{tpu_custom_call.1} parent=1 // pred_fallthru
      _
    %3177 = vsyncpa [#allocation3], 1

</llo_original>
